<compile_context>
chip_gen: v6e
topology: v6e:2x2x1
jax: 0.10.0
libtpu: 0.0.40
codegen_flags: <defaults>
</compile_context>

<pallas_src>
import functools

import jax
import jax.numpy as jnp
import numpy as np
from jax.experimental import pallas as pl
from jax.experimental.pallas import tpu as pltpu


# ----------------------------------------------------------------------------
# In-kernel helpers (operate on (C, ML) values: channels x packed lane axis)
# ----------------------------------------------------------------------------
def _shift_lanes(x, s):
    """y[:, m] = x[:, (m + s) mod ML]; wrap garbage is masked by the caller."""
    if s == 0:
        return x
    ml = x.shape[-1]
    return pltpu.roll(x, shift=(-s) % ml, axis=1)


def _conv3x3(x, w_ref, b_ref, mask_ref, w_stride, cdt, relu):
    """3x3 'same' (PyTorch Conv2d, padding=1) conv in (Cin, ML) layout.

    One im2col concat + ONE K = 9*Cin matmul.
      x:        (Cin, ML) f32; lane m is per-image row-major (image blocks).
      w_ref:    (Cout, 9*Cin) packed weights, element [co, t*Cin + ci], t=kh*3+kw.
      b_ref:    (Cout, 1) f32 bias.
      mask_ref: (9, 1, ML) precomputed 0/1 border-validity mask per tap.
    """
    taps = []
    for t in range(9):
        oh, ow = t // 3 - 1, t % 3 - 1
        taps.append(_shift_lanes(x, oh * w_stride + ow) * mask_ref[t])
    row = jnp.concatenate(taps, axis=0).astype(cdt)                  # (9*Cin, ML)
    y = jnp.dot(w_ref[...], row,
                preferred_element_type=jnp.float32) + b_ref[...]     # (Cout, ML)
    return jnp.maximum(y, 0.0) if relu else y


# ----------------------------------------------------------------------------
# Fused forward kernel (B lane-batched images per grid step)
# ----------------------------------------------------------------------------
def _fused_kernel(x_ref, mf_ref, mh_ref, pool_ref, up_ref,
                  w_e1, b_e1, w_bt, b_bt, w_dc, b_dc,
                  w_ts, b_ts, w_hd, b_hd,
                  o_ref, *, w_dim, w2_dim, cdt):
    x = x_ref[0].astype(jnp.float32)                                  # (4,  ML)

    # ------------------------------- U-Net --------------------------------
    e1 = _conv3x3(x, w_e1, b_e1, mf_ref, w_dim, cdt, True)            # (8,  ML)

    # 2x2/stride-2 max pool: w-max / h-max on roll (XLU) + maximum (VPU),
    # then ONE precomputed 0/1 compaction matmul to the packed half-res lanes
    # (compaction only reads top-left-corner lanes, so roll wrap never leaks).
    y = jnp.maximum(e1, _shift_lanes(e1, 1))
    y = jnp.maximum(y, _shift_lanes(y, w_dim))
    p1 = jnp.dot(y.astype(cdt), pool_ref[...],
                 preferred_element_type=jnp.float32)                  # (8,  MLh)

    bn = _conv3x3(p1, w_bt, b_bt, mh_ref, w2_dim, cdt, True)          # (16, MLh)

    # NN 2x upsample via precomputed 0/1 selection matmul; its all-zero rows
    # discard the half-res pad lanes (which hold relu(bias), not zero).
    up = jnp.dot(bn.astype(cdt), up_ref[...],
                 preferred_element_type=jnp.float32)                  # (16, ML)

    cat = jnp.concatenate([up, e1], axis=0)                           # (24, ML)
    feat = _conv3x3(cat, w_dc, b_dc, mf_ref, w_dim, cdt, True)        # (16, ML)

    # -------------------- retHead(16) + folded seg head -------------------
    # tower conv3x3(16->16) and the 1x1 seg conv share input `feat`; they are
    # fused into one conv3x3(16->18): rows 0:16 tower (ReLU'd below), rows
    # 16:18 seg (centre-tap-only weights, no ReLU).
    ts = _conv3x3(feat, w_ts, b_ts, mf_ref, w_dim, cdt, False)        # (18, ML)
    tower = jnp.maximum(ts[0:16], 0.0)                                # (16, ML)
    bp = _conv3x3(tower, w_hd, b_hd, mf_ref, w_dim, cdt, False)       # (18, ML) box+cls

    # lane-dense stores straight into output rows: [seg(2) | box(12) | cls(6)]
    o_ref[0, 0:2, :] = ts[16:18].astype(o_ref.dtype)
    o_ref[0, 2:20, :] = bp.astype(o_ref.dtype)


# ----------------------------------------------------------------------------
# Host-side constants: lane geometry (masks + selection matrices)
# ----------------------------------------------------------------------------
def _build_geometry(b, h, w, sel_dtype):
    """Precomputed lane-geometry constants for b images packed on the lane axis."""
    m_img, h2, w2 = h * w, h // 2, w // 2
    q_img = h2 * w2
    ml_full = b * m_img
    ml_half = -(-(b * q_img) // 128) * 128          # half-res lanes, padded to 128

    def border_masks(ml, n_valid, hd, wd):
        lane = np.arange(ml)
        local = lane % (hd * wd)
        hh, ww = local // wd, local % wd
        ok_img = lane < n_valid
        m = np.zeros((9, ml), np.float32)
        for t in range(9):
            oh, ow = t // 3 - 1, t % 3 - 1
            m[t] = (ok_img & (hh + oh >= 0) & (hh + oh < hd)
                    & (ww + ow >= 0) & (ww + ow < wd)).astype(np.float32)
        return m.reshape(9, 1, ml)

    mask_full = border_masks(ml_full, b * m_img, h, w)
    mask_half = border_masks(ml_half, b * q_img, h2, w2)

    # 2x2/stride-2 pool compaction: picks the top-left-corner lane per block.
    pool_m = np.zeros((ml_full, ml_half), np.float32)
    dst = np.arange(b * q_img)
    img, r = dst // q_img, dst % q_img
    src = img * m_img + 2 * (r // w2) * w + 2 * (r % w2)
    pool_m[src, dst] = 1.0

    # nearest-neighbour 2x upsample; pad src rows stay all-zero -> discarded.
    up_m = np.zeros((ml_half, ml_full), np.float32)
    dst = np.arange(ml_full)
    img, r = dst // m_img, dst % m_img
    src = img * q_img + (r // w // 2) * w2 + (r % w) // 2
    up_m[src, dst] = 1.0

    return (jnp.asarray(mask_full), jnp.asarray(mask_half),
            jnp.asarray(pool_m, dtype=sel_dtype),
            jnp.asarray(up_m, dtype=sel_dtype),
            ml_full, ml_half)


# ----------------------------------------------------------------------------
# Parameters (deterministic, synthetic) + packing for the kernel layout
# ----------------------------------------------------------------------------
def _init_conv(key, kh, kw, cin, cout):
    kw_key, kb_key = jax.random.split(key)
    fan_in = kh * kw * cin
    w = jax.random.normal(kw_key, (kh, kw, cin, cout), jnp.float32)
    w = w * (1.0 / jnp.sqrt(jnp.float32(fan_in)))
    b = jax.random.normal(kb_key, (cout,), jnp.float32) * 0.01
    return w, b


def init_params(seed=0, in_ch=4, base=8, feat_ch=16, num_classes=2,
                num_anchors=3, ret_classes=2):
    keys = jax.random.split(jax.random.PRNGKey(seed), 7)
    return {
        "enc1":  _init_conv(keys[0], 3, 3, in_ch, base),
        "bott":  _init_conv(keys[1], 3, 3, base, feat_ch),
        "dec":   _init_conv(keys[2], 3, 3, feat_ch + base, feat_ch),
        "seg":   _init_conv(keys[3], 1, 1, feat_ch, num_classes),
        "tower": _init_conv(keys[4], 3, 3, feat_ch, feat_ch),          # retHead
        "box":   _init_conv(keys[5], 3, 3, feat_ch, num_anchors * 4),
        "cls":   _init_conv(keys[6], 3, 3, feat_ch, num_anchors * ret_classes),
    }


def _pack3x3(w, b, dt):
    """(KH,KW,Cin,Cout) HWIO + (Cout,) -> ((Cout, 9*Cin) in dt, (Cout, 1) f32)."""
    kh, kw, cin, cout = w.shape
    wp = jnp.transpose(w, (3, 0, 1, 2)).reshape(cout, kh * kw * cin).astype(dt)
    return wp, b.reshape(cout, 1).astype(jnp.float32)


def pack_params(params, compute_dtype=jnp.bfloat16):
    """Pack natural conv params into the kernel's (Cout, 9*Cin) weight slabs."""
    w_e1, b_e1 = _pack3x3(*params["enc1"], compute_dtype)
    w_bt, b_bt = _pack3x3(*params["bott"], compute_dtype)
    w_dc, b_dc = _pack3x3(*params["dec"], compute_dtype)
    # tower conv3x3(16->16) fused with the 1x1 seg conv (centre tap only).
    w_tw, b_tw = params["tower"]
    w_sg, b_sg = params["seg"]
    cin_s, cout_s = w_sg.shape[2], w_sg.shape[3]
    seg_as_3x3 = jnp.zeros((3, 3, cin_s, cout_s), jnp.float32).at[1, 1].set(w_sg[0, 0])
    w_ts, b_ts = _pack3x3(jnp.concatenate([w_tw, seg_as_3x3], axis=-1),
                          jnp.concatenate([b_tw, b_sg], axis=0), compute_dtype)
    # box + cls heads fused into one conv (Cout = 12 + 6 = 18).
    w_bx, b_bx = params["box"]
    w_cl, b_cl = params["cls"]
    w_hd, b_hd = _pack3x3(jnp.concatenate([w_bx, w_cl], axis=-1),
                          jnp.concatenate([b_bx, b_cl], axis=0), compute_dtype)
    return [w_e1, b_e1, w_bt, b_bt, w_dc, b_dc, w_ts, b_ts, w_hd, b_hd]


def _const_spec(a):
    zeros = (0,) * a.ndim
    return pl.BlockSpec(a.shape, lambda i, _z=zeros: _z)


def _default_images_per_step(n):
    kind = ""
    try:
        kind = jax.devices()[0].device_kind.lower()
    except Exception:
        pass
    # 2 TensorCores per chip (v4 / v5p / v7x): keep >= 2 grid steps so both
    # cores get work.  Single-TC chips (v5e/v6e): collapse the whole (small)
    # batch into one fat lane-batched grid step.  Cap B so the precomputed
    # selection matrices stay small.
    if n >= 2 and any(t in kind for t in ("v4", "v5p", "v7", "7x")):
        return min(-(-n // 2), 8)
    return min(n, 8)


# ----------------------------------------------------------------------------
# Forward pass:  retinaUnNet.forward(x) -> (segmentation, b_preds, preds)
# ----------------------------------------------------------------------------
def retina_unnet_forward(x_nchw, params, *, images_per_step=None,
                         compute_dtype=jnp.bfloat16):
    n, cin, h, w = x_nchw.shape
    m_img = h * w
    assert h % 2 == 0 and w % 2 == 0 and m_img % 128 == 0

    b = images_per_step if images_per_step is not None else _default_images_per_step(n)
    b = max(1, min(int(b), n))
    g = -(-n // b)
    n_pad = g * b

    packed = pack_params(params, compute_dtype)
    mask_f, mask_h, pool_m, up_m, ml_full, ml_half = _build_geometry(
        b, h, w, compute_dtype)

    if n_pad != n:
        x_nchw = jnp.concatenate(
            [x_nchw, jnp.zeros((n_pad - n, cin, h, w), x_nchw.dtype)], axis=0)
    # NCHW -> (G, Cin, B*H*W): B images side-by-side on the lane axis per step.
    x_slab = (x_nchw.reshape(g, b, cin, m_img)
              .transpose(0, 2, 1, 3)
              .reshape(g, cin, b * m_img))

    consts = [mask_f, mask_h, pool_m, up_m] + packed
    n_out = 2 + 12 + 6                                   # seg + box + cls

    flops = 2 * g * (8 * 36 * ml_full + 8 * ml_full * ml_half
                     + 16 * 72 * ml_half + 16 * ml_half * ml_full
                     + 16 * 216 * ml_full + 2 * 18 * 144 * ml_full)
    bytes_accessed = (x_slab.size * x_slab.dtype.itemsize
                      + g * n_out * ml_full * 4
                      + sum(int(np.prod(c.shape)) * c.dtype.itemsize for c in consts))

    out = pl.pallas_call(
        functools.partial(_fused_kernel, w_dim=w, w2_dim=w // 2, cdt=compute_dtype),
        out_shape=jax.ShapeDtypeStruct((g, n_out, ml_full), jnp.float32),
        grid=(g,),
        in_specs=[pl.BlockSpec((1, cin, ml_full), lambda i: (i, 0, 0))]
                 + [_const_spec(c) for c in consts],
        out_specs=pl.BlockSpec((1, n_out, ml_full), lambda i: (i, 0, 0)),
        compiler_params=pltpu.CompilerParams(dimension_semantics=("parallel",)),
        cost_estimate=pl.CostEstimate(flops=int(flops), transcendentals=0,
                                      bytes_accessed=int(bytes_accessed)),
    )(x_slab, *consts)

    out = (out.reshape(g, n_out, b, m_img)
           .transpose(0, 2, 1, 3)
           .reshape(n_pad, n_out, h, w))[:n]
    segmentation = out[:, 0:2]
    b_preds = out[:, 2:14]
    preds = out[:, 14:20]
    return segmentation, b_preds, preds


# ----------------------------------------------------------------------------
# Pure-JAX f32 reference of the same synthetic network (for validation)
# ----------------------------------------------------------------------------
def _reference_forward(x, params):
    hi = jax.lax.Precision.HIGHEST

    def conv(v, w, b, padding):
        y = jax.lax.conv_general_dilated(
            v, w, window_strides=(1, 1), padding=padding,
            dimension_numbers=("NCHW", "HWIO", "NCHW"), precision=hi)
        return y + b.reshape(1, -1, 1, 1)

    e1 = jnp.maximum(conv(x, *params["enc1"], "SAME"), 0.0)
    p1 = jax.lax.reduce_window(e1, -jnp.inf, jax.lax.max,
                               (1, 1, 2, 2), (1, 1, 2, 2), "VALID")
    bn = jnp.maximum(conv(p1, *params["bott"], "SAME"), 0.0)
    up = jnp.repeat(jnp.repeat(bn, 2, axis=2), 2, axis=3)
    feat = jnp.maximum(conv(jnp.concatenate([up, e1], axis=1),
                            *params["dec"], "SAME"), 0.0)
    seg = conv(feat, *params["seg"], "SAME")
    tower = jnp.maximum(conv(feat, *params["tower"], "SAME"), 0.0)
    box = conv(tower, *params["box"], "SAME")
    cls = conv(tower, *params["cls"], "SAME")
    return seg, box, cls


# ----------------------------------------------------------------------------
if __name__ == "__main__":
    key = jax.random.PRNGKey(0)
    x = jax.random.normal(key, (2, 4, 16, 16), jnp.float32)       # NCHW input

    params = init_params(seed=0, in_ch=4)
    fwd = jax.jit(functools.partial(retina_unnet_forward, params=params))

    seg, b_preds, preds = fwd(x)
    jax.block_until_ready((seg, b_preds, preds))

    assert seg.shape == (2, 2, 16, 16), seg.shape
    assert b_preds.shape == (2, 12, 16, 16), b_preds.shape
    assert preds.shape == (2, 6, 16, 16), preds.shape

    # Numerical sanity check against the f32 reference (kernel matmuls run in
    # bf16 with f32 accumulation -> loose tolerance).
    seg_r, box_r, cls_r = jax.jit(
        functools.partial(_reference_forward, params=params))(x)
    for got, want in ((seg, seg_r), (b_preds, box_r), (preds, cls_r)):
        np.testing.assert_allclose(np.asarray(got), np.asarray(want),
                                   rtol=5e-2, atol=1.2e-1)

    print("KERNEL_OK")
</pallas_src>

<mosaic_0001>
module attributes {stable_mosaic.version = 11 : i64} {
  func.func @_fused_kernel(%arg0: i32, %arg1: memref<1x4x512xf32, #tpu.memory_space<vmem>>, %arg2: memref<9x1x512xf32, #tpu.memory_space<vmem>>, %arg3: memref<9x1x128xf32, #tpu.memory_space<vmem>>, %arg4: memref<512x128xbf16, #tpu.memory_space<vmem>>, %arg5: memref<128x512xbf16, #tpu.memory_space<vmem>>, %arg6: memref<8x36xbf16, #tpu.memory_space<vmem>>, %arg7: memref<8x1xf32, #tpu.memory_space<vmem>>, %arg8: memref<16x72xbf16, #tpu.memory_space<vmem>>, %arg9: memref<16x1xf32, #tpu.memory_space<vmem>>, %arg10: memref<16x216xbf16, #tpu.memory_space<vmem>>, %arg11: memref<16x1xf32, #tpu.memory_space<vmem>>, %arg12: memref<18x144xbf16, #tpu.memory_space<vmem>>, %arg13: memref<18x1xf32, #tpu.memory_space<vmem>>, %arg14: memref<18x144xbf16, #tpu.memory_space<vmem>>, %arg15: memref<18x1xf32, #tpu.memory_space<vmem>>, %arg16: memref<1x20x512xf32, #tpu.memory_space<vmem>>) attributes {dimension_semantics = [#tpu.dimension_semantics<parallel>], iteration_bounds = array<i64: 1>, scalar_prefetch = 0 : i64, scratch_operands = 0 : i64, tpu.core_type = #tpu.core_type<tc>, window_params = [{transform_indices = @transform_0, window_bounds = array<i64: 1, 4, 512>}, {pipeline_mode = #tpu.pipeline_mode<synchronous>, transform_indices = @transform_1, window_bounds = array<i64: 9, 1, 512>}, {pipeline_mode = #tpu.pipeline_mode<synchronous>, transform_indices = @transform_2, window_bounds = array<i64: 9, 1, 128>}, {pipeline_mode = #tpu.pipeline_mode<synchronous>, transform_indices = @transform_3, window_bounds = array<i64: 512, 128>}, {pipeline_mode = #tpu.pipeline_mode<synchronous>, transform_indices = @transform_4, window_bounds = array<i64: 128, 512>}, {pipeline_mode = #tpu.pipeline_mode<synchronous>, transform_indices = @transform_5, window_bounds = array<i64: 8, 36>}, {pipeline_mode = #tpu.pipeline_mode<synchronous>, transform_indices = @transform_6, window_bounds = array<i64: 8, 1>}, {pipeline_mode = #tpu.pipeline_mode<synchronous>, transform_indices = @transform_7, window_bounds = array<i64: 16, 72>}, {pipeline_mode = #tpu.pipeline_mode<synchronous>, transform_indices = @transform_8, window_bounds = array<i64: 16, 1>}, {pipeline_mode = #tpu.pipeline_mode<synchronous>, transform_indices = @transform_9, window_bounds = array<i64: 16, 216>}, {pipeline_mode = #tpu.pipeline_mode<synchronous>, transform_indices = @transform_10, window_bounds = array<i64: 16, 1>}, {pipeline_mode = #tpu.pipeline_mode<synchronous>, transform_indices = @transform_11, window_bounds = array<i64: 18, 144>}, {pipeline_mode = #tpu.pipeline_mode<synchronous>, transform_indices = @transform_12, window_bounds = array<i64: 18, 1>}, {pipeline_mode = #tpu.pipeline_mode<synchronous>, transform_indices = @transform_13, window_bounds = array<i64: 18, 144>}, {pipeline_mode = #tpu.pipeline_mode<synchronous>, transform_indices = @transform_14, window_bounds = array<i64: 18, 1>}, {transform_indices = @transform_15, window_bounds = array<i64: 1, 20, 512>}]} {
    %c0 = arith.constant 0 : index
    %c0_0 = arith.constant 0 : index
    %c0_1 = arith.constant 0 : index
    %0 = vector.load %arg1[%c0, %c0_0, %c0_1] : memref<1x4x512xf32, #tpu.memory_space<vmem>>, vector<1x4x512xf32>
    %1 = vector.shape_cast %0 : vector<1x4x512xf32> to vector<4x512xf32>
    %c17_i32 = arith.constant 17 : i32
    %2 = tpu.dynamic_rotate %1 by %c17_i32 dim 1 : vector<4x512xf32>, i32 -> vector<4x512xf32>
    %c0_2 = arith.constant 0 : index
    %c0_3 = arith.constant 0 : index
    %c0_4 = arith.constant 0 : index
    %3 = vector.load %arg2[%c0_2, %c0_3, %c0_4] : memref<9x1x512xf32, #tpu.memory_space<vmem>>, vector<1x1x512xf32>
    %4 = vector.shape_cast %3 : vector<1x1x512xf32> to vector<1x512xf32>
    %5 = vector.broadcast %4 : vector<1x512xf32> to vector<4x512xf32>
    %6 = arith.mulf %2, %5 : vector<4x512xf32>
    %c16_i32 = arith.constant 16 : i32
    %7 = tpu.dynamic_rotate %1 by %c16_i32 dim 1 : vector<4x512xf32>, i32 -> vector<4x512xf32>
    %c1 = arith.constant 1 : index
    %c0_5 = arith.constant 0 : index
    %c0_6 = arith.constant 0 : index
    %8 = vector.load %arg2[%c1, %c0_5, %c0_6] : memref<9x1x512xf32, #tpu.memory_space<vmem>>, vector<1x1x512xf32>
    %9 = vector.shape_cast %8 : vector<1x1x512xf32> to vector<1x512xf32>
    %10 = vector.broadcast %9 : vector<1x512xf32> to vector<4x512xf32>
    %11 = arith.mulf %7, %10 : vector<4x512xf32>
    %c15_i32 = arith.constant 15 : i32
    %12 = tpu.dynamic_rotate %1 by %c15_i32 dim 1 : vector<4x512xf32>, i32 -> vector<4x512xf32>
    %c2 = arith.constant 2 : index
    %c0_7 = arith.constant 0 : index
    %c0_8 = arith.constant 0 : index
    %13 = vector.load %arg2[%c2, %c0_7, %c0_8] : memref<9x1x512xf32, #tpu.memory_space<vmem>>, vector<1x1x512xf32>
    %14 = vector.shape_cast %13 : vector<1x1x512xf32> to vector<1x512xf32>
    %15 = vector.broadcast %14 : vector<1x512xf32> to vector<4x512xf32>
    %16 = arith.mulf %12, %15 : vector<4x512xf32>
    %c1_i32 = arith.constant 1 : i32
    %17 = tpu.dynamic_rotate %1 by %c1_i32 dim 1 : vector<4x512xf32>, i32 -> vector<4x512xf32>
    %c3 = arith.constant 3 : index
    %c0_9 = arith.constant 0 : index
    %c0_10 = arith.constant 0 : index
    %18 = vector.load %arg2[%c3, %c0_9, %c0_10] : memref<9x1x512xf32, #tpu.memory_space<vmem>>, vector<1x1x512xf32>
    %19 = vector.shape_cast %18 : vector<1x1x512xf32> to vector<1x512xf32>
    %20 = vector.broadcast %19 : vector<1x512xf32> to vector<4x512xf32>
    %21 = arith.mulf %17, %20 : vector<4x512xf32>
    %c4 = arith.constant 4 : index
    %c0_11 = arith.constant 0 : index
    %c0_12 = arith.constant 0 : index
    %22 = vector.load %arg2[%c4, %c0_11, %c0_12] : memref<9x1x512xf32, #tpu.memory_space<vmem>>, vector<1x1x512xf32>
    %23 = vector.shape_cast %22 : vector<1x1x512xf32> to vector<1x512xf32>
    %24 = vector.broadcast %23 : vector<1x512xf32> to vector<4x512xf32>
    %25 = arith.mulf %1, %24 : vector<4x512xf32>
    %c511_i32 = arith.constant 511 : i32
    %26 = tpu.dynamic_rotate %1 by %c511_i32 dim 1 : vector<4x512xf32>, i32 -> vector<4x512xf32>
    %c5 = arith.constant 5 : index
    %c0_13 = arith.constant 0 : index
    %c0_14 = arith.constant 0 : index
    %27 = vector.load %arg2[%c5, %c0_13, %c0_14] : memref<9x1x512xf32, #tpu.memory_space<vmem>>, vector<1x1x512xf32>
    %28 = vector.shape_cast %27 : vector<1x1x512xf32> to vector<1x512xf32>
    %29 = vector.broadcast %28 : vector<1x512xf32> to vector<4x512xf32>
    %30 = arith.mulf %26, %29 : vector<4x512xf32>
    %c497_i32 = arith.constant 497 : i32
    %31 = tpu.dynamic_rotate %1 by %c497_i32 dim 1 : vector<4x512xf32>, i32 -> vector<4x512xf32>
    %c6 = arith.constant 6 : index
    %c0_15 = arith.constant 0 : index
    %c0_16 = arith.constant 0 : index
    %32 = vector.load %arg2[%c6, %c0_15, %c0_16] : memref<9x1x512xf32, #tpu.memory_space<vmem>>, vector<1x1x512xf32>
    %33 = vector.shape_cast %32 : vector<1x1x512xf32> to vector<1x512xf32>
    %34 = vector.broadcast %33 : vector<1x512xf32> to vector<4x512xf32>
    %35 = arith.mulf %31, %34 : vector<4x512xf32>
    %c496_i32 = arith.constant 496 : i32
    %36 = tpu.dynamic_rotate %1 by %c496_i32 dim 1 : vector<4x512xf32>, i32 -> vector<4x512xf32>
    %c7 = arith.constant 7 : index
    %c0_17 = arith.constant 0 : index
    %c0_18 = arith.constant 0 : index
    %37 = vector.load %arg2[%c7, %c0_17, %c0_18] : memref<9x1x512xf32, #tpu.memory_space<vmem>>, vector<1x1x512xf32>
    %38 = vector.shape_cast %37 : vector<1x1x512xf32> to vector<1x512xf32>
    %39 = vector.broadcast %38 : vector<1x512xf32> to vector<4x512xf32>
    %40 = arith.mulf %36, %39 : vector<4x512xf32>
    %c495_i32 = arith.constant 495 : i32
    %41 = tpu.dynamic_rotate %1 by %c495_i32 dim 1 : vector<4x512xf32>, i32 -> vector<4x512xf32>
    %c8 = arith.constant 8 : index
    %c0_19 = arith.constant 0 : index
    %c0_20 = arith.constant 0 : index
    %42 = vector.load %arg2[%c8, %c0_19, %c0_20] : memref<9x1x512xf32, #tpu.memory_space<vmem>>, vector<1x1x512xf32>
    %43 = vector.shape_cast %42 : vector<1x1x512xf32> to vector<1x512xf32>
    %44 = vector.broadcast %43 : vector<1x512xf32> to vector<4x512xf32>
    %45 = arith.mulf %41, %44 : vector<4x512xf32>
    %46 = tpu.concatenate %6, %11, %16, %21, %25, %30, %35, %40, %45 in 0 : vector<4x512xf32>, vector<4x512xf32>, vector<4x512xf32>, vector<4x512xf32>, vector<4x512xf32>, vector<4x512xf32>, vector<4x512xf32>, vector<4x512xf32>, vector<4x512xf32> -> vector<36x512xf32>
    %47 = arith.truncf %46 : vector<36x512xf32> to vector<36x512xbf16>
    %c0_21 = arith.constant 0 : index
    %c0_22 = arith.constant 0 : index
    %48 = vector.load %arg6[%c0_21, %c0_22] : memref<8x36xbf16, #tpu.memory_space<vmem>>, vector<8x36xbf16>
    %cst = arith.constant dense<0.000000e+00> : vector<8x512xf32>
    %49 = tpu.matmul %48, %47, %cst {dimension_numbers = #tpu.dot_dimension_numbers<[1], [0], [0], [1], [0, 0, 1, 1], [], []>} : vector<8x36xbf16>, vector<36x512xbf16>, vector<8x512xf32> -> vector<8x512xf32>
    %c0_23 = arith.constant 0 : index
    %c0_24 = arith.constant 0 : index
    %50 = vector.load %arg7[%c0_23, %c0_24] : memref<8x1xf32, #tpu.memory_space<vmem>>, vector<8x1xf32>
    %51 = vector.broadcast %50 : vector<8x1xf32> to vector<8x512xf32>
    %52 = arith.addf %49, %51 : vector<8x512xf32>
    %cst_25 = arith.constant 0.000000e+00 : f32
    %53 = vector.broadcast %cst_25 : f32 to vector<8x512xf32>
    %54 = arith.maximumf %52, %53 : vector<8x512xf32>
    %c511_i32_26 = arith.constant 511 : i32
    %55 = tpu.dynamic_rotate %54 by %c511_i32_26 dim 1 : vector<8x512xf32>, i32 -> vector<8x512xf32>
    %56 = arith.maximumf %54, %55 : vector<8x512xf32>
    %c496_i32_27 = arith.constant 496 : i32
    %57 = tpu.dynamic_rotate %56 by %c496_i32_27 dim 1 : vector<8x512xf32>, i32 -> vector<8x512xf32>
    %58 = arith.maximumf %56, %57 : vector<8x512xf32>
    %59 = arith.truncf %58 : vector<8x512xf32> to vector<8x512xbf16>
    %c0_28 = arith.constant 0 : index
    %c0_29 = arith.constant 0 : index
    %60 = vector.load %arg4[%c0_28, %c0_29] : memref<512x128xbf16, #tpu.memory_space<vmem>>, vector<512x128xbf16>
    %cst_30 = arith.constant dense<0.000000e+00> : vector<8x128xf32>
    %61 = tpu.matmul %59, %60, %cst_30 {dimension_numbers = #tpu.dot_dimension_numbers<[1], [0], [0], [1], [0, 0, 1, 1], [], []>} : vector<8x512xbf16>, vector<512x128xbf16>, vector<8x128xf32> -> vector<8x128xf32>
    %c9_i32 = arith.constant 9 : i32
    %62 = tpu.dynamic_rotate %61 by %c9_i32 dim 1 : vector<8x128xf32>, i32 -> vector<8x128xf32>
    %c0_31 = arith.constant 0 : index
    %c0_32 = arith.constant 0 : index
    %c0_33 = arith.constant 0 : index
    %63 = vector.load %arg3[%c0_31, %c0_32, %c0_33] : memref<9x1x128xf32, #tpu.memory_space<vmem>>, vector<1x1x128xf32>
    %64 = vector.shape_cast %63 : vector<1x1x128xf32> to vector<1x128xf32>
    %65 = vector.broadcast %64 : vector<1x128xf32> to vector<8x128xf32>
    %66 = arith.mulf %62, %65 : vector<8x128xf32>
    %c8_i32 = arith.constant 8 : i32
    %67 = tpu.dynamic_rotate %61 by %c8_i32 dim 1 : vector<8x128xf32>, i32 -> vector<8x128xf32>
    %c1_34 = arith.constant 1 : index
    %c0_35 = arith.constant 0 : index
    %c0_36 = arith.constant 0 : index
    %68 = vector.load %arg3[%c1_34, %c0_35, %c0_36] : memref<9x1x128xf32, #tpu.memory_space<vmem>>, vector<1x1x128xf32>
    %69 = vector.shape_cast %68 : vector<1x1x128xf32> to vector<1x128xf32>
    %70 = vector.broadcast %69 : vector<1x128xf32> to vector<8x128xf32>
    %71 = arith.mulf %67, %70 : vector<8x128xf32>
    %c7_i32 = arith.constant 7 : i32
    %72 = tpu.dynamic_rotate %61 by %c7_i32 dim 1 : vector<8x128xf32>, i32 -> vector<8x128xf32>
    %c2_37 = arith.constant 2 : index
    %c0_38 = arith.constant 0 : index
    %c0_39 = arith.constant 0 : index
    %73 = vector.load %arg3[%c2_37, %c0_38, %c0_39] : memref<9x1x128xf32, #tpu.memory_space<vmem>>, vector<1x1x128xf32>
    %74 = vector.shape_cast %73 : vector<1x1x128xf32> to vector<1x128xf32>
    %75 = vector.broadcast %74 : vector<1x128xf32> to vector<8x128xf32>
    %76 = arith.mulf %72, %75 : vector<8x128xf32>
    %c1_i32_40 = arith.constant 1 : i32
    %77 = tpu.dynamic_rotate %61 by %c1_i32_40 dim 1 : vector<8x128xf32>, i32 -> vector<8x128xf32>
    %c3_41 = arith.constant 3 : index
    %c0_42 = arith.constant 0 : index
    %c0_43 = arith.constant 0 : index
    %78 = vector.load %arg3[%c3_41, %c0_42, %c0_43] : memref<9x1x128xf32, #tpu.memory_space<vmem>>, vector<1x1x128xf32>
    %79 = vector.shape_cast %78 : vector<1x1x128xf32> to vector<1x128xf32>
    %80 = vector.broadcast %79 : vector<1x128xf32> to vector<8x128xf32>
    %81 = arith.mulf %77, %80 : vector<8x128xf32>
    %c4_44 = arith.constant 4 : index
    %c0_45 = arith.constant 0 : index
    %c0_46 = arith.constant 0 : index
    %82 = vector.load %arg3[%c4_44, %c0_45, %c0_46] : memref<9x1x128xf32, #tpu.memory_space<vmem>>, vector<1x1x128xf32>
    %83 = vector.shape_cast %82 : vector<1x1x128xf32> to vector<1x128xf32>
    %84 = vector.broadcast %83 : vector<1x128xf32> to vector<8x128xf32>
    %85 = arith.mulf %61, %84 : vector<8x128xf32>
    %c127_i32 = arith.constant 127 : i32
    %86 = tpu.dynamic_rotate %61 by %c127_i32 dim 1 : vector<8x128xf32>, i32 -> vector<8x128xf32>
    %c5_47 = arith.constant 5 : index
    %c0_48 = arith.constant 0 : index
    %c0_49 = arith.constant 0 : index
    %87 = vector.load %arg3[%c5_47, %c0_48, %c0_49] : memref<9x1x128xf32, #tpu.memory_space<vmem>>, vector<1x1x128xf32>
    %88 = vector.shape_cast %87 : vector<1x1x128xf32> to vector<1x128xf32>
    %89 = vector.broadcast %88 : vector<1x128xf32> to vector<8x128xf32>
    %90 = arith.mulf %86, %89 : vector<8x128xf32>
    %c121_i32 = arith.constant 121 : i32
    %91 = tpu.dynamic_rotate %61 by %c121_i32 dim 1 : vector<8x128xf32>, i32 -> vector<8x128xf32>
    %c6_50 = arith.constant 6 : index
    %c0_51 = arith.constant 0 : index
    %c0_52 = arith.constant 0 : index
    %92 = vector.load %arg3[%c6_50, %c0_51, %c0_52] : memref<9x1x128xf32, #tpu.memory_space<vmem>>, vector<1x1x128xf32>
    %93 = vector.shape_cast %92 : vector<1x1x128xf32> to vector<1x128xf32>
    %94 = vector.broadcast %93 : vector<1x128xf32> to vector<8x128xf32>
    %95 = arith.mulf %91, %94 : vector<8x128xf32>
    %c120_i32 = arith.constant 120 : i32
    %96 = tpu.dynamic_rotate %61 by %c120_i32 dim 1 : vector<8x128xf32>, i32 -> vector<8x128xf32>
    %c7_53 = arith.constant 7 : index
    %c0_54 = arith.constant 0 : index
    %c0_55 = arith.constant 0 : index
    %97 = vector.load %arg3[%c7_53, %c0_54, %c0_55] : memref<9x1x128xf32, #tpu.memory_space<vmem>>, vector<1x1x128xf32>
    %98 = vector.shape_cast %97 : vector<1x1x128xf32> to vector<1x128xf32>
    %99 = vector.broadcast %98 : vector<1x128xf32> to vector<8x128xf32>
    %100 = arith.mulf %96, %99 : vector<8x128xf32>
    %c119_i32 = arith.constant 119 : i32
    %101 = tpu.dynamic_rotate %61 by %c119_i32 dim 1 : vector<8x128xf32>, i32 -> vector<8x128xf32>
    %c8_56 = arith.constant 8 : index
    %c0_57 = arith.constant 0 : index
    %c0_58 = arith.constant 0 : index
    %102 = vector.load %arg3[%c8_56, %c0_57, %c0_58] : memref<9x1x128xf32, #tpu.memory_space<vmem>>, vector<1x1x128xf32>
    %103 = vector.shape_cast %102 : vector<1x1x128xf32> to vector<1x128xf32>
    %104 = vector.broadcast %103 : vector<1x128xf32> to vector<8x128xf32>
    %105 = arith.mulf %101, %104 : vector<8x128xf32>
    %106 = tpu.concatenate %66, %71, %76, %81, %85, %90, %95, %100, %105 in 0 : vector<8x128xf32>, vector<8x128xf32>, vector<8x128xf32>, vector<8x128xf32>, vector<8x128xf32>, vector<8x128xf32>, vector<8x128xf32>, vector<8x128xf32>, vector<8x128xf32> -> vector<72x128xf32>
    %107 = arith.truncf %106 : vector<72x128xf32> to vector<72x128xbf16>
    %c0_59 = arith.constant 0 : index
    %c0_60 = arith.constant 0 : index
    %108 = vector.load %arg8[%c0_59, %c0_60] : memref<16x72xbf16, #tpu.memory_space<vmem>>, vector<16x72xbf16>
    %cst_61 = arith.constant dense<0.000000e+00> : vector<16x128xf32>
    %109 = tpu.matmul %108, %107, %cst_61 {dimension_numbers = #tpu.dot_dimension_numbers<[1], [0], [0], [1], [0, 0, 1, 1], [], []>} : vector<16x72xbf16>, vector<72x128xbf16>, vector<16x128xf32> -> vector<16x128xf32>
    %c0_62 = arith.constant 0 : index
    %c0_63 = arith.constant 0 : index
    %110 = vector.load %arg9[%c0_62, %c0_63] : memref<16x1xf32, #tpu.memory_space<vmem>>, vector<16x1xf32>
    %111 = vector.broadcast %110 : vector<16x1xf32> to vector<16x128xf32>
    %112 = arith.addf %109, %111 : vector<16x128xf32>
    %cst_64 = arith.constant 0.000000e+00 : f32
    %113 = vector.broadcast %cst_64 : f32 to vector<16x128xf32>
    %114 = arith.maximumf %112, %113 : vector<16x128xf32>
    %115 = arith.truncf %114 : vector<16x128xf32> to vector<16x128xbf16>
    %c0_65 = arith.constant 0 : index
    %c0_66 = arith.constant 0 : index
    %116 = vector.load %arg5[%c0_65, %c0_66] : memref<128x512xbf16, #tpu.memory_space<vmem>>, vector<128x512xbf16>
    %cst_67 = arith.constant dense<0.000000e+00> : vector<16x512xf32>
    %117 = tpu.matmul %115, %116, %cst_67 {dimension_numbers = #tpu.dot_dimension_numbers<[1], [0], [0], [1], [0, 0, 1, 1], [], []>} : vector<16x128xbf16>, vector<128x512xbf16>, vector<16x512xf32> -> vector<16x512xf32>
    %118 = tpu.concatenate %117, %54 in 0 : vector<16x512xf32>, vector<8x512xf32> -> vector<24x512xf32>
    %c17_i32_68 = arith.constant 17 : i32
    %119 = tpu.dynamic_rotate %118 by %c17_i32_68 dim 1 : vector<24x512xf32>, i32 -> vector<24x512xf32>
    %c0_69 = arith.constant 0 : index
    %c0_70 = arith.constant 0 : index
    %c0_71 = arith.constant 0 : index
    %120 = vector.load %arg2[%c0_69, %c0_70, %c0_71] : memref<9x1x512xf32, #tpu.memory_space<vmem>>, vector<1x1x512xf32>
    %121 = vector.shape_cast %120 : vector<1x1x512xf32> to vector<1x512xf32>
    %122 = vector.broadcast %121 : vector<1x512xf32> to vector<24x512xf32>
    %123 = arith.mulf %119, %122 : vector<24x512xf32>
    %c16_i32_72 = arith.constant 16 : i32
    %124 = tpu.dynamic_rotate %118 by %c16_i32_72 dim 1 : vector<24x512xf32>, i32 -> vector<24x512xf32>
    %c1_73 = arith.constant 1 : index
    %c0_74 = arith.constant 0 : index
    %c0_75 = arith.constant 0 : index
    %125 = vector.load %arg2[%c1_73, %c0_74, %c0_75] : memref<9x1x512xf32, #tpu.memory_space<vmem>>, vector<1x1x512xf32>
    %126 = vector.shape_cast %125 : vector<1x1x512xf32> to vector<1x512xf32>
    %127 = vector.broadcast %126 : vector<1x512xf32> to vector<24x512xf32>
    %128 = arith.mulf %124, %127 : vector<24x512xf32>
    %c15_i32_76 = arith.constant 15 : i32
    %129 = tpu.dynamic_rotate %118 by %c15_i32_76 dim 1 : vector<24x512xf32>, i32 -> vector<24x512xf32>
    %c2_77 = arith.constant 2 : index
    %c0_78 = arith.constant 0 : index
    %c0_79 = arith.constant 0 : index
    %130 = vector.load %arg2[%c2_77, %c0_78, %c0_79] : memref<9x1x512xf32, #tpu.memory_space<vmem>>, vector<1x1x512xf32>
    %131 = vector.shape_cast %130 : vector<1x1x512xf32> to vector<1x512xf32>
    %132 = vector.broadcast %131 : vector<1x512xf32> to vector<24x512xf32>
    %133 = arith.mulf %129, %132 : vector<24x512xf32>
    %c1_i32_80 = arith.constant 1 : i32
    %134 = tpu.dynamic_rotate %118 by %c1_i32_80 dim 1 : vector<24x512xf32>, i32 -> vector<24x512xf32>
    %c3_81 = arith.constant 3 : index
    %c0_82 = arith.constant 0 : index
    %c0_83 = arith.constant 0 : index
    %135 = vector.load %arg2[%c3_81, %c0_82, %c0_83] : memref<9x1x512xf32, #tpu.memory_space<vmem>>, vector<1x1x512xf32>
    %136 = vector.shape_cast %135 : vector<1x1x512xf32> to vector<1x512xf32>
    %137 = vector.broadcast %136 : vector<1x512xf32> to vector<24x512xf32>
    %138 = arith.mulf %134, %137 : vector<24x512xf32>
    %c4_84 = arith.constant 4 : index
    %c0_85 = arith.constant 0 : index
    %c0_86 = arith.constant 0 : index
    %139 = vector.load %arg2[%c4_84, %c0_85, %c0_86] : memref<9x1x512xf32, #tpu.memory_space<vmem>>, vector<1x1x512xf32>
    %140 = vector.shape_cast %139 : vector<1x1x512xf32> to vector<1x512xf32>
    %141 = vector.broadcast %140 : vector<1x512xf32> to vector<24x512xf32>
    %142 = arith.mulf %118, %141 : vector<24x512xf32>
    %c511_i32_87 = arith.constant 511 : i32
    %143 = tpu.dynamic_rotate %118 by %c511_i32_87 dim 1 : vector<24x512xf32>, i32 -> vector<24x512xf32>
    %c5_88 = arith.constant 5 : index
    %c0_89 = arith.constant 0 : index
    %c0_90 = arith.constant 0 : index
    %144 = vector.load %arg2[%c5_88, %c0_89, %c0_90] : memref<9x1x512xf32, #tpu.memory_space<vmem>>, vector<1x1x512xf32>
    %145 = vector.shape_cast %144 : vector<1x1x512xf32> to vector<1x512xf32>
    %146 = vector.broadcast %145 : vector<1x512xf32> to vector<24x512xf32>
    %147 = arith.mulf %143, %146 : vector<24x512xf32>
    %c497_i32_91 = arith.constant 497 : i32
    %148 = tpu.dynamic_rotate %118 by %c497_i32_91 dim 1 : vector<24x512xf32>, i32 -> vector<24x512xf32>
    %c6_92 = arith.constant 6 : index
    %c0_93 = arith.constant 0 : index
    %c0_94 = arith.constant 0 : index
    %149 = vector.load %arg2[%c6_92, %c0_93, %c0_94] : memref<9x1x512xf32, #tpu.memory_space<vmem>>, vector<1x1x512xf32>
    %150 = vector.shape_cast %149 : vector<1x1x512xf32> to vector<1x512xf32>
    %151 = vector.broadcast %150 : vector<1x512xf32> to vector<24x512xf32>
    %152 = arith.mulf %148, %151 : vector<24x512xf32>
    %c496_i32_95 = arith.constant 496 : i32
    %153 = tpu.dynamic_rotate %118 by %c496_i32_95 dim 1 : vector<24x512xf32>, i32 -> vector<24x512xf32>
    %c7_96 = arith.constant 7 : index
    %c0_97 = arith.constant 0 : index
    %c0_98 = arith.constant 0 : index
    %154 = vector.load %arg2[%c7_96, %c0_97, %c0_98] : memref<9x1x512xf32, #tpu.memory_space<vmem>>, vector<1x1x512xf32>
    %155 = vector.shape_cast %154 : vector<1x1x512xf32> to vector<1x512xf32>
    %156 = vector.broadcast %155 : vector<1x512xf32> to vector<24x512xf32>
    %157 = arith.mulf %153, %156 : vector<24x512xf32>
    %c495_i32_99 = arith.constant 495 : i32
    %158 = tpu.dynamic_rotate %118 by %c495_i32_99 dim 1 : vector<24x512xf32>, i32 -> vector<24x512xf32>
    %c8_100 = arith.constant 8 : index
    %c0_101 = arith.constant 0 : index
    %c0_102 = arith.constant 0 : index
    %159 = vector.load %arg2[%c8_100, %c0_101, %c0_102] : memref<9x1x512xf32, #tpu.memory_space<vmem>>, vector<1x1x512xf32>
    %160 = vector.shape_cast %159 : vector<1x1x512xf32> to vector<1x512xf32>
    %161 = vector.broadcast %160 : vector<1x512xf32> to vector<24x512xf32>
    %162 = arith.mulf %158, %161 : vector<24x512xf32>
    %163 = tpu.concatenate %123, %128, %133, %138, %142, %147, %152, %157, %162 in 0 : vector<24x512xf32>, vector<24x512xf32>, vector<24x512xf32>, vector<24x512xf32>, vector<24x512xf32>, vector<24x512xf32>, vector<24x512xf32>, vector<24x512xf32>, vector<24x512xf32> -> vector<216x512xf32>
    %164 = arith.truncf %163 : vector<216x512xf32> to vector<216x512xbf16>
    %c0_103 = arith.constant 0 : index
    %c0_104 = arith.constant 0 : index
    %165 = vector.load %arg10[%c0_103, %c0_104] : memref<16x216xbf16, #tpu.memory_space<vmem>>, vector<16x216xbf16>
    %cst_105 = arith.constant dense<0.000000e+00> : vector<16x512xf32>
    %166 = tpu.matmul %165, %164, %cst_105 {dimension_numbers = #tpu.dot_dimension_numbers<[1], [0], [0], [1], [0, 0, 1, 1], [], []>} : vector<16x216xbf16>, vector<216x512xbf16>, vector<16x512xf32> -> vector<16x512xf32>
    %c0_106 = arith.constant 0 : index
    %c0_107 = arith.constant 0 : index
    %167 = vector.load %arg11[%c0_106, %c0_107] : memref<16x1xf32, #tpu.memory_space<vmem>>, vector<16x1xf32>
    %168 = vector.broadcast %167 : vector<16x1xf32> to vector<16x512xf32>
    %169 = arith.addf %166, %168 : vector<16x512xf32>
    %cst_108 = arith.constant 0.000000e+00 : f32
    %170 = vector.broadcast %cst_108 : f32 to vector<16x512xf32>
    %171 = arith.maximumf %169, %170 : vector<16x512xf32>
    %c17_i32_109 = arith.constant 17 : i32
    %172 = tpu.dynamic_rotate %171 by %c17_i32_109 dim 1 : vector<16x512xf32>, i32 -> vector<16x512xf32>
    %c0_110 = arith.constant 0 : index
    %c0_111 = arith.constant 0 : index
    %c0_112 = arith.constant 0 : index
    %173 = vector.load %arg2[%c0_110, %c0_111, %c0_112] : memref<9x1x512xf32, #tpu.memory_space<vmem>>, vector<1x1x512xf32>
    %174 = vector.shape_cast %173 : vector<1x1x512xf32> to vector<1x512xf32>
    %175 = vector.broadcast %174 : vector<1x512xf32> to vector<16x512xf32>
    %176 = arith.mulf %172, %175 : vector<16x512xf32>
    %c16_i32_113 = arith.constant 16 : i32
    %177 = tpu.dynamic_rotate %171 by %c16_i32_113 dim 1 : vector<16x512xf32>, i32 -> vector<16x512xf32>
    %c1_114 = arith.constant 1 : index
    %c0_115 = arith.constant 0 : index
    %c0_116 = arith.constant 0 : index
    %178 = vector.load %arg2[%c1_114, %c0_115, %c0_116] : memref<9x1x512xf32, #tpu.memory_space<vmem>>, vector<1x1x512xf32>
    %179 = vector.shape_cast %178 : vector<1x1x512xf32> to vector<1x512xf32>
    %180 = vector.broadcast %179 : vector<1x512xf32> to vector<16x512xf32>
    %181 = arith.mulf %177, %180 : vector<16x512xf32>
    %c15_i32_117 = arith.constant 15 : i32
    %182 = tpu.dynamic_rotate %171 by %c15_i32_117 dim 1 : vector<16x512xf32>, i32 -> vector<16x512xf32>
    %c2_118 = arith.constant 2 : index
    %c0_119 = arith.constant 0 : index
    %c0_120 = arith.constant 0 : index
    %183 = vector.load %arg2[%c2_118, %c0_119, %c0_120] : memref<9x1x512xf32, #tpu.memory_space<vmem>>, vector<1x1x512xf32>
    %184 = vector.shape_cast %183 : vector<1x1x512xf32> to vector<1x512xf32>
    %185 = vector.broadcast %184 : vector<1x512xf32> to vector<16x512xf32>
    %186 = arith.mulf %182, %185 : vector<16x512xf32>
    %c1_i32_121 = arith.constant 1 : i32
    %187 = tpu.dynamic_rotate %171 by %c1_i32_121 dim 1 : vector<16x512xf32>, i32 -> vector<16x512xf32>
    %c3_122 = arith.constant 3 : index
    %c0_123 = arith.constant 0 : index
    %c0_124 = arith.constant 0 : index
    %188 = vector.load %arg2[%c3_122, %c0_123, %c0_124] : memref<9x1x512xf32, #tpu.memory_space<vmem>>, vector<1x1x512xf32>
    %189 = vector.shape_cast %188 : vector<1x1x512xf32> to vector<1x512xf32>
    %190 = vector.broadcast %189 : vector<1x512xf32> to vector<16x512xf32>
    %191 = arith.mulf %187, %190 : vector<16x512xf32>
    %c4_125 = arith.constant 4 : index
    %c0_126 = arith.constant 0 : index
    %c0_127 = arith.constant 0 : index
    %192 = vector.load %arg2[%c4_125, %c0_126, %c0_127] : memref<9x1x512xf32, #tpu.memory_space<vmem>>, vector<1x1x512xf32>
    %193 = vector.shape_cast %192 : vector<1x1x512xf32> to vector<1x512xf32>
    %194 = vector.broadcast %193 : vector<1x512xf32> to vector<16x512xf32>
    %195 = arith.mulf %171, %194 : vector<16x512xf32>
    %c511_i32_128 = arith.constant 511 : i32
    %196 = tpu.dynamic_rotate %171 by %c511_i32_128 dim 1 : vector<16x512xf32>, i32 -> vector<16x512xf32>
    %c5_129 = arith.constant 5 : index
    %c0_130 = arith.constant 0 : index
    %c0_131 = arith.constant 0 : index
    %197 = vector.load %arg2[%c5_129, %c0_130, %c0_131] : memref<9x1x512xf32, #tpu.memory_space<vmem>>, vector<1x1x512xf32>
    %198 = vector.shape_cast %197 : vector<1x1x512xf32> to vector<1x512xf32>
    %199 = vector.broadcast %198 : vector<1x512xf32> to vector<16x512xf32>
    %200 = arith.mulf %196, %199 : vector<16x512xf32>
    %c497_i32_132 = arith.constant 497 : i32
    %201 = tpu.dynamic_rotate %171 by %c497_i32_132 dim 1 : vector<16x512xf32>, i32 -> vector<16x512xf32>
    %c6_133 = arith.constant 6 : index
    %c0_134 = arith.constant 0 : index
    %c0_135 = arith.constant 0 : index
    %202 = vector.load %arg2[%c6_133, %c0_134, %c0_135] : memref<9x1x512xf32, #tpu.memory_space<vmem>>, vector<1x1x512xf32>
    %203 = vector.shape_cast %202 : vector<1x1x512xf32> to vector<1x512xf32>
    %204 = vector.broadcast %203 : vector<1x512xf32> to vector<16x512xf32>
    %205 = arith.mulf %201, %204 : vector<16x512xf32>
    %c496_i32_136 = arith.constant 496 : i32
    %206 = tpu.dynamic_rotate %171 by %c496_i32_136 dim 1 : vector<16x512xf32>, i32 -> vector<16x512xf32>
    %c7_137 = arith.constant 7 : index
    %c0_138 = arith.constant 0 : index
    %c0_139 = arith.constant 0 : index
    %207 = vector.load %arg2[%c7_137, %c0_138, %c0_139] : memref<9x1x512xf32, #tpu.memory_space<vmem>>, vector<1x1x512xf32>
    %208 = vector.shape_cast %207 : vector<1x1x512xf32> to vector<1x512xf32>
    %209 = vector.broadcast %208 : vector<1x512xf32> to vector<16x512xf32>
    %210 = arith.mulf %206, %209 : vector<16x512xf32>
    %c495_i32_140 = arith.constant 495 : i32
    %211 = tpu.dynamic_rotate %171 by %c495_i32_140 dim 1 : vector<16x512xf32>, i32 -> vector<16x512xf32>
    %c8_141 = arith.constant 8 : index
    %c0_142 = arith.constant 0 : index
    %c0_143 = arith.constant 0 : index
    %212 = vector.load %arg2[%c8_141, %c0_142, %c0_143] : memref<9x1x512xf32, #tpu.memory_space<vmem>>, vector<1x1x512xf32>
    %213 = vector.shape_cast %212 : vector<1x1x512xf32> to vector<1x512xf32>
    %214 = vector.broadcast %213 : vector<1x512xf32> to vector<16x512xf32>
    %215 = arith.mulf %211, %214 : vector<16x512xf32>
    %216 = tpu.concatenate %176, %181, %186, %191, %195, %200, %205, %210, %215 in 0 : vector<16x512xf32>, vector<16x512xf32>, vector<16x512xf32>, vector<16x512xf32>, vector<16x512xf32>, vector<16x512xf32>, vector<16x512xf32>, vector<16x512xf32>, vector<16x512xf32> -> vector<144x512xf32>
    %217 = arith.truncf %216 : vector<144x512xf32> to vector<144x512xbf16>
    %c0_144 = arith.constant 0 : index
    %c0_145 = arith.constant 0 : index
    %218 = vector.load %arg12[%c0_144, %c0_145] : memref<18x144xbf16, #tpu.memory_space<vmem>>, vector<18x144xbf16>
    %cst_146 = arith.constant dense<0.000000e+00> : vector<18x512xf32>
    %219 = tpu.matmul %218, %217, %cst_146 {dimension_numbers = #tpu.dot_dimension_numbers<[1], [0], [0], [1], [0, 0, 1, 1], [], []>} : vector<18x144xbf16>, vector<144x512xbf16>, vector<18x512xf32> -> vector<18x512xf32>
    %c0_147 = arith.constant 0 : index
    %c0_148 = arith.constant 0 : index
    %220 = vector.load %arg13[%c0_147, %c0_148] : memref<18x1xf32, #tpu.memory_space<vmem>>, vector<18x1xf32>
    %221 = vector.broadcast %220 : vector<18x1xf32> to vector<18x512xf32>
    %222 = arith.addf %219, %221 : vector<18x512xf32>
    %223 = vector.extract_strided_slice %222 {offsets = [0, 0], sizes = [16, 512], strides = [1, 1]} : vector<18x512xf32> to vector<16x512xf32>
    %cst_149 = arith.constant 0.000000e+00 : f32
    %224 = vector.broadcast %cst_149 : f32 to vector<16x512xf32>
    %225 = arith.maximumf %223, %224 : vector<16x512xf32>
    %c17_i32_150 = arith.constant 17 : i32
    %226 = tpu.dynamic_rotate %225 by %c17_i32_150 dim 1 : vector<16x512xf32>, i32 -> vector<16x512xf32>
    %c0_151 = arith.constant 0 : index
    %c0_152 = arith.constant 0 : index
    %c0_153 = arith.constant 0 : index
    %227 = vector.load %arg2[%c0_151, %c0_152, %c0_153] : memref<9x1x512xf32, #tpu.memory_space<vmem>>, vector<1x1x512xf32>
    %228 = vector.shape_cast %227 : vector<1x1x512xf32> to vector<1x512xf32>
    %229 = vector.broadcast %228 : vector<1x512xf32> to vector<16x512xf32>
    %230 = arith.mulf %226, %229 : vector<16x512xf32>
    %c16_i32_154 = arith.constant 16 : i32
    %231 = tpu.dynamic_rotate %225 by %c16_i32_154 dim 1 : vector<16x512xf32>, i32 -> vector<16x512xf32>
    %c1_155 = arith.constant 1 : index
    %c0_156 = arith.constant 0 : index
    %c0_157 = arith.constant 0 : index
    %232 = vector.load %arg2[%c1_155, %c0_156, %c0_157] : memref<9x1x512xf32, #tpu.memory_space<vmem>>, vector<1x1x512xf32>
    %233 = vector.shape_cast %232 : vector<1x1x512xf32> to vector<1x512xf32>
    %234 = vector.broadcast %233 : vector<1x512xf32> to vector<16x512xf32>
    %235 = arith.mulf %231, %234 : vector<16x512xf32>
    %c15_i32_158 = arith.constant 15 : i32
    %236 = tpu.dynamic_rotate %225 by %c15_i32_158 dim 1 : vector<16x512xf32>, i32 -> vector<16x512xf32>
    %c2_159 = arith.constant 2 : index
    %c0_160 = arith.constant 0 : index
    %c0_161 = arith.constant 0 : index
    %237 = vector.load %arg2[%c2_159, %c0_160, %c0_161] : memref<9x1x512xf32, #tpu.memory_space<vmem>>, vector<1x1x512xf32>
    %238 = vector.shape_cast %237 : vector<1x1x512xf32> to vector<1x512xf32>
    %239 = vector.broadcast %238 : vector<1x512xf32> to vector<16x512xf32>
    %240 = arith.mulf %236, %239 : vector<16x512xf32>
    %c1_i32_162 = arith.constant 1 : i32
    %241 = tpu.dynamic_rotate %225 by %c1_i32_162 dim 1 : vector<16x512xf32>, i32 -> vector<16x512xf32>
    %c3_163 = arith.constant 3 : index
    %c0_164 = arith.constant 0 : index
    %c0_165 = arith.constant 0 : index
    %242 = vector.load %arg2[%c3_163, %c0_164, %c0_165] : memref<9x1x512xf32, #tpu.memory_space<vmem>>, vector<1x1x512xf32>
    %243 = vector.shape_cast %242 : vector<1x1x512xf32> to vector<1x512xf32>
    %244 = vector.broadcast %243 : vector<1x512xf32> to vector<16x512xf32>
    %245 = arith.mulf %241, %244 : vector<16x512xf32>
    %c4_166 = arith.constant 4 : index
    %c0_167 = arith.constant 0 : index
    %c0_168 = arith.constant 0 : index
    %246 = vector.load %arg2[%c4_166, %c0_167, %c0_168] : memref<9x1x512xf32, #tpu.memory_space<vmem>>, vector<1x1x512xf32>
    %247 = vector.shape_cast %246 : vector<1x1x512xf32> to vector<1x512xf32>
    %248 = vector.broadcast %247 : vector<1x512xf32> to vector<16x512xf32>
    %249 = arith.mulf %225, %248 : vector<16x512xf32>
    %c511_i32_169 = arith.constant 511 : i32
    %250 = tpu.dynamic_rotate %225 by %c511_i32_169 dim 1 : vector<16x512xf32>, i32 -> vector<16x512xf32>
    %c5_170 = arith.constant 5 : index
    %c0_171 = arith.constant 0 : index
    %c0_172 = arith.constant 0 : index
    %251 = vector.load %arg2[%c5_170, %c0_171, %c0_172] : memref<9x1x512xf32, #tpu.memory_space<vmem>>, vector<1x1x512xf32>
    %252 = vector.shape_cast %251 : vector<1x1x512xf32> to vector<1x512xf32>
    %253 = vector.broadcast %252 : vector<1x512xf32> to vector<16x512xf32>
    %254 = arith.mulf %250, %253 : vector<16x512xf32>
    %c497_i32_173 = arith.constant 497 : i32
    %255 = tpu.dynamic_rotate %225 by %c497_i32_173 dim 1 : vector<16x512xf32>, i32 -> vector<16x512xf32>
    %c6_174 = arith.constant 6 : index
    %c0_175 = arith.constant 0 : index
    %c0_176 = arith.constant 0 : index
    %256 = vector.load %arg2[%c6_174, %c0_175, %c0_176] : memref<9x1x512xf32, #tpu.memory_space<vmem>>, vector<1x1x512xf32>
    %257 = vector.shape_cast %256 : vector<1x1x512xf32> to vector<1x512xf32>
    %258 = vector.broadcast %257 : vector<1x512xf32> to vector<16x512xf32>
    %259 = arith.mulf %255, %258 : vector<16x512xf32>
    %c496_i32_177 = arith.constant 496 : i32
    %260 = tpu.dynamic_rotate %225 by %c496_i32_177 dim 1 : vector<16x512xf32>, i32 -> vector<16x512xf32>
    %c7_178 = arith.constant 7 : index
    %c0_179 = arith.constant 0 : index
    %c0_180 = arith.constant 0 : index
    %261 = vector.load %arg2[%c7_178, %c0_179, %c0_180] : memref<9x1x512xf32, #tpu.memory_space<vmem>>, vector<1x1x512xf32>
    %262 = vector.shape_cast %261 : vector<1x1x512xf32> to vector<1x512xf32>
    %263 = vector.broadcast %262 : vector<1x512xf32> to vector<16x512xf32>
    %264 = arith.mulf %260, %263 : vector<16x512xf32>
    %c495_i32_181 = arith.constant 495 : i32
    %265 = tpu.dynamic_rotate %225 by %c495_i32_181 dim 1 : vector<16x512xf32>, i32 -> vector<16x512xf32>
    %c8_182 = arith.constant 8 : index
    %c0_183 = arith.constant 0 : index
    %c0_184 = arith.constant 0 : index
    %266 = vector.load %arg2[%c8_182, %c0_183, %c0_184] : memref<9x1x512xf32, #tpu.memory_space<vmem>>, vector<1x1x512xf32>
    %267 = vector.shape_cast %266 : vector<1x1x512xf32> to vector<1x512xf32>
    %268 = vector.broadcast %267 : vector<1x512xf32> to vector<16x512xf32>
    %269 = arith.mulf %265, %268 : vector<16x512xf32>
    %270 = tpu.concatenate %230, %235, %240, %245, %249, %254, %259, %264, %269 in 0 : vector<16x512xf32>, vector<16x512xf32>, vector<16x512xf32>, vector<16x512xf32>, vector<16x512xf32>, vector<16x512xf32>, vector<16x512xf32>, vector<16x512xf32>, vector<16x512xf32> -> vector<144x512xf32>
    %271 = arith.truncf %270 : vector<144x512xf32> to vector<144x512xbf16>
    %c0_185 = arith.constant 0 : index
    %c0_186 = arith.constant 0 : index
    %272 = vector.load %arg14[%c0_185, %c0_186] : memref<18x144xbf16, #tpu.memory_space<vmem>>, vector<18x144xbf16>
    %cst_187 = arith.constant dense<0.000000e+00> : vector<18x512xf32>
    %273 = tpu.matmul %272, %271, %cst_187 {dimension_numbers = #tpu.dot_dimension_numbers<[1], [0], [0], [1], [0, 0, 1, 1], [], []>} : vector<18x144xbf16>, vector<144x512xbf16>, vector<18x512xf32> -> vector<18x512xf32>
    %c0_188 = arith.constant 0 : index
    %c0_189 = arith.constant 0 : index
    %274 = vector.load %arg15[%c0_188, %c0_189] : memref<18x1xf32, #tpu.memory_space<vmem>>, vector<18x1xf32>
    %275 = vector.broadcast %274 : vector<18x1xf32> to vector<18x512xf32>
    %276 = arith.addf %273, %275 : vector<18x512xf32>
    %277 = vector.extract_strided_slice %222 {offsets = [16, 0], sizes = [2, 512], strides = [1, 1]} : vector<18x512xf32> to vector<2x512xf32>
    %c0_190 = arith.constant 0 : index
    %c0_191 = arith.constant 0 : index
    %c0_192 = arith.constant 0 : index
    %278 = vector.load %arg16[%c0_190, %c0_191, %c0_192] : memref<1x20x512xf32, #tpu.memory_space<vmem>>, vector<1x2x512xf32>
    %279 = vector.shape_cast %278 : vector<1x2x512xf32> to vector<2x512xf32>
    %280 = vector.shape_cast %277 : vector<2x512xf32> to vector<1x2x512xf32>
    tpu.vector_store %arg16[%c0_190, %c0_191, %c0_192], %280 {strides = array<i32>} : memref<1x20x512xf32, #tpu.memory_space<vmem>>, vector<1x2x512xf32>,
    %c0_193 = arith.constant 0 : index
    %c2_194 = arith.constant 2 : index
    %c0_195 = arith.constant 0 : index
    %281 = vector.load %arg16[%c0_193, %c2_194, %c0_195] : memref<1x20x512xf32, #tpu.memory_space<vmem>>, vector<1x18x512xf32>
    %282 = vector.shape_cast %281 : vector<1x18x512xf32> to vector<18x512xf32>
    %283 = vector.shape_cast %276 : vector<18x512xf32> to vector<1x18x512xf32>
    tpu.vector_store %arg16[%c0_193, %c2_194, %c0_195], %283 {strides = array<i32>} : memref<1x20x512xf32, #tpu.memory_space<vmem>>, vector<1x18x512xf32>,
    return
  }
  func.func @transform_0(%arg0: i32) -> (i32, i32, i32) {
    %c0_i32 = arith.constant 0 : i32
    %c0_i32_0 = arith.constant 0 : i32
    %c0_i32_1 = arith.constant 0 : i32
    return %arg0, %c0_i32, %c0_i32_0 : i32, i32, i32
  }
  func.func @transform_1(%arg0: i32) -> (i32, i32, i32) {
    %c0_i32 = arith.constant 0 : i32
    %c0_i32_0 = arith.constant 0 : i32
    %c0_i32_1 = arith.constant 0 : i32
    %c0_i32_2 = arith.constant 0 : i32
    return %c0_i32, %c0_i32_0, %c0_i32_1 : i32, i32, i32
  }
  func.func @transform_2(%arg0: i32) -> (i32, i32, i32) {
    %c0_i32 = arith.constant 0 : i32
    %c0_i32_0 = arith.constant 0 : i32
    %c0_i32_1 = arith.constant 0 : i32
    %c0_i32_2 = arith.constant 0 : i32
    return %c0_i32, %c0_i32_0, %c0_i32_1 : i32, i32, i32
  }
  func.func @transform_3(%arg0: i32) -> (i32, i32) {
    %c0_i32 = arith.constant 0 : i32
    %c0_i32_0 = arith.constant 0 : i32
    %c0_i32_1 = arith.constant 0 : i32
    return %c0_i32, %c0_i32_0 : i32, i32
  }
  func.func @transform_4(%arg0: i32) -> (i32, i32) {
    %c0_i32 = arith.constant 0 : i32
    %c0_i32_0 = arith.constant 0 : i32
    %c0_i32_1 = arith.constant 0 : i32
    return %c0_i32, %c0_i32_0 : i32, i32
  }
  func.func @transform_5(%arg0: i32) -> (i32, i32) {
    %c0_i32 = arith.constant 0 : i32
    %c0_i32_0 = arith.constant 0 : i32
    %c0_i32_1 = arith.constant 0 : i32
    return %c0_i32, %c0_i32_0 : i32, i32
  }
  func.func @transform_6(%arg0: i32) -> (i32, i32) {
    %c0_i32 = arith.constant 0 : i32
    %c0_i32_0 = arith.constant 0 : i32
    %c0_i32_1 = arith.constant 0 : i32
    return %c0_i32, %c0_i32_0 : i32, i32
  }
  func.func @transform_7(%arg0: i32) -> (i32, i32) {
    %c0_i32 = arith.constant 0 : i32
    %c0_i32_0 = arith.constant 0 : i32
    %c0_i32_1 = arith.constant 0 : i32
    return %c0_i32, %c0_i32_0 : i32, i32
  }
  func.func @transform_8(%arg0: i32) -> (i32, i32) {
    %c0_i32 = arith.constant 0 : i32
    %c0_i32_0 = arith.constant 0 : i32
    %c0_i32_1 = arith.constant 0 : i32
    return %c0_i32, %c0_i32_0 : i32, i32
  }
  func.func @transform_9(%arg0: i32) -> (i32, i32) {
    %c0_i32 = arith.constant 0 : i32
    %c0_i32_0 = arith.constant 0 : i32
    %c0_i32_1 = arith.constant 0 : i32
    return %c0_i32, %c0_i32_0 : i32, i32
  }
  func.func @transform_10(%arg0: i32) -> (i32, i32) {
    %c0_i32 = arith.constant 0 : i32
    %c0_i32_0 = arith.constant 0 : i32
    %c0_i32_1 = arith.constant 0 : i32
    return %c0_i32, %c0_i32_0 : i32, i32
  }
  func.func @transform_11(%arg0: i32) -> (i32, i32) {
    %c0_i32 = arith.constant 0 : i32
    %c0_i32_0 = arith.constant 0 : i32
    %c0_i32_1 = arith.constant 0 : i32
    return %c0_i32, %c0_i32_0 : i32, i32
  }
  func.func @transform_12(%arg0: i32) -> (i32, i32) {
    %c0_i32 = arith.constant 0 : i32
    %c0_i32_0 = arith.constant 0 : i32
    %c0_i32_1 = arith.constant 0 : i32
    return %c0_i32, %c0_i32_0 : i32, i32
  }
  func.func @transform_13(%arg0: i32) -> (i32, i32) {
    %c0_i32 = arith.constant 0 : i32
    %c0_i32_0 = arith.constant 0 : i32
    %c0_i32_1 = arith.constant 0 : i32
    return %c0_i32, %c0_i32_0 : i32, i32
  }
  func.func @transform_14(%arg0: i32) -> (i32, i32) {
    %c0_i32 = arith.constant 0 : i32
    %c0_i32_0 = arith.constant 0 : i32
    %c0_i32_1 = arith.constant 0 : i32
    return %c0_i32, %c0_i32_0 : i32, i32
  }
  func.func @transform_15(%arg0: i32) -> (i32, i32, i32) {
    %c0_i32 = arith.constant 0 : i32
    %c0_i32_0 = arith.constant 0 : i32
    %c0_i32_1 = arith.constant 0 : i32
    return %arg0, %c0_i32, %c0_i32_0 : i32, i32, i32
  }
}

</mosaic_0001>

<llo_original>
// kernel: retina_unnet_forward.1
$region0: #{retina_unnet_forward.1}
  #allocation0 [shape = 'u32[]', space=smem, size = 0x4, offset = 0x4, fixed_abs, tag = 'smem constant byte address 0x4 - core index']
  #allocation1 [shape = 'u32[144,128]{1,0:T(1,128)}', space=vmem, size = 0x12000, scoped, tag = 'internal scratch']
  %s0 = inlined_call_operand.vmem [shape: f32[1,4,512], index: 0, kind: input, shape index: {}]
  %s1 = inlined_call_operand.vmem [shape: f32[9,1,512], index: 1, kind: input, shape index: {}]
  %s2 = inlined_call_operand.vmem [shape: f32[9,1,128], index: 2, kind: input, shape index: {}]
  %s3 = inlined_call_operand.hbm [shape: bf16[512,128], index: 3, kind: input, shape index: {}]
  %s4 = inlined_call_operand.hbm [shape: bf16[128,512], index: 4, kind: input, shape index: {}]
  %s5 = inlined_call_operand.vmem [shape: bf16[8,36], index: 5, kind: input, shape index: {}]
  %s6 = inlined_call_operand.vmem [shape: f32[8,1], index: 6, kind: input, shape index: {}]
  %s7 = inlined_call_operand.vmem [shape: bf16[16,72], index: 7, kind: input, shape index: {}]
  %s8 = inlined_call_operand.vmem [shape: f32[16,1], index: 8, kind: input, shape index: {}]
  %s9 = inlined_call_operand.vmem [shape: bf16[16,216], index: 9, kind: input, shape index: {}]
  %s10 = inlined_call_operand.vmem [shape: f32[16,1], index: 10, kind: input, shape index: {}]
  %s11 = inlined_call_operand.vmem [shape: bf16[18,144], index: 11, kind: input, shape index: {}]
  %s12 = inlined_call_operand.vmem [shape: f32[18,1], index: 12, kind: input, shape index: {}]
  %s13 = inlined_call_operand.vmem [shape: bf16[18,144], index: 13, kind: input, shape index: {}]
  %s14 = inlined_call_operand.vmem [shape: f32[18,1], index: 14, kind: input, shape index: {}]
  %s15 = inlined_call_operand.vmem [shape: f32[1,20,512], index: 15, kind: output, shape index: {}]
  %s16 = sld [smem:[#allocation0]]
  $region78: #{retina_unnet_forward.1} parent=0
    _
  %s18 = ssub.s32 1, %s16
  %s19 = scalar_select 0, %s18, %s16
  $region1: #{retina_unnet_forward.1} parent=0
    #allocation2 [shape = 'u8[131072]{0}', space=vmem, size = 0x20000, scoped, tag = 'input window, operand 3, single buffered']
    #allocation3 [shape = 's32[1]{0}', space=sflag, size = 0x4, scoped, tag = 'scoped memory for retina_unnet_forward.1']
    #allocation4 [shape = 'u8[131072]{0}', space=vmem, size = 0x20000, scoped, tag = 'input window, operand 4, single buffered']
    #allocation5 [shape = 's32[1]{0}', space=sflag, size = 0x4, scoped, tag = 'scoped memory for retina_unnet_forward.1']
    %20 = vsyncpa [#allocation3], 0
    %21 = vsyncpa [#allocation5], 0
    // Predicated region
    $region2: #{retina_unnet_forward.1} parent=1 // pred_check
      _
    $region3: #{retina_unnet_forward.1} parent=1 // pred_check_branch
      %23 = sbr.rel (0) target = $region5
    $region4: #{retina_unnet_forward.1} parent=1 // pred_region
      _
    $region5: #{retina_unnet_forward.1} parent=1 // pred_fallthru
      _
    // Predicated region
    $region6: #{retina_unnet_forward.1} parent=1 // pred_check
      _
    $region7: #{retina_unnet_forward.1} parent=1 // pred_check_branch
      %25 = sbr.rel (0) target = $region9
    $region8: #{retina_unnet_forward.1} parent=1 // pred_region
      _
    $region9: #{retina_unnet_forward.1} parent=1 // pred_fallthru
      _
    // Predicated region
    $region10: #{retina_unnet_forward.1} parent=1 // pred_check
      _
    $region11: #{retina_unnet_forward.1} parent=1 // pred_check_branch
      %27 = sbr.rel (0) target = $region13
    $region12: #{retina_unnet_forward.1} parent=1 // pred_region
      _
    $region13: #{retina_unnet_forward.1} parent=1 // pred_fallthru
      _
    // Predicated region
    $region14: #{retina_unnet_forward.1} parent=1 // pred_check
      _
    $region15: #{retina_unnet_forward.1} parent=1 // pred_check_branch
      %29 = sbr.rel (0) target = $region17
    $region16: #{retina_unnet_forward.1} parent=1 // pred_region
      %s31 = ssub.s32 4096, 4096
      %32 = vsyncadd [#allocation3], %s31
      %s33 = sshll.u32 [#allocation2], 4
      %s34 = int_to_ptr.vmem [resolvable:$true] %s33
      %39 = dma.hbm_to_vmem [thread:$0]  %s3, 4096, %s34, [#allocation3], 64, 64, 4
    $region17: #{retina_unnet_forward.1} parent=1 // pred_fallthru
      _
    // Predicated region
    $region18: #{retina_unnet_forward.1} parent=1 // pred_check
      _
    $region19: #{retina_unnet_forward.1} parent=1 // pred_check_branch
      %41 = sbr.rel (0) target = $region21
    $region20: #{retina_unnet_forward.1} parent=1 // pred_region
      %s43 = ssub.s32 4096, 4096
      %44 = vsyncadd [#allocation5], %s43
      %s45 = sshll.u32 [#allocation4], 4
      %s46 = int_to_ptr.vmem [resolvable:$true] %s45
      %51 = dma.hbm_to_vmem [thread:$0]  %s4, 4096, %s46, [#allocation5], 256, 256, 16
    $region21: #{retina_unnet_forward.1} parent=1 // pred_fallthru
      _
    // Predicated region
    $region22: #{retina_unnet_forward.1} parent=1 // pred_check
      _
    $region23: #{retina_unnet_forward.1} parent=1 // pred_check_branch
      %53 = sbr.rel (0) target = $region25
    $region24: #{retina_unnet_forward.1} parent=1 // pred_region
      _
    $region25: #{retina_unnet_forward.1} parent=1 // pred_fallthru
      _
    // Predicated region
    $region26: #{retina_unnet_forward.1} parent=1 // pred_check
      _
    $region27: #{retina_unnet_forward.1} parent=1 // pred_check_branch
      %55 = sbr.rel (0) target = $region29
    $region28: #{retina_unnet_forward.1} parent=1 // pred_region
      _
    $region29: #{retina_unnet_forward.1} parent=1 // pred_fallthru
      _
    // Predicated region
    $region30: #{retina_unnet_forward.1} parent=1 // pred_check
      _
    $region31: #{retina_unnet_forward.1} parent=1 // pred_check_branch
      %57 = sbr.rel (0) target = $region33
    $region32: #{retina_unnet_forward.1} parent=1 // pred_region
      _
    $region33: #{retina_unnet_forward.1} parent=1 // pred_fallthru
      _
    // Predicated region
    $region34: #{retina_unnet_forward.1} parent=1 // pred_check
      _
    $region35: #{retina_unnet_forward.1} parent=1 // pred_check_branch
      %59 = sbr.rel (0) target = $region37
    $region36: #{retina_unnet_forward.1} parent=1 // pred_region
      _
    $region37: #{retina_unnet_forward.1} parent=1 // pred_fallthru
      _
    // Predicated region
    $region38: #{retina_unnet_forward.1} parent=1 // pred_check
      _
    $region39: #{retina_unnet_forward.1} parent=1 // pred_check_branch
      %61 = sbr.rel (0) target = $region41
    $region40: #{retina_unnet_forward.1} parent=1 // pred_region
      _
    $region41: #{retina_unnet_forward.1} parent=1 // pred_fallthru
      _
    // Predicated region
    $region42: #{retina_unnet_forward.1} parent=1 // pred_check
      _
    $region43: #{retina_unnet_forward.1} parent=1 // pred_check_branch
      %63 = sbr.rel (0) target = $region45
    $region44: #{retina_unnet_forward.1} parent=1 // pred_region
      _
    $region45: #{retina_unnet_forward.1} parent=1 // pred_fallthru
      _
    // Predicated region
    $region46: #{retina_unnet_forward.1} parent=1 // pred_check
      _
    $region47: #{retina_unnet_forward.1} parent=1 // pred_check_branch
      %65 = sbr.rel (0) target = $region49
    $region48: #{retina_unnet_forward.1} parent=1 // pred_region
      _
    $region49: #{retina_unnet_forward.1} parent=1 // pred_fallthru
      _
    // Predicated region
    $region50: #{retina_unnet_forward.1} parent=1 // pred_check
      _
    $region51: #{retina_unnet_forward.1} parent=1 // pred_check_branch
      %67 = sbr.rel (0) target = $region53
    $region52: #{retina_unnet_forward.1} parent=1 // pred_region
      _
    $region53: #{retina_unnet_forward.1} parent=1 // pred_fallthru
      _
    // Predicated region
    $region54: #{retina_unnet_forward.1} parent=1 // pred_check
      _
    $region55: #{retina_unnet_forward.1} parent=1 // pred_check_branch
      %69 = sbr.rel (0) target = $region57
    $region56: #{retina_unnet_forward.1} parent=1 // pred_region
      _
    $region57: #{retina_unnet_forward.1} parent=1 // pred_fallthru
      _
    // Predicated region
    $region58: #{retina_unnet_forward.1} parent=1 // pred_check
      _
    $region59: #{retina_unnet_forward.1} parent=1 // pred_check_branch
      %71 = sbr.rel (0) target = $region61
    $region60: #{retina_unnet_forward.1} parent=1 // pred_region
      _
    $region61: #{retina_unnet_forward.1} parent=1 // pred_fallthru
      _
    // Predicated region
    $region62: #{retina_unnet_forward.1} parent=1 // pred_check
      _
    $region63: #{retina_unnet_forward.1} parent=1 // pred_check_branch
      %73 = sbr.rel (0) target = $region65
    $region64: #{retina_unnet_forward.1} parent=1 // pred_region
      %74 = dma.done [#allocation3], 4096
    $region65: #{retina_unnet_forward.1} parent=1 // pred_fallthru
      _
    // Predicated region
    $region66: #{retina_unnet_forward.1} parent=1 // pred_check
      _
    $region67: #{retina_unnet_forward.1} parent=1 // pred_check_branch
      %76 = sbr.rel (0) target = $region69
    $region68: #{retina_unnet_forward.1} parent=1 // pred_region
      %77 = dma.done [#allocation5], 4096
    $region69: #{retina_unnet_forward.1} parent=1 // pred_fallthru
      _
    %v79 = vld [vmem:[%s0] sm:$0xff]
    %v80 = vld [vmem:[%s0 + $0x8] sm:$0xff]
    %v83 = vcombine.high %v79, %v79
    %v84 = vcombine.high %v80, %v80
    %87 = vrot.lane.b32.xlu0 %v79, 17
    %v88 = vpop.permute.xlu0 %87
    %89 = vrot.lane.b32.xlu0 %v83, 17
    %v90 = vpop.permute.xlu0 %89
    %91 = vrot.lane.b32.xlu0 %v80, 17
    %v92 = vpop.permute.xlu0 %91
    %93 = vrot.lane.b32.xlu0 %v84, 17
    %v94 = vpop.permute.xlu0 %93
    %v95 = vlaneseq
    %v96 = vand.u32 %v95, 127
    %vm97 = vcmp.lt.s32.totalorder %v96, 17
    %v98 = vsel %vm97, %v92, %v94
    %v99 = vsel %vm97, %v90, %v92
    %v100 = vsel %vm97, %v88, %v90
    %v101 = vsel %vm97, %v94, %v88
    %v102 = vld [vmem:[%s1] sm:$0xf]
    %v104 = vlaneseq
    %v105 = vshrl.u32 %v104, 7
    %v106 = vsub.s32 0, %v105
    %v107 = vrot.slane %v102, %v106
    %v108 = vlaneseq
    %v109 = vshrl.u32 %v108, 7
    %v110 = vsub.s32 1, %v109
    %v111 = vrot.slane %v102, %v110
    %v112 = vlaneseq
    %v113 = vshrl.u32 %v112, 7
    %v114 = vsub.s32 2, %v113
    %v115 = vrot.slane %v102, %v114
    %v116 = vlaneseq
    %v117 = vshrl.u32 %v116, 7
    %v118 = vsub.s32 3, %v117
    %v119 = vrot.slane %v102, %v118
    %v124 = vmul.f32 %v101, %v107
    %v125 = vmul.f32 %v100, %v111
    %v126 = vmul.f32 %v99, %v115
    %v127 = vmul.f32 %v98, %v119
    %128 = vrot.lane.b32.xlu0 %v79, 16
    %v129 = vpop.permute.xlu0 %128
    %130 = vrot.lane.b32.xlu0 %v83, 16
    %v131 = vpop.permute.xlu0 %130
    %132 = vrot.lane.b32.xlu0 %v80, 16
    %v133 = vpop.permute.xlu0 %132
    %134 = vrot.lane.b32.xlu0 %v84, 16
    %v135 = vpop.permute.xlu0 %134
    %vm136 = vcmp.lt.s32.totalorder %v96, 16
    %v137 = vsel %vm136, %v133, %v135
    %v138 = vsel %vm136, %v131, %v133
    %v139 = vsel %vm136, %v129, %v131
    %v140 = vsel %vm136, %v135, %v129
    %s141 = scalar_lea.vmem %s1, 4
    %v142 = vld [vmem:[%s141] sm:$0xf]
    %v144 = vlaneseq
    %v145 = vshrl.u32 %v144, 7
    %v146 = vsub.s32 0, %v145
    %v147 = vrot.slane %v142, %v146
    %v148 = vlaneseq
    %v149 = vshrl.u32 %v148, 7
    %v150 = vsub.s32 1, %v149
    %v151 = vrot.slane %v142, %v150
    %v152 = vlaneseq
    %v153 = vshrl.u32 %v152, 7
    %v154 = vsub.s32 2, %v153
    %v155 = vrot.slane %v142, %v154
    %v156 = vlaneseq
    %v157 = vshrl.u32 %v156, 7
    %v158 = vsub.s32 3, %v157
    %v159 = vrot.slane %v142, %v158
    %v164 = vmul.f32 %v140, %v147
    %v165 = vmul.f32 %v139, %v151
    %v166 = vmul.f32 %v138, %v155
    %v167 = vmul.f32 %v137, %v159
    %168 = vrot.lane.b32.xlu0 %v79, 15
    %v169 = vpop.permute.xlu0 %168
    %170 = vrot.lane.b32.xlu0 %v83, 15
    %v171 = vpop.permute.xlu0 %170
    %172 = vrot.lane.b32.xlu0 %v80, 15
    %v173 = vpop.permute.xlu0 %172
    %174 = vrot.lane.b32.xlu0 %v84, 15
    %v175 = vpop.permute.xlu0 %174
    %vm176 = vcmp.lt.s32.totalorder %v96, 15
    %v177 = vsel %vm176, %v173, %v175
    %v178 = vsel %vm176, %v171, %v173
    %v179 = vsel %vm176, %v169, %v171
    %v180 = vsel %vm176, %v175, %v169
    %s181 = scalar_lea.vmem %s1, 8
    %v182 = vld [vmem:[%s181] sm:$0xf]
    %v184 = vlaneseq
    %v185 = vshrl.u32 %v184, 7
    %v186 = vsub.s32 0, %v185
    %v187 = vrot.slane %v182, %v186
    %v188 = vlaneseq
    %v189 = vshrl.u32 %v188, 7
    %v190 = vsub.s32 1, %v189
    %v191 = vrot.slane %v182, %v190
    %v192 = vlaneseq
    %v193 = vshrl.u32 %v192, 7
    %v194 = vsub.s32 2, %v193
    %v195 = vrot.slane %v182, %v194
    %v196 = vlaneseq
    %v197 = vshrl.u32 %v196, 7
    %v198 = vsub.s32 3, %v197
    %v199 = vrot.slane %v182, %v198
    %v204 = vmul.f32 %v180, %v187
    %v205 = vmul.f32 %v179, %v191
    %v206 = vmul.f32 %v178, %v195
    %v207 = vmul.f32 %v177, %v199
    %208 = vrot.lane.b32.xlu0 %v79, 1
    %v209 = vpop.permute.xlu0 %208
    %210 = vrot.lane.b32.xlu0 %v83, 1
    %v211 = vpop.permute.xlu0 %210
    %212 = vrot.lane.b32.xlu0 %v80, 1
    %v213 = vpop.permute.xlu0 %212
    %214 = vrot.lane.b32.xlu0 %v84, 1
    %v215 = vpop.permute.xlu0 %214
    %vm216 = vcmp.lt.s32.totalorder %v96, 1
    %v217 = vsel %vm216, %v213, %v215
    %v218 = vsel %vm216, %v211, %v213
    %v219 = vsel %vm216, %v209, %v211
    %v220 = vsel %vm216, %v215, %v209
    %s221 = scalar_lea.vmem %s1, 12
    %v222 = vld [vmem:[%s221] sm:$0xf]
    %v224 = vlaneseq
    %v225 = vshrl.u32 %v224, 7
    %v226 = vsub.s32 0, %v225
    %v227 = vrot.slane %v222, %v226
    %v228 = vlaneseq
    %v229 = vshrl.u32 %v228, 7
    %v230 = vsub.s32 1, %v229
    %v231 = vrot.slane %v222, %v230
    %v232 = vlaneseq
    %v233 = vshrl.u32 %v232, 7
    %v234 = vsub.s32 2, %v233
    %v235 = vrot.slane %v222, %v234
    %v236 = vlaneseq
    %v237 = vshrl.u32 %v236, 7
    %v238 = vsub.s32 3, %v237
    %v239 = vrot.slane %v222, %v238
    %v244 = vmul.f32 %v220, %v227
    %v245 = vmul.f32 %v219, %v231
    %v246 = vmul.f32 %v218, %v235
    %v247 = vmul.f32 %v217, %v239
    %s248 = scalar_lea.vmem %s1, 16
    %v249 = vld [vmem:[%s248] sm:$0xf]
    %v251 = vlaneseq
    %v252 = vshrl.u32 %v251, 7
    %v253 = vsub.s32 0, %v252
    %v254 = vrot.slane %v249, %v253
    %v255 = vlaneseq
    %v256 = vshrl.u32 %v255, 7
    %v257 = vsub.s32 1, %v256
    %v258 = vrot.slane %v249, %v257
    %v259 = vlaneseq
    %v260 = vshrl.u32 %v259, 7
    %v261 = vsub.s32 2, %v260
    %v262 = vrot.slane %v249, %v261
    %v263 = vlaneseq
    %v264 = vshrl.u32 %v263, 7
    %v265 = vsub.s32 3, %v264
    %v266 = vrot.slane %v249, %v265
    %v267 = vcombine.low %v254, %v258
    %v268 = vcombine.low %v262, %v266
    %v271 = vmul.f32 %v79, %v267
    %v272 = vmul.f32 %v80, %v268
    %273 = vrot.lane.b32.xlu0 %v79, 127
    %v274 = vpop.permute.xlu0 %273
    %275 = vrot.lane.b32.xlu0 %v83, 127
    %v276 = vpop.permute.xlu0 %275
    %277 = vrot.lane.b32.xlu0 %v80, 127
    %v278 = vpop.permute.xlu0 %277
    %279 = vrot.lane.b32.xlu0 %v84, 127
    %v280 = vpop.permute.xlu0 %279
    %vm281 = vcmp.lt.s32.totalorder %v96, 127
    %v282 = vsel %vm281, %v278, %v280
    %v283 = vsel %vm281, %v276, %v278
    %v284 = vsel %vm281, %v274, %v276
    %v285 = vsel %vm281, %v280, %v274
    %s286 = scalar_lea.vmem %s1, 20
    %v287 = vld [vmem:[%s286] sm:$0xf]
    %v289 = vlaneseq
    %v290 = vshrl.u32 %v289, 7
    %v291 = vsub.s32 0, %v290
    %v292 = vrot.slane %v287, %v291
    %v293 = vlaneseq
    %v294 = vshrl.u32 %v293, 7
    %v295 = vsub.s32 1, %v294
    %v296 = vrot.slane %v287, %v295
    %v297 = vlaneseq
    %v298 = vshrl.u32 %v297, 7
    %v299 = vsub.s32 2, %v298
    %v300 = vrot.slane %v287, %v299
    %v301 = vlaneseq
    %v302 = vshrl.u32 %v301, 7
    %v303 = vsub.s32 3, %v302
    %v304 = vrot.slane %v287, %v303
    %v309 = vmul.f32 %v284, %v292
    %v310 = vmul.f32 %v283, %v296
    %v311 = vmul.f32 %v282, %v300
    %v312 = vmul.f32 %v285, %v304
    %313 = vrot.lane.b32.xlu0 %v79, 113
    %v314 = vpop.permute.xlu0 %313
    %315 = vrot.lane.b32.xlu0 %v83, 113
    %v316 = vpop.permute.xlu0 %315
    %317 = vrot.lane.b32.xlu0 %v80, 113
    %v318 = vpop.permute.xlu0 %317
    %319 = vrot.lane.b32.xlu0 %v84, 113
    %v320 = vpop.permute.xlu0 %319
    %vm321 = vcmp.lt.s32.totalorder %v96, 113
    %v322 = vsel %vm321, %v318, %v320
    %v323 = vsel %vm321, %v316, %v318
    %v324 = vsel %vm321, %v314, %v316
    %v325 = vsel %vm321, %v320, %v314
    %s326 = scalar_lea.vmem %s1, 24
    %v327 = vld [vmem:[%s326] sm:$0xf]
    %v329 = vlaneseq
    %v330 = vshrl.u32 %v329, 7
    %v331 = vsub.s32 0, %v330
    %v332 = vrot.slane %v327, %v331
    %v333 = vlaneseq
    %v334 = vshrl.u32 %v333, 7
    %v335 = vsub.s32 1, %v334
    %v336 = vrot.slane %v327, %v335
    %v337 = vlaneseq
    %v338 = vshrl.u32 %v337, 7
    %v339 = vsub.s32 2, %v338
    %v340 = vrot.slane %v327, %v339
    %v341 = vlaneseq
    %v342 = vshrl.u32 %v341, 7
    %v343 = vsub.s32 3, %v342
    %v344 = vrot.slane %v327, %v343
    %v349 = vmul.f32 %v324, %v332
    %v350 = vmul.f32 %v323, %v336
    %v351 = vmul.f32 %v322, %v340
    %v352 = vmul.f32 %v325, %v344
    %353 = vrot.lane.b32.xlu0 %v79, 112
    %v354 = vpop.permute.xlu0 %353
    %355 = vrot.lane.b32.xlu0 %v83, 112
    %v356 = vpop.permute.xlu0 %355
    %357 = vrot.lane.b32.xlu0 %v80, 112
    %v358 = vpop.permute.xlu0 %357
    %359 = vrot.lane.b32.xlu0 %v84, 112
    %v360 = vpop.permute.xlu0 %359
    %vm361 = vcmp.lt.s32.totalorder %v96, 112
    %v362 = vsel %vm361, %v358, %v360
    %v363 = vsel %vm361, %v356, %v358
    %v364 = vsel %vm361, %v354, %v356
    %v365 = vsel %vm361, %v360, %v354
    %s366 = scalar_lea.vmem %s1, 28
    %v367 = vld [vmem:[%s366] sm:$0xf]
    %v369 = vlaneseq
    %v370 = vshrl.u32 %v369, 7
    %v371 = vsub.s32 0, %v370
    %v372 = vrot.slane %v367, %v371
    %v373 = vlaneseq
    %v374 = vshrl.u32 %v373, 7
    %v375 = vsub.s32 1, %v374
    %v376 = vrot.slane %v367, %v375
    %v377 = vlaneseq
    %v378 = vshrl.u32 %v377, 7
    %v379 = vsub.s32 2, %v378
    %v380 = vrot.slane %v367, %v379
    %v381 = vlaneseq
    %v382 = vshrl.u32 %v381, 7
    %v383 = vsub.s32 3, %v382
    %v384 = vrot.slane %v367, %v383
    %v389 = vmul.f32 %v364, %v372
    %v390 = vmul.f32 %v363, %v376
    %v391 = vmul.f32 %v362, %v380
    %v392 = vmul.f32 %v365, %v384
    %393 = vrot.lane.b32.xlu0 %v79, 111
    %v394 = vpop.permute.xlu0 %393
    %395 = vrot.lane.b32.xlu0 %v83, 111
    %v396 = vpop.permute.xlu0 %395
    %397 = vrot.lane.b32.xlu0 %v80, 111
    %v398 = vpop.permute.xlu0 %397
    %399 = vrot.lane.b32.xlu0 %v84, 111
    %v400 = vpop.permute.xlu0 %399
    %vm401 = vcmp.lt.s32.totalorder %v96, 111
    %v402 = vsel %vm401, %v398, %v400
    %v403 = vsel %vm401, %v396, %v398
    %v404 = vsel %vm401, %v394, %v396
    %v405 = vsel %vm401, %v400, %v394
    %s406 = scalar_lea.vmem %s1, 32
    %v407 = vld [vmem:[%s406] sm:$0xf]
    %v409 = vlaneseq
    %v410 = vshrl.u32 %v409, 7
    %v411 = vsub.s32 0, %v410
    %v412 = vrot.slane %v407, %v411
    %v413 = vlaneseq
    %v414 = vshrl.u32 %v413, 7
    %v415 = vsub.s32 1, %v414
    %v416 = vrot.slane %v407, %v415
    %v417 = vlaneseq
    %v418 = vshrl.u32 %v417, 7
    %v419 = vsub.s32 2, %v418
    %v420 = vrot.slane %v407, %v419
    %v421 = vlaneseq
    %v422 = vshrl.u32 %v421, 7
    %v423 = vsub.s32 3, %v422
    %v424 = vrot.slane %v407, %v423
    %v429 = vmul.f32 %v404, %v412
    %v430 = vmul.f32 %v403, %v416
    %v431 = vmul.f32 %v402, %v420
    %v432 = vmul.f32 %v405, %v424
    %v437 = vrot.slane %v164, 4
    %v438 = vrot.slane %v165, 4
    %v439 = vrot.slane %v166, 4
    %v440 = vrot.slane %v167, 4
    %v449 = vrot.slane %v244, 4
    %v450 = vrot.slane %v245, 4
    %v451 = vrot.slane %v246, 4
    %v452 = vrot.slane %v247, 4
    %v459 = vcombine.high %v271, %v271
    %v460 = vcombine.high %v272, %v272
    %v467 = vrot.slane %v309, 4
    %v468 = vrot.slane %v310, 4
    %v469 = vrot.slane %v311, 4
    %v470 = vrot.slane %v312, 4
    %v479 = vrot.slane %v389, 4
    %v480 = vrot.slane %v390, 4
    %v481 = vrot.slane %v391, 4
    %v482 = vrot.slane %v392, 4
    %vm487 = vcmask 1043456
    %v488 = vsel %vm487, %v124, %v437
    %v489 = vsel %vm487, %v125, %v438
    %v490 = vsel %vm487, %v126, %v439
    %v491 = vsel %vm487, %v127, %v440
    %v492 = vsel %vm487, %v204, %v449
    %v493 = vsel %vm487, %v205, %v450
    %v494 = vsel %vm487, %v206, %v451
    %v495 = vsel %vm487, %v207, %v452
    %v496 = vsel %vm487, %v271, %v467
    %v497 = vsel %vm487, %v459, %v468
    %v498 = vsel %vm487, %v272, %v469
    %v499 = vsel %vm487, %v460, %v470
    %v500 = vsel %vm487, %v349, %v479
    %v501 = vsel %vm487, %v350, %v480
    %v502 = vsel %vm487, %v351, %v481
    %v503 = vsel %vm487, %v352, %v482
    %v504 = vpack.c.bf16 %v492, %v488
    %v505 = vpack.c.bf16 %v493, %v489
    %v506 = vpack.c.bf16 %v494, %v490
    %v507 = vpack.c.bf16 %v495, %v491
    %v508 = vpack.c.bf16 %v500, %v496
    %v509 = vpack.c.bf16 %v501, %v497
    %v510 = vpack.c.bf16 %v502, %v498
    %v511 = vpack.c.bf16 %v503, %v499
    %v512 = vpack.c.bf16 %v429, %v429
    %v513 = vpack.c.bf16 %v430, %v430
    %v514 = vpack.c.bf16 %v431, %v431
    %v515 = vpack.c.bf16 %v432, %v432
    %v516 = vld [vmem:[%s5] sm:$0xf]
    %v517 = vld [vmem:[%s6] sm:$0xff]
    %519 = vset.pattern.permute.xlu0 0
    %520 = vperm.xlu0 %519, %v517
    %v521 = vpop.permute.xlu0 %520
    %vm523 = vcmask 293888
    %v525 = vsel %vm523, %v516, 0
    %vm527 = vcmask 1041408
    %v529 = vsel %vm527, %v512, 0
    %v532 = vsel %vm527, %v513, 0
    %v535 = vsel %vm527, %v514, 0
    %v538 = vsel %vm527, %v515, 0
    %540 = vmatprep.subr.bf16.mxu0 0
    %541 = vmatpush1.bf16.msra.mxu0 0
    %542 = vmatprep.subr.bf16.mxu0 0
    %543 = vmatpush1.bf16.msra.mxu0 0
    %544 = vmatprep.subr.bf16.mxu0 0
    %545 = vmatpush1.bf16.msra.mxu0 0
    %546 = vmatprep.subr.bf16.mxu0 0
    %547 = vmatpush1.bf16.msra.mxu0 0
    %548 = vmatprep.subr.bf16.mxu0 0
    %549 = vmatpush1.bf16.msra.mxu0 0
    %550 = vmatprep.subr.bf16.mxu0 %v532
    %551 = vmatpush1.bf16.msra.mxu0 %v529
    %552 = vmatprep.subr.bf16.mxu0 %v509
    %553 = vmatpush1.bf16.msra.mxu0 %v508
    %554 = vmatprep.subr.bf16.mxu0 %v505
    %555 = vmatpush1.bf16.msra.mxu0 %v504
    %556 = vmatprep.subr.bf16.mxu0 0
    %557 = vmatpush2.bf16.msra.mxu0 0
    %558 = vmatprep.subr.bf16.mxu0 0
    %559 = vmatpush2.bf16.msra.mxu0 0
    %560 = vmatprep.subr.bf16.mxu0 0
    %561 = vmatpush2.bf16.msra.mxu0 0
    %562 = vmatprep.subr.bf16.mxu0 0
    %563 = vmatpush2.bf16.msra.mxu0 0
    %564 = vmatprep.subr.bf16.mxu0 0
    %565 = vmatpush2.bf16.msra.mxu0 0
    %566 = vmatprep.subr.bf16.mxu0 0
    %567 = vmatpush2.bf16.msra.mxu0 0
    %568 = vmatprep.subr.bf16.mxu0 0
    %569 = vmatpush2.bf16.msra.mxu0 0
    %570 = vmatprep.subr.bf16.mxu0 0
    %571 = vmatpush2.bf16.msra.mxu0 0
    %572 = vmatprep.mubr.bf16.mxu0 0
    %573 = vmatmul.mubr.bf16.gmra.mxu0 %v525
    %v574 = vpop.f32.mrf.mxu0
    %v575 = vadd.f32 %v521, %v574
    %v576 = vpop.f32.mrf.mxu0
    %v577 = vadd.f32 %v521, %v576
    %v578 = vpop.f32.mrf.mxu0
    %v579 = vpop.f32.mrf.mxu0
    %580 = vdwg.mxu0
    %581 = vmatprep.subr.bf16.mxu0 0
    %582 = vmatpush1.bf16.msra.mxu0 0
    %583 = vmatprep.subr.bf16.mxu0 0
    %584 = vmatpush1.bf16.msra.mxu0 0
    %585 = vmatprep.subr.bf16.mxu0 0
    %586 = vmatpush1.bf16.msra.mxu0 0
    %587 = vmatprep.subr.bf16.mxu0 0
    %588 = vmatpush1.bf16.msra.mxu0 0
    %589 = vmatprep.subr.bf16.mxu0 0
    %590 = vmatpush1.bf16.msra.mxu0 0
    %591 = vmatprep.subr.bf16.mxu0 %v538
    %592 = vmatpush1.bf16.msra.mxu0 %v535
    %593 = vmatprep.subr.bf16.mxu0 %v511
    %594 = vmatpush1.bf16.msra.mxu0 %v510
    %595 = vmatprep.subr.bf16.mxu0 %v507
    %596 = vmatpush1.bf16.msra.mxu0 %v506
    %597 = vmatprep.subr.bf16.mxu0 0
    %598 = vmatpush2.bf16.msra.mxu0 0
    %599 = vmatprep.subr.bf16.mxu0 0
    %600 = vmatpush2.bf16.msra.mxu0 0
    %601 = vmatprep.subr.bf16.mxu0 0
    %602 = vmatpush2.bf16.msra.mxu0 0
    %603 = vmatprep.subr.bf16.mxu0 0
    %604 = vmatpush2.bf16.msra.mxu0 0
    %605 = vmatprep.subr.bf16.mxu0 0
    %606 = vmatpush2.bf16.msra.mxu0 0
    %607 = vmatprep.subr.bf16.mxu0 0
    %608 = vmatpush2.bf16.msra.mxu0 0
    %609 = vmatprep.subr.bf16.mxu0 0
    %610 = vmatpush2.bf16.msra.mxu0 0
    %611 = vmatprep.subr.bf16.mxu0 0
    %612 = vmatpush2.bf16.msra.mxu0 0
    %613 = vmatprep.mubr.bf16.mxu0 0
    %614 = vmatmul.mubr.bf16.gmra.mxu0 %v525
    %v615 = vpop.f32.mrf.mxu0
    %v616 = vadd.f32 %v521, %v615
    %v617 = vpop.f32.mrf.mxu0
    %v618 = vadd.f32 %v521, %v617
    %v619 = vpop.f32.mrf.mxu0
    %v620 = vpop.f32.mrf.mxu0
    %621 = vdwg.mxu0
    %v622 = vmax.f32 %v575, 0.0
    %v623 = vmax.f32 %v577, 0.0
    %v624 = vmax.f32 %v616, 0.0
    %v625 = vmax.f32 %v618, 0.0
    %626 = vrot.lane.b32.xlu0 %v622, 127
    %v627 = vpop.permute.xlu0 %626
    %628 = vrot.lane.b32.xlu0 %v623, 127
    %v629 = vpop.permute.xlu0 %628
    %630 = vrot.lane.b32.xlu0 %v624, 127
    %v631 = vpop.permute.xlu0 %630
    %632 = vrot.lane.b32.xlu0 %v625, 127
    %v633 = vpop.permute.xlu0 %632
    %v634 = vsel %vm281, %v631, %v633
    %v635 = vsel %vm281, %v629, %v631
    %v636 = vsel %vm281, %v627, %v629
    %v637 = vsel %vm281, %v633, %v627
    %v638 = vmax.f32 %v622, %v636
    %v639 = vmax.f32 %v623, %v635
    %v640 = vmax.f32 %v624, %v634
    %v641 = vmax.f32 %v625, %v637
    %642 = vrot.lane.b32.xlu0 %v638, 112
    %v643 = vpop.permute.xlu0 %642
    %644 = vrot.lane.b32.xlu0 %v639, 112
    %v645 = vpop.permute.xlu0 %644
    %646 = vrot.lane.b32.xlu0 %v640, 112
    %v647 = vpop.permute.xlu0 %646
    %648 = vrot.lane.b32.xlu0 %v641, 112
    %v649 = vpop.permute.xlu0 %648
    %v650 = vsel %vm361, %v647, %v649
    %v651 = vsel %vm361, %v645, %v647
    %v652 = vsel %vm361, %v643, %v645
    %v653 = vsel %vm361, %v649, %v643
    %v654 = vmax.f32 %v638, %v652
    %v655 = vmax.f32 %v639, %v651
    %v656 = vmax.f32 %v640, %v650
    %v657 = vmax.f32 %v641, %v653
    %v658 = vpack.c.bf16 %v654, %v654
    %v659 = vpack.c.bf16 %v655, %v655
    %v660 = vpack.c.bf16 %v656, %v656
    %v661 = vpack.c.bf16 %v657, %v657
    %v662 = vld [vmem:[#allocation2] sm:$0xf]
    %v663 = vld [vmem:[#allocation2 + $0x4] sm:$0xf]
    %v664 = vld [vmem:[#allocation2 + $0x8] sm:$0xf]
    %v665 = vld [vmem:[#allocation2 + $0xc] sm:$0xf]
    %v666 = vld [vmem:[#allocation2 + $0x10] sm:$0xf]
    %v667 = vld [vmem:[#allocation2 + $0x14] sm:$0xf]
    %v668 = vld [vmem:[#allocation2 + $0x18] sm:$0xf]
    %v669 = vld [vmem:[#allocation2 + $0x1c] sm:$0xf]
    %v670 = vld [vmem:[#allocation2 + $0x20] sm:$0xf]
    %v671 = vld [vmem:[#allocation2 + $0x24] sm:$0xf]
    %v672 = vld [vmem:[#allocation2 + $0x28] sm:$0xf]
    %v673 = vld [vmem:[#allocation2 + $0x2c] sm:$0xf]
    %v674 = vld [vmem:[#allocation2 + $0x30] sm:$0xf]
    %v675 = vld [vmem:[#allocation2 + $0x34] sm:$0xf]
    %v676 = vld [vmem:[#allocation2 + $0x38] sm:$0xf]
    %v677 = vld [vmem:[#allocation2 + $0x3c] sm:$0xf]
    %v678 = vld [vmem:[#allocation2 + $0x40] sm:$0xf]
    %v679 = vld [vmem:[#allocation2 + $0x44] sm:$0xf]
    %v680 = vld [vmem:[#allocation2 + $0x48] sm:$0xf]
    %v681 = vld [vmem:[#allocation2 + $0x4c] sm:$0xf]
    %v682 = vld [vmem:[#allocation2 + $0x50] sm:$0xf]
    %v683 = vld [vmem:[#allocation2 + $0x54] sm:$0xf]
    %v684 = vld [vmem:[#allocation2 + $0x58] sm:$0xf]
    %v685 = vld [vmem:[#allocation2 + $0x5c] sm:$0xf]
    %v686 = vld [vmem:[#allocation2 + $0x60] sm:$0xf]
    %v687 = vld [vmem:[#allocation2 + $0x64] sm:$0xf]
    %v688 = vld [vmem:[#allocation2 + $0x68] sm:$0xf]
    %v689 = vld [vmem:[#allocation2 + $0x6c] sm:$0xf]
    %v690 = vld [vmem:[#allocation2 + $0x70] sm:$0xf]
    %v691 = vld [vmem:[#allocation2 + $0x74] sm:$0xf]
    %v692 = vld [vmem:[#allocation2 + $0x78] sm:$0xf]
    %v693 = vld [vmem:[#allocation2 + $0x7c] sm:$0xf]
    %v694 = vld [vmem:[#allocation2 + $0x80] sm:$0xf]
    %v695 = vld [vmem:[#allocation2 + $0x84] sm:$0xf]
    %v696 = vld [vmem:[#allocation2 + $0x88] sm:$0xf]
    %v697 = vld [vmem:[#allocation2 + $0x8c] sm:$0xf]
    %v698 = vld [vmem:[#allocation2 + $0x90] sm:$0xf]
    %v699 = vld [vmem:[#allocation2 + $0x94] sm:$0xf]
    %v700 = vld [vmem:[#allocation2 + $0x98] sm:$0xf]
    %v701 = vld [vmem:[#allocation2 + $0x9c] sm:$0xf]
    %v702 = vld [vmem:[#allocation2 + $0xa0] sm:$0xf]
    %v703 = vld [vmem:[#allocation2 + $0xa4] sm:$0xf]
    %v704 = vld [vmem:[#allocation2 + $0xa8] sm:$0xf]
    %v705 = vld [vmem:[#allocation2 + $0xac] sm:$0xf]
    %v706 = vld [vmem:[#allocation2 + $0xb0] sm:$0xf]
    %v707 = vld [vmem:[#allocation2 + $0xb4] sm:$0xf]
    %v708 = vld [vmem:[#allocation2 + $0xb8] sm:$0xf]
    %v709 = vld [vmem:[#allocation2 + $0xbc] sm:$0xf]
    %v710 = vld [vmem:[#allocation2 + $0xc0] sm:$0xf]
    %v711 = vld [vmem:[#allocation2 + $0xc4] sm:$0xf]
    %v712 = vld [vmem:[#allocation2 + $0xc8] sm:$0xf]
    %v713 = vld [vmem:[#allocation2 + $0xcc] sm:$0xf]
    %v714 = vld [vmem:[#allocation2 + $0xd0] sm:$0xf]
    %v715 = vld [vmem:[#allocation2 + $0xd4] sm:$0xf]
    %v716 = vld [vmem:[#allocation2 + $0xd8] sm:$0xf]
    %v717 = vld [vmem:[#allocation2 + $0xdc] sm:$0xf]
    %v718 = vld [vmem:[#allocation2 + $0xe0] sm:$0xf]
    %v719 = vld [vmem:[#allocation2 + $0xe4] sm:$0xf]
    %v720 = vld [vmem:[#allocation2 + $0xe8] sm:$0xf]
    %v721 = vld [vmem:[#allocation2 + $0xec] sm:$0xf]
    %v722 = vld [vmem:[#allocation2 + $0xf0] sm:$0xf]
    %v723 = vld [vmem:[#allocation2 + $0xf4] sm:$0xf]
    %v724 = vld [vmem:[#allocation2 + $0xf8] sm:$0xf]
    %v725 = vld [vmem:[#allocation2 + $0xfc] sm:$0xf]
    %v790 = vunpack.c.l.b16 %v662
    %v791 = vunpack.c.l.b16 %v663
    %v792 = vunpack.c.l.b16 %v664
    %v793 = vunpack.c.l.b16 %v665
    %v794 = vunpack.c.l.b16 %v666
    %v795 = vunpack.c.l.b16 %v667
    %v796 = vunpack.c.l.b16 %v668
    %v797 = vunpack.c.l.b16 %v669
    %v798 = vunpack.c.l.b16 %v670
    %v799 = vunpack.c.l.b16 %v671
    %v800 = vunpack.c.l.b16 %v672
    %v801 = vunpack.c.l.b16 %v673
    %v802 = vunpack.c.l.b16 %v674
    %v803 = vunpack.c.l.b16 %v675
    %v804 = vunpack.c.l.b16 %v676
    %v805 = vunpack.c.l.b16 %v677
    %v806 = vunpack.c.l.b16 %v678
    %v807 = vunpack.c.l.b16 %v679
    %v808 = vunpack.c.l.b16 %v680
    %v809 = vunpack.c.l.b16 %v681
    %v810 = vunpack.c.l.b16 %v682
    %v811 = vunpack.c.l.b16 %v683
    %v812 = vunpack.c.l.b16 %v684
    %v813 = vunpack.c.l.b16 %v685
    %v814 = vunpack.c.l.b16 %v686
    %v815 = vunpack.c.l.b16 %v687
    %v816 = vunpack.c.l.b16 %v688
    %v817 = vunpack.c.l.b16 %v689
    %v818 = vunpack.c.l.b16 %v690
    %v819 = vunpack.c.l.b16 %v691
    %v820 = vunpack.c.l.b16 %v692
    %v821 = vunpack.c.l.b16 %v693
    %v822 = vunpack.c.l.b16 %v694
    %v823 = vunpack.c.l.b16 %v695
    %v824 = vunpack.c.l.b16 %v696
    %v825 = vunpack.c.l.b16 %v697
    %v826 = vunpack.c.l.b16 %v698
    %v827 = vunpack.c.l.b16 %v699
    %v828 = vunpack.c.l.b16 %v700
    %v829 = vunpack.c.l.b16 %v701
    %v830 = vunpack.c.l.b16 %v702
    %v831 = vunpack.c.l.b16 %v703
    %v832 = vunpack.c.l.b16 %v704
    %v833 = vunpack.c.l.b16 %v705
    %v834 = vunpack.c.l.b16 %v706
    %v835 = vunpack.c.l.b16 %v707
    %v836 = vunpack.c.l.b16 %v708
    %v837 = vunpack.c.l.b16 %v709
    %v838 = vunpack.c.l.b16 %v710
    %v839 = vunpack.c.l.b16 %v711
    %v840 = vunpack.c.l.b16 %v712
    %v841 = vunpack.c.l.b16 %v713
    %v842 = vunpack.c.l.b16 %v714
    %v843 = vunpack.c.l.b16 %v715
    %v844 = vunpack.c.l.b16 %v716
    %v845 = vunpack.c.l.b16 %v717
    %v846 = vunpack.c.l.b16 %v718
    %v847 = vunpack.c.l.b16 %v719
    %v848 = vunpack.c.l.b16 %v720
    %v849 = vunpack.c.l.b16 %v721
    %v850 = vunpack.c.l.b16 %v722
    %v851 = vunpack.c.l.b16 %v723
    %v852 = vunpack.c.l.b16 %v724
    %v853 = vunpack.c.l.b16 %v725
    %v854 = vpack.c.b16 %v791, %v790
    %v855 = vpack.c.b16 %v793, %v792
    %v856 = vpack.c.b16 %v795, %v794
    %v857 = vpack.c.b16 %v797, %v796
    %v858 = vpack.c.b16 %v799, %v798
    %v859 = vpack.c.b16 %v801, %v800
    %v860 = vpack.c.b16 %v803, %v802
    %v861 = vpack.c.b16 %v805, %v804
    %v862 = vpack.c.b16 %v807, %v806
    %v863 = vpack.c.b16 %v809, %v808
    %v864 = vpack.c.b16 %v811, %v810
    %v865 = vpack.c.b16 %v813, %v812
    %v866 = vpack.c.b16 %v815, %v814
    %v867 = vpack.c.b16 %v817, %v816
    %v868 = vpack.c.b16 %v819, %v818
    %v869 = vpack.c.b16 %v821, %v820
    %v870 = vpack.c.b16 %v823, %v822
    %v871 = vpack.c.b16 %v825, %v824
    %v872 = vpack.c.b16 %v827, %v826
    %v873 = vpack.c.b16 %v829, %v828
    %v874 = vpack.c.b16 %v831, %v830
    %v875 = vpack.c.b16 %v833, %v832
    %v876 = vpack.c.b16 %v835, %v834
    %v877 = vpack.c.b16 %v837, %v836
    %v878 = vpack.c.b16 %v839, %v838
    %v879 = vpack.c.b16 %v841, %v840
    %v880 = vpack.c.b16 %v843, %v842
    %v881 = vpack.c.b16 %v845, %v844
    %v882 = vpack.c.b16 %v847, %v846
    %v883 = vpack.c.b16 %v849, %v848
    %v884 = vpack.c.b16 %v851, %v850
    %v885 = vpack.c.b16 %v853, %v852
    %918 = vmatprep.subr.bf16.mxu0 0
    %919 = vmatpush1.bf16.msra.mxu0 %v861
    %920 = vmatprep.subr.bf16.mxu0 0
    %921 = vmatpush1.bf16.msra.mxu0 %v860
    %922 = vmatprep.subr.bf16.mxu0 0
    %923 = vmatpush1.bf16.msra.mxu0 %v859
    %924 = vmatprep.subr.bf16.mxu0 0
    %925 = vmatpush1.bf16.msra.mxu0 %v858
    %926 = vmatprep.subr.bf16.mxu0 0
    %927 = vmatpush1.bf16.msra.mxu0 %v857
    %928 = vmatprep.subr.bf16.mxu0 0
    %929 = vmatpush1.bf16.msra.mxu0 %v856
    %930 = vmatprep.subr.bf16.mxu0 0
    %931 = vmatpush1.bf16.msra.mxu0 %v855
    %932 = vmatprep.subr.bf16.mxu0 0
    %933 = vmatpush1.bf16.msra.mxu0 %v854
    %934 = vmatprep.subr.bf16.mxu0 0
    %935 = vmatpush2.bf16.msra.mxu0 %v869
    %936 = vmatprep.subr.bf16.mxu0 0
    %937 = vmatpush2.bf16.msra.mxu0 %v868
    %938 = vmatprep.subr.bf16.mxu0 0
    %939 = vmatpush2.bf16.msra.mxu0 %v867
    %940 = vmatprep.subr.bf16.mxu0 0
    %941 = vmatpush2.bf16.msra.mxu0 %v866
    %942 = vmatprep.subr.bf16.mxu0 0
    %943 = vmatpush2.bf16.msra.mxu0 %v865
    %944 = vmatprep.subr.bf16.mxu0 0
    %945 = vmatpush2.bf16.msra.mxu0 %v864
    %946 = vmatprep.subr.bf16.mxu0 0
    %947 = vmatpush2.bf16.msra.mxu0 %v863
    %948 = vmatprep.subr.bf16.mxu0 0
    %949 = vmatpush2.bf16.msra.mxu0 %v862
    %950 = vmatprep.mubr.bf16.mxu0 %v659
    %951 = vmatmul.mubr.bf16.gmra.mxu0 %v658
    %v952 = vpop.f32.mrf.mxu0
    %v953 = vadd.f32 0.0, %v952
    %v954 = vpop.f32.mrf.mxu0
    %v955 = vpop.f32.mrf.mxu0
    %v956 = vpop.f32.mrf.mxu0
    %957 = vdwg.mxu0
    %958 = vmatprep.subr.bf16.mxu0 0
    %959 = vmatpush1.bf16.msra.mxu0 %v877
    %960 = vmatprep.subr.bf16.mxu0 0
    %961 = vmatpush1.bf16.msra.mxu0 %v876
    %962 = vmatprep.subr.bf16.mxu0 0
    %963 = vmatpush1.bf16.msra.mxu0 %v875
    %964 = vmatprep.subr.bf16.mxu0 0
    %965 = vmatpush1.bf16.msra.mxu0 %v874
    %966 = vmatprep.subr.bf16.mxu0 0
    %967 = vmatpush1.bf16.msra.mxu0 %v873
    %968 = vmatprep.subr.bf16.mxu0 0
    %969 = vmatpush1.bf16.msra.mxu0 %v872
    %970 = vmatprep.subr.bf16.mxu0 0
    %971 = vmatpush1.bf16.msra.mxu0 %v871
    %972 = vmatprep.subr.bf16.mxu0 0
    %973 = vmatpush1.bf16.msra.mxu0 %v870
    %974 = vmatprep.subr.bf16.mxu0 0
    %975 = vmatpush2.bf16.msra.mxu0 %v885
    %976 = vmatprep.subr.bf16.mxu0 0
    %977 = vmatpush2.bf16.msra.mxu0 %v884
    %978 = vmatprep.subr.bf16.mxu0 0
    %979 = vmatpush2.bf16.msra.mxu0 %v883
    %980 = vmatprep.subr.bf16.mxu0 0
    %981 = vmatpush2.bf16.msra.mxu0 %v882
    %982 = vmatprep.subr.bf16.mxu0 0
    %983 = vmatpush2.bf16.msra.mxu0 %v881
    %984 = vmatprep.subr.bf16.mxu0 0
    %985 = vmatpush2.bf16.msra.mxu0 %v880
    %986 = vmatprep.subr.bf16.mxu0 0
    %987 = vmatpush2.bf16.msra.mxu0 %v879
    %988 = vmatprep.subr.bf16.mxu0 0
    %989 = vmatpush2.bf16.msra.mxu0 %v878
    %990 = vmatprep.mubr.bf16.mxu0 %v661
    %991 = vmatmul.mubr.bf16.gmra.mxu0 %v660
    %v992 = vpop.f32.mrf.mxu0
    %v993 = vadd.f32 %v953, %v992
    %v994 = vpop.f32.mrf.mxu0
    %v995 = vpop.f32.mrf.mxu0
    %v996 = vpop.f32.mrf.mxu0
    %997 = vdwg.mxu0
    %998 = vrot.lane.b32.xlu0 %v993, 9
    %v999 = vpop.permute.xlu0 %998
    %v1000 = vld [vmem:[%s2] sm:$0x1]
    %v1002 = vlaneseq
    %v1003 = vshrl.u32 %v1002, 7
    %v1004 = vsub.s32 0, %v1003
    %v1005 = vrot.slane %v1000, %v1004
    %v1007 = vmul.f32 %v999, %v1005
    %1008 = vrot.lane.b32.xlu0 %v993, 8
    %v1009 = vpop.permute.xlu0 %1008
    %s1010 = scalar_lea.vmem %s2, 1
    %v1011 = vld [vmem:[%s1010] sm:$0x1]
    %v1013 = vlaneseq
    %v1014 = vshrl.u32 %v1013, 7
    %v1015 = vsub.s32 0, %v1014
    %v1016 = vrot.slane %v1011, %v1015
    %v1018 = vmul.f32 %v1009, %v1016
    %1019 = vrot.lane.b32.xlu0 %v993, 7
    %v1020 = vpop.permute.xlu0 %1019
    %s1021 = scalar_lea.vmem %s2, 2
    %v1022 = vld [vmem:[%s1021] sm:$0x1]
    %v1024 = vlaneseq
    %v1025 = vshrl.u32 %v1024, 7
    %v1026 = vsub.s32 0, %v1025
    %v1027 = vrot.slane %v1022, %v1026
    %v1029 = vmul.f32 %v1020, %v1027
    %1030 = vrot.lane.b32.xlu0 %v993, 1
    %v1031 = vpop.permute.xlu0 %1030
    %s1032 = scalar_lea.vmem %s2, 3
    %v1033 = vld [vmem:[%s1032] sm:$0x1]
    %v1035 = vlaneseq
    %v1036 = vshrl.u32 %v1035, 7
    %v1037 = vsub.s32 0, %v1036
    %v1038 = vrot.slane %v1033, %v1037
    %v1040 = vmul.f32 %v1031, %v1038
    %s1041 = scalar_lea.vmem %s2, 4
    %v1042 = vld [vmem:[%s1041] sm:$0x1]
    %v1044 = vlaneseq
    %v1045 = vshrl.u32 %v1044, 7
    %v1046 = vsub.s32 0, %v1045
    %v1047 = vrot.slane %v1042, %v1046
    %v1049 = vmul.f32 %v993, %v1047
    %1050 = vrot.lane.b32.xlu0 %v993, 127
    %v1051 = vpop.permute.xlu0 %1050
    %s1052 = scalar_lea.vmem %s2, 5
    %v1053 = vld [vmem:[%s1052] sm:$0x1]
    %v1055 = vlaneseq
    %v1056 = vshrl.u32 %v1055, 7
    %v1057 = vsub.s32 0, %v1056
    %v1058 = vrot.slane %v1053, %v1057
    %v1060 = vmul.f32 %v1051, %v1058
    %1061 = vrot.lane.b32.xlu0 %v993, 121
    %v1062 = vpop.permute.xlu0 %1061
    %s1063 = scalar_lea.vmem %s2, 6
    %v1064 = vld [vmem:[%s1063] sm:$0x1]
    %v1066 = vlaneseq
    %v1067 = vshrl.u32 %v1066, 7
    %v1068 = vsub.s32 0, %v1067
    %v1069 = vrot.slane %v1064, %v1068
    %v1071 = vmul.f32 %v1062, %v1069
    %1072 = vrot.lane.b32.xlu0 %v993, 120
    %v1073 = vpop.permute.xlu0 %1072
    %s1074 = scalar_lea.vmem %s2, 7
    %v1075 = vld [vmem:[%s1074] sm:$0x1]
    %v1077 = vlaneseq
    %v1078 = vshrl.u32 %v1077, 7
    %v1079 = vsub.s32 0, %v1078
    %v1080 = vrot.slane %v1075, %v1079
    %v1082 = vmul.f32 %v1073, %v1080
    %1083 = vrot.lane.b32.xlu0 %v993, 119
    %v1084 = vpop.permute.xlu0 %1083
    %s1085 = scalar_lea.vmem %s2, 8
    %v1086 = vld [vmem:[%s1085] sm:$0x1]
    %v1088 = vlaneseq
    %v1089 = vshrl.u32 %v1088, 7
    %v1090 = vsub.s32 0, %v1089
    %v1091 = vrot.slane %v1086, %v1090
    %v1093 = vmul.f32 %v1084, %v1091
    %v1094 = vpack.c.bf16 %v1018, %v1007
    %v1095 = vpack.c.bf16 %v1040, %v1029
    %v1096 = vpack.c.bf16 %v1060, %v1049
    %v1097 = vpack.c.bf16 %v1082, %v1071
    %v1098 = vpack.c.bf16 %v1093, %v1093
    %v1099 = vld [vmem:[%s7] sm:$0xf]
    %v1100 = vld [vmem:[%s7 + $0x4] sm:$0xf]
    %v1101 = vld [vmem:[%s8] sm:$0xff]
    %v1102 = vld [vmem:[%s8 + $0x8] sm:$0xff]
    %1104 = vset.pattern.permute.xlu0 0
    %1105 = vperm.xlu0 %1104, %v1101
    %v1106 = vpop.permute.xlu0 %1105
    %1109 = vset.pattern.permute.xlu0 0
    %1110 = vperm.xlu0 %1109, %v1102
    %v1111 = vpop.permute.xlu0 %1110
    %v1115 = vunpack.c.l.b16 %v1099
    %v1116 = vunpack.c.l.b16 %v1100
    %v1117 = vpack.c.b16 %v1116, %v1115
    %vm1118 = vcmask 588800
    %v1120 = vsel %vm1118, %v1117, 0
    %v1123 = vsel %vm487, %v1098, 0
    %1125 = vmatprep.subr.bf16.mxu0 0
    %1126 = vmatpush1.bf16.msra.mxu0 0
    %1127 = vmatprep.subr.bf16.mxu0 0
    %1128 = vmatpush1.bf16.msra.mxu0 0
    %1129 = vmatprep.subr.bf16.mxu0 0
    %1130 = vmatpush1.bf16.msra.mxu0 0
    %1131 = vmatprep.subr.bf16.mxu0 0
    %1132 = vmatpush1.bf16.msra.mxu0 %v1123
    %1133 = vmatprep.subr.bf16.mxu0 0
    %1134 = vmatpush1.bf16.msra.mxu0 %v1097
    %1135 = vmatprep.subr.bf16.mxu0 0
    %1136 = vmatpush1.bf16.msra.mxu0 %v1096
    %1137 = vmatprep.subr.bf16.mxu0 0
    %1138 = vmatpush1.bf16.msra.mxu0 %v1095
    %1139 = vmatprep.subr.bf16.mxu0 0
    %1140 = vmatpush1.bf16.msra.mxu0 %v1094
    %1141 = vmatprep.subr.bf16.mxu0 0
    %1142 = vmatpush2.bf16.msra.mxu0 0
    %1143 = vmatprep.subr.bf16.mxu0 0
    %1144 = vmatpush2.bf16.msra.mxu0 0
    %1145 = vmatprep.subr.bf16.mxu0 0
    %1146 = vmatpush2.bf16.msra.mxu0 0
    %1147 = vmatprep.subr.bf16.mxu0 0
    %1148 = vmatpush2.bf16.msra.mxu0 0
    %1149 = vmatprep.subr.bf16.mxu0 0
    %1150 = vmatpush2.bf16.msra.mxu0 0
    %1151 = vmatprep.subr.bf16.mxu0 0
    %1152 = vmatpush2.bf16.msra.mxu0 0
    %1153 = vmatprep.subr.bf16.mxu0 0
    %1154 = vmatpush2.bf16.msra.mxu0 0
    %1155 = vmatprep.subr.bf16.mxu0 0
    %1156 = vmatpush2.bf16.msra.mxu0 0
    %1157 = vmatprep.mubr.bf16.mxu0 0
    %1158 = vmatmul.mubr.bf16.gmra.mxu0 %v1120
    %v1159 = vpop.f32.mrf.mxu0
    %v1160 = vadd.f32 %v1106, %v1159
    %v1161 = vpop.f32.mrf.mxu0
    %v1162 = vpop.f32.mrf.mxu0
    %v1163 = vadd.f32 %v1111, %v1162
    %v1164 = vpop.f32.mrf.mxu0
    %1165 = vdwg.mxu0
    %v1166 = vmax.f32 %v1160, 0.0
    %v1167 = vmax.f32 %v1163, 0.0
    %v1168 = vpack.c.bf16 %v1167, %v1166
    %v1169 = vld [vmem:[#allocation4] sm:$0xff]
    %v1170 = vld [vmem:[#allocation4 + $0x8] sm:$0xff]
    %v1171 = vld [vmem:[#allocation4 + $0x10] sm:$0xff]
    %v1172 = vld [vmem:[#allocation4 + $0x18] sm:$0xff]
    %v1173 = vld [vmem:[#allocation4 + $0x20] sm:$0xff]
    %v1174 = vld [vmem:[#allocation4 + $0x28] sm:$0xff]
    %v1175 = vld [vmem:[#allocation4 + $0x30] sm:$0xff]
    %v1176 = vld [vmem:[#allocation4 + $0x38] sm:$0xff]
    %v1177 = vld [vmem:[#allocation4 + $0x40] sm:$0xff]
    %v1178 = vld [vmem:[#allocation4 + $0x48] sm:$0xff]
    %v1179 = vld [vmem:[#allocation4 + $0x50] sm:$0xff]
    %v1180 = vld [vmem:[#allocation4 + $0x58] sm:$0xff]
    %v1181 = vld [vmem:[#allocation4 + $0x60] sm:$0xff]
    %v1182 = vld [vmem:[#allocation4 + $0x68] sm:$0xff]
    %v1183 = vld [vmem:[#allocation4 + $0x70] sm:$0xff]
    %v1184 = vld [vmem:[#allocation4 + $0x78] sm:$0xff]
    %v1185 = vld [vmem:[#allocation4 + $0x80] sm:$0xff]
    %v1186 = vld [vmem:[#allocation4 + $0x88] sm:$0xff]
    %v1187 = vld [vmem:[#allocation4 + $0x90] sm:$0xff]
    %v1188 = vld [vmem:[#allocation4 + $0x98] sm:$0xff]
    %v1189 = vld [vmem:[#allocation4 + $0xa0] sm:$0xff]
    %v1190 = vld [vmem:[#allocation4 + $0xa8] sm:$0xff]
    %v1191 = vld [vmem:[#allocation4 + $0xb0] sm:$0xff]
    %v1192 = vld [vmem:[#allocation4 + $0xb8] sm:$0xff]
    %v1193 = vld [vmem:[#allocation4 + $0xc0] sm:$0xff]
    %v1194 = vld [vmem:[#allocation4 + $0xc8] sm:$0xff]
    %v1195 = vld [vmem:[#allocation4 + $0xd0] sm:$0xff]
    %v1196 = vld [vmem:[#allocation4 + $0xd8] sm:$0xff]
    %v1197 = vld [vmem:[#allocation4 + $0xe0] sm:$0xff]
    %v1198 = vld [vmem:[#allocation4 + $0xe8] sm:$0xff]
    %v1199 = vld [vmem:[#allocation4 + $0xf0] sm:$0xff]
    %v1200 = vld [vmem:[#allocation4 + $0xf8] sm:$0xff]
    %v1233 = vunpack.c.l.b16 %v1169
    %v1234 = vunpack.c.h.b16 %v1169
    %v1235 = vunpack.c.l.b16 %v1170
    %v1236 = vunpack.c.h.b16 %v1170
    %v1237 = vunpack.c.l.b16 %v1171
    %v1238 = vunpack.c.h.b16 %v1171
    %v1239 = vunpack.c.l.b16 %v1172
    %v1240 = vunpack.c.h.b16 %v1172
    %v1241 = vunpack.c.l.b16 %v1173
    %v1242 = vunpack.c.h.b16 %v1173
    %v1243 = vunpack.c.l.b16 %v1174
    %v1244 = vunpack.c.h.b16 %v1174
    %v1245 = vunpack.c.l.b16 %v1175
    %v1246 = vunpack.c.h.b16 %v1175
    %v1247 = vunpack.c.l.b16 %v1176
    %v1248 = vunpack.c.h.b16 %v1176
    %v1249 = vunpack.c.l.b16 %v1177
    %v1250 = vunpack.c.h.b16 %v1177
    %v1251 = vunpack.c.l.b16 %v1178
    %v1252 = vunpack.c.h.b16 %v1178
    %v1253 = vunpack.c.l.b16 %v1179
    %v1254 = vunpack.c.h.b16 %v1179
    %v1255 = vunpack.c.l.b16 %v1180
    %v1256 = vunpack.c.h.b16 %v1180
    %v1257 = vunpack.c.l.b16 %v1181
    %v1258 = vunpack.c.h.b16 %v1181
    %v1259 = vunpack.c.l.b16 %v1182
    %v1260 = vunpack.c.h.b16 %v1182
    %v1261 = vunpack.c.l.b16 %v1183
    %v1262 = vunpack.c.h.b16 %v1183
    %v1263 = vunpack.c.l.b16 %v1184
    %v1264 = vunpack.c.h.b16 %v1184
    %v1265 = vunpack.c.l.b16 %v1185
    %v1266 = vunpack.c.h.b16 %v1185
    %v1267 = vunpack.c.l.b16 %v1186
    %v1268 = vunpack.c.h.b16 %v1186
    %v1269 = vunpack.c.l.b16 %v1187
    %v1270 = vunpack.c.h.b16 %v1187
    %v1271 = vunpack.c.l.b16 %v1188
    %v1272 = vunpack.c.h.b16 %v1188
    %v1273 = vunpack.c.l.b16 %v1189
    %v1274 = vunpack.c.h.b16 %v1189
    %v1275 = vunpack.c.l.b16 %v1190
    %v1276 = vunpack.c.h.b16 %v1190
    %v1277 = vunpack.c.l.b16 %v1191
    %v1278 = vunpack.c.h.b16 %v1191
    %v1279 = vunpack.c.l.b16 %v1192
    %v1280 = vunpack.c.h.b16 %v1192
    %v1281 = vunpack.c.l.b16 %v1193
    %v1282 = vunpack.c.h.b16 %v1193
    %v1283 = vunpack.c.l.b16 %v1194
    %v1284 = vunpack.c.h.b16 %v1194
    %v1285 = vunpack.c.l.b16 %v1195
    %v1286 = vunpack.c.h.b16 %v1195
    %v1287 = vunpack.c.l.b16 %v1196
    %v1288 = vunpack.c.h.b16 %v1196
    %v1289 = vunpack.c.l.b16 %v1197
    %v1290 = vunpack.c.h.b16 %v1197
    %v1291 = vunpack.c.l.b16 %v1198
    %v1292 = vunpack.c.h.b16 %v1198
    %v1293 = vunpack.c.l.b16 %v1199
    %v1294 = vunpack.c.h.b16 %v1199
    %v1295 = vunpack.c.l.b16 %v1200
    %v1296 = vunpack.c.h.b16 %v1200
    %v1297 = vpack.c.b16 %v1237, %v1233
    %v1298 = vpack.c.b16 %v1238, %v1234
    %v1299 = vpack.c.b16 %v1239, %v1235
    %v1300 = vpack.c.b16 %v1240, %v1236
    %v1301 = vpack.c.b16 %v1245, %v1241
    %v1302 = vpack.c.b16 %v1246, %v1242
    %v1303 = vpack.c.b16 %v1247, %v1243
    %v1304 = vpack.c.b16 %v1248, %v1244
    %v1305 = vpack.c.b16 %v1253, %v1249
    %v1306 = vpack.c.b16 %v1254, %v1250
    %v1307 = vpack.c.b16 %v1255, %v1251
    %v1308 = vpack.c.b16 %v1256, %v1252
    %v1309 = vpack.c.b16 %v1261, %v1257
    %v1310 = vpack.c.b16 %v1262, %v1258
    %v1311 = vpack.c.b16 %v1263, %v1259
    %v1312 = vpack.c.b16 %v1264, %v1260
    %v1313 = vpack.c.b16 %v1269, %v1265
    %v1314 = vpack.c.b16 %v1270, %v1266
    %v1315 = vpack.c.b16 %v1271, %v1267
    %v1316 = vpack.c.b16 %v1272, %v1268
    %v1317 = vpack.c.b16 %v1277, %v1273
    %v1318 = vpack.c.b16 %v1278, %v1274
    %v1319 = vpack.c.b16 %v1279, %v1275
    %v1320 = vpack.c.b16 %v1280, %v1276
    %v1321 = vpack.c.b16 %v1285, %v1281
    %v1322 = vpack.c.b16 %v1286, %v1282
    %v1323 = vpack.c.b16 %v1287, %v1283
    %v1324 = vpack.c.b16 %v1288, %v1284
    %v1325 = vpack.c.b16 %v1293, %v1289
    %v1326 = vpack.c.b16 %v1294, %v1290
    %v1327 = vpack.c.b16 %v1295, %v1291
    %v1328 = vpack.c.b16 %v1296, %v1292
    %1361 = vmatprep.subr.bf16.mxu0 %v1326
    %1362 = vmatpush1.bf16.msra.mxu0 %v1325
    %1363 = vmatprep.subr.bf16.mxu0 %v1322
    %1364 = vmatpush1.bf16.msra.mxu0 %v1321
    %1365 = vmatprep.subr.bf16.mxu0 %v1318
    %1366 = vmatpush1.bf16.msra.mxu0 %v1317
    %1367 = vmatprep.subr.bf16.mxu0 %v1314
    %1368 = vmatpush1.bf16.msra.mxu0 %v1313
    %1369 = vmatprep.subr.bf16.mxu0 %v1310
    %1370 = vmatpush1.bf16.msra.mxu0 %v1309
    %1371 = vmatprep.subr.bf16.mxu0 %v1306
    %1372 = vmatpush1.bf16.msra.mxu0 %v1305
    %1373 = vmatprep.subr.bf16.mxu0 %v1302
    %1374 = vmatpush1.bf16.msra.mxu0 %v1301
    %1375 = vmatprep.subr.bf16.mxu0 %v1298
    %1376 = vmatpush1.bf16.msra.mxu0 %v1297
    %1377 = vmatprep.subr.bf16.mxu0 0
    %1378 = vmatpush2.bf16.msra.mxu0 0
    %1379 = vmatprep.subr.bf16.mxu0 0
    %1380 = vmatpush2.bf16.msra.mxu0 0
    %1381 = vmatprep.subr.bf16.mxu0 0
    %1382 = vmatpush2.bf16.msra.mxu0 0
    %1383 = vmatprep.subr.bf16.mxu0 0
    %1384 = vmatpush2.bf16.msra.mxu0 0
    %1385 = vmatprep.subr.bf16.mxu0 0
    %1386 = vmatpush2.bf16.msra.mxu0 0
    %1387 = vmatprep.subr.bf16.mxu0 0
    %1388 = vmatpush2.bf16.msra.mxu0 0
    %1389 = vmatprep.subr.bf16.mxu0 0
    %1390 = vmatpush2.bf16.msra.mxu0 0
    %1391 = vmatprep.subr.bf16.mxu0 0
    %1392 = vmatpush2.bf16.msra.mxu0 0
    %1393 = vmatprep.mubr.bf16.mxu0 0
    %1394 = vmatmul.mubr.bf16.gmra.mxu0 %v1168
    %v1395 = vpop.f32.mrf.mxu0
    %v1396 = vadd.f32 0.0, %v1395
    %v1397 = vpop.f32.mrf.mxu0
    %v1398 = vadd.f32 0.0, %v1397
    %v1399 = vpop.f32.mrf.mxu0
    %v1400 = vadd.f32 0.0, %v1399
    %v1401 = vpop.f32.mrf.mxu0
    %v1402 = vadd.f32 0.0, %v1401
    %1403 = vdwg.mxu0
    %1404 = vmatprep.subr.bf16.mxu0 %v1328
    %1405 = vmatpush1.bf16.msra.mxu0 %v1327
    %1406 = vmatprep.subr.bf16.mxu0 %v1324
    %1407 = vmatpush1.bf16.msra.mxu0 %v1323
    %1408 = vmatprep.subr.bf16.mxu0 %v1320
    %1409 = vmatpush1.bf16.msra.mxu0 %v1319
    %1410 = vmatprep.subr.bf16.mxu0 %v1316
    %1411 = vmatpush1.bf16.msra.mxu0 %v1315
    %1412 = vmatprep.subr.bf16.mxu0 %v1312
    %1413 = vmatpush1.bf16.msra.mxu0 %v1311
    %1414 = vmatprep.subr.bf16.mxu0 %v1308
    %1415 = vmatpush1.bf16.msra.mxu0 %v1307
    %1416 = vmatprep.subr.bf16.mxu0 %v1304
    %1417 = vmatpush1.bf16.msra.mxu0 %v1303
    %1418 = vmatprep.subr.bf16.mxu0 %v1300
    %1419 = vmatpush1.bf16.msra.mxu0 %v1299
    %1420 = vmatprep.subr.bf16.mxu0 0
    %1421 = vmatpush2.bf16.msra.mxu0 0
    %1422 = vmatprep.subr.bf16.mxu0 0
    %1423 = vmatpush2.bf16.msra.mxu0 0
    %1424 = vmatprep.subr.bf16.mxu0 0
    %1425 = vmatpush2.bf16.msra.mxu0 0
    %1426 = vmatprep.subr.bf16.mxu0 0
    %1427 = vmatpush2.bf16.msra.mxu0 0
    %1428 = vmatprep.subr.bf16.mxu0 0
    %1429 = vmatpush2.bf16.msra.mxu0 0
    %1430 = vmatprep.subr.bf16.mxu0 0
    %1431 = vmatpush2.bf16.msra.mxu0 0
    %1432 = vmatprep.subr.bf16.mxu0 0
    %1433 = vmatpush2.bf16.msra.mxu0 0
    %1434 = vmatprep.subr.bf16.mxu0 0
    %1435 = vmatpush2.bf16.msra.mxu0 0
    %1436 = vmatprep.mubr.bf16.mxu0 0
    %1437 = vmatmul.mubr.bf16.gmra.mxu0 %v1168
    %v1438 = vpop.f32.mrf.mxu0
    %v1439 = vadd.f32 0.0, %v1438
    %v1440 = vpop.f32.mrf.mxu0
    %v1441 = vadd.f32 0.0, %v1440
    %v1442 = vpop.f32.mrf.mxu0
    %v1443 = vadd.f32 0.0, %v1442
    %v1444 = vpop.f32.mrf.mxu0
    %v1445 = vadd.f32 0.0, %v1444
    %1446 = vdwg.mxu0
    %1447 = vrot.lane.b32.xlu0 %v1396, 17
    %v1448 = vpop.permute.xlu0 %1447
    %1449 = vrot.lane.b32.xlu0 %v1400, 17
    %v1450 = vpop.permute.xlu0 %1449
    %1451 = vrot.lane.b32.xlu0 %v622, 17
    %v1452 = vpop.permute.xlu0 %1451
    %1453 = vrot.lane.b32.xlu0 %v1398, 17
    %v1454 = vpop.permute.xlu0 %1453
    %1455 = vrot.lane.b32.xlu0 %v1402, 17
    %v1456 = vpop.permute.xlu0 %1455
    %1457 = vrot.lane.b32.xlu0 %v623, 17
    %v1458 = vpop.permute.xlu0 %1457
    %1459 = vrot.lane.b32.xlu0 %v1439, 17
    %v1460 = vpop.permute.xlu0 %1459
    %1461 = vrot.lane.b32.xlu0 %v1443, 17
    %v1462 = vpop.permute.xlu0 %1461
    %1463 = vrot.lane.b32.xlu0 %v624, 17
    %v1464 = vpop.permute.xlu0 %1463
    %1465 = vrot.lane.b32.xlu0 %v1441, 17
    %v1466 = vpop.permute.xlu0 %1465
    %1467 = vrot.lane.b32.xlu0 %v1445, 17
    %v1468 = vpop.permute.xlu0 %1467
    %1469 = vrot.lane.b32.xlu0 %v625, 17
    %v1470 = vpop.permute.xlu0 %1469
    %v1471 = vsel %vm97, %v1460, %v1466
    %v1472 = vsel %vm97, %v1462, %v1468
    %v1473 = vsel %vm97, %v1464, %v1470
    %v1474 = vsel %vm97, %v1454, %v1460
    %v1475 = vsel %vm97, %v1456, %v1462
    %v1476 = vsel %vm97, %v1458, %v1464
    %v1477 = vsel %vm97, %v1448, %v1454
    %v1478 = vsel %vm97, %v1450, %v1456
    %v1479 = vsel %vm97, %v1452, %v1458
    %v1480 = vsel %vm97, %v1466, %v1448
    %v1481 = vsel %vm97, %v1468, %v1450
    %v1482 = vsel %vm97, %v1470, %v1452
    %v1483 = vmul.f32 %v1480, %v107
    %v1484 = vmul.f32 %v1477, %v111
    %v1485 = vmul.f32 %v1474, %v115
    %v1486 = vmul.f32 %v1471, %v119
    %v1487 = vmul.f32 %v1481, %v107
    %v1488 = vmul.f32 %v1478, %v111
    %v1489 = vmul.f32 %v1475, %v115
    %v1490 = vmul.f32 %v1472, %v119
    %v1491 = vmul.f32 %v1482, %v107
    %v1492 = vmul.f32 %v1479, %v111
    %v1493 = vmul.f32 %v1476, %v115
    %v1494 = vmul.f32 %v1473, %v119
    %1495 = vrot.lane.b32.xlu0 %v1396, 16
    %v1496 = vpop.permute.xlu0 %1495
    %1497 = vrot.lane.b32.xlu0 %v1400, 16
    %v1498 = vpop.permute.xlu0 %1497
    %1499 = vrot.lane.b32.xlu0 %v622, 16
    %v1500 = vpop.permute.xlu0 %1499
    %1501 = vrot.lane.b32.xlu0 %v1398, 16
    %v1502 = vpop.permute.xlu0 %1501
    %1503 = vrot.lane.b32.xlu0 %v1402, 16
    %v1504 = vpop.permute.xlu0 %1503
    %1505 = vrot.lane.b32.xlu0 %v623, 16
    %v1506 = vpop.permute.xlu0 %1505
    %1507 = vrot.lane.b32.xlu0 %v1439, 16
    %v1508 = vpop.permute.xlu0 %1507
    %1509 = vrot.lane.b32.xlu0 %v1443, 16
    %v1510 = vpop.permute.xlu0 %1509
    %1511 = vrot.lane.b32.xlu0 %v624, 16
    %v1512 = vpop.permute.xlu0 %1511
    %1513 = vrot.lane.b32.xlu0 %v1441, 16
    %v1514 = vpop.permute.xlu0 %1513
    %1515 = vrot.lane.b32.xlu0 %v1445, 16
    %v1516 = vpop.permute.xlu0 %1515
    %1517 = vrot.lane.b32.xlu0 %v625, 16
    %v1518 = vpop.permute.xlu0 %1517
    %v1519 = vsel %vm136, %v1508, %v1514
    %v1520 = vsel %vm136, %v1510, %v1516
    %v1521 = vsel %vm136, %v1512, %v1518
    %v1522 = vsel %vm136, %v1502, %v1508
    %v1523 = vsel %vm136, %v1504, %v1510
    %v1524 = vsel %vm136, %v1506, %v1512
    %v1525 = vsel %vm136, %v1496, %v1502
    %v1526 = vsel %vm136, %v1498, %v1504
    %v1527 = vsel %vm136, %v1500, %v1506
    %v1528 = vsel %vm136, %v1514, %v1496
    %v1529 = vsel %vm136, %v1516, %v1498
    %v1530 = vsel %vm136, %v1518, %v1500
    %v1531 = vmul.f32 %v1528, %v147
    %v1532 = vmul.f32 %v1525, %v151
    %v1533 = vmul.f32 %v1522, %v155
    %v1534 = vmul.f32 %v1519, %v159
    %v1535 = vmul.f32 %v1529, %v147
    %v1536 = vmul.f32 %v1526, %v151
    %v1537 = vmul.f32 %v1523, %v155
    %v1538 = vmul.f32 %v1520, %v159
    %v1539 = vmul.f32 %v1530, %v147
    %v1540 = vmul.f32 %v1527, %v151
    %v1541 = vmul.f32 %v1524, %v155
    %v1542 = vmul.f32 %v1521, %v159
    %1543 = vrot.lane.b32.xlu0 %v1396, 15
    %v1544 = vpop.permute.xlu0 %1543
    %1545 = vrot.lane.b32.xlu0 %v1400, 15
    %v1546 = vpop.permute.xlu0 %1545
    %1547 = vrot.lane.b32.xlu0 %v622, 15
    %v1548 = vpop.permute.xlu0 %1547
    %1549 = vrot.lane.b32.xlu0 %v1398, 15
    %v1550 = vpop.permute.xlu0 %1549
    %1551 = vrot.lane.b32.xlu0 %v1402, 15
    %v1552 = vpop.permute.xlu0 %1551
    %1553 = vrot.lane.b32.xlu0 %v623, 15
    %v1554 = vpop.permute.xlu0 %1553
    %1555 = vrot.lane.b32.xlu0 %v1439, 15
    %v1556 = vpop.permute.xlu0 %1555
    %1557 = vrot.lane.b32.xlu0 %v1443, 15
    %v1558 = vpop.permute.xlu0 %1557
    %1559 = vrot.lane.b32.xlu0 %v624, 15
    %v1560 = vpop.permute.xlu0 %1559
    %1561 = vrot.lane.b32.xlu0 %v1441, 15
    %v1562 = vpop.permute.xlu0 %1561
    %1563 = vrot.lane.b32.xlu0 %v1445, 15
    %v1564 = vpop.permute.xlu0 %1563
    %1565 = vrot.lane.b32.xlu0 %v625, 15
    %v1566 = vpop.permute.xlu0 %1565
    %v1567 = vsel %vm176, %v1556, %v1562
    %v1568 = vsel %vm176, %v1558, %v1564
    %v1569 = vsel %vm176, %v1560, %v1566
    %v1570 = vsel %vm176, %v1550, %v1556
    %v1571 = vsel %vm176, %v1552, %v1558
    %v1572 = vsel %vm176, %v1554, %v1560
    %v1573 = vsel %vm176, %v1544, %v1550
    %v1574 = vsel %vm176, %v1546, %v1552
    %v1575 = vsel %vm176, %v1548, %v1554
    %v1576 = vsel %vm176, %v1562, %v1544
    %v1577 = vsel %vm176, %v1564, %v1546
    %v1578 = vsel %vm176, %v1566, %v1548
    %v1579 = vmul.f32 %v1576, %v187
    %v1580 = vmul.f32 %v1573, %v191
    %v1581 = vmul.f32 %v1570, %v195
    %v1582 = vmul.f32 %v1567, %v199
    %v1583 = vmul.f32 %v1577, %v187
    %v1584 = vmul.f32 %v1574, %v191
    %v1585 = vmul.f32 %v1571, %v195
    %v1586 = vmul.f32 %v1568, %v199
    %v1587 = vmul.f32 %v1578, %v187
    %v1588 = vmul.f32 %v1575, %v191
    %v1589 = vmul.f32 %v1572, %v195
    %v1590 = vmul.f32 %v1569, %v199
    %1591 = vrot.lane.b32.xlu0 %v1396, 1
    %v1592 = vpop.permute.xlu0 %1591
    %1593 = vrot.lane.b32.xlu0 %v1400, 1
    %v1594 = vpop.permute.xlu0 %1593
    %1595 = vrot.lane.b32.xlu0 %v622, 1
    %v1596 = vpop.permute.xlu0 %1595
    %1597 = vrot.lane.b32.xlu0 %v1398, 1
    %v1598 = vpop.permute.xlu0 %1597
    %1599 = vrot.lane.b32.xlu0 %v1402, 1
    %v1600 = vpop.permute.xlu0 %1599
    %1601 = vrot.lane.b32.xlu0 %v623, 1
    %v1602 = vpop.permute.xlu0 %1601
    %1603 = vrot.lane.b32.xlu0 %v1439, 1
    %v1604 = vpop.permute.xlu0 %1603
    %1605 = vrot.lane.b32.xlu0 %v1443, 1
    %v1606 = vpop.permute.xlu0 %1605
    %1607 = vrot.lane.b32.xlu0 %v624, 1
    %v1608 = vpop.permute.xlu0 %1607
    %1609 = vrot.lane.b32.xlu0 %v1441, 1
    %v1610 = vpop.permute.xlu0 %1609
    %1611 = vrot.lane.b32.xlu0 %v1445, 1
    %v1612 = vpop.permute.xlu0 %1611
    %1613 = vrot.lane.b32.xlu0 %v625, 1
    %v1614 = vpop.permute.xlu0 %1613
    %v1615 = vsel %vm216, %v1604, %v1610
    %v1616 = vsel %vm216, %v1606, %v1612
    %v1617 = vsel %vm216, %v1608, %v1614
    %v1618 = vsel %vm216, %v1598, %v1604
    %v1619 = vsel %vm216, %v1600, %v1606
    %v1620 = vsel %vm216, %v1602, %v1608
    %v1621 = vsel %vm216, %v1592, %v1598
    %v1622 = vsel %vm216, %v1594, %v1600
    %v1623 = vsel %vm216, %v1596, %v1602
    %v1624 = vsel %vm216, %v1610, %v1592
    %v1625 = vsel %vm216, %v1612, %v1594
    %v1626 = vsel %vm216, %v1614, %v1596
    %v1627 = vmul.f32 %v1624, %v227
    %v1628 = vmul.f32 %v1621, %v231
    %v1629 = vmul.f32 %v1618, %v235
    %v1630 = vmul.f32 %v1615, %v239
    %v1631 = vmul.f32 %v1625, %v227
    %v1632 = vmul.f32 %v1622, %v231
    %v1633 = vmul.f32 %v1619, %v235
    %v1634 = vmul.f32 %v1616, %v239
    %v1635 = vmul.f32 %v1626, %v227
    %v1636 = vmul.f32 %v1623, %v231
    %v1637 = vmul.f32 %v1620, %v235
    %v1638 = vmul.f32 %v1617, %v239
    %v1643 = vmul.f32 %v1396, %v254
    %v1644 = vmul.f32 %v1398, %v258
    %v1645 = vmul.f32 %v1439, %v262
    %v1646 = vmul.f32 %v1441, %v266
    %v1647 = vmul.f32 %v1400, %v254
    %v1648 = vmul.f32 %v1402, %v258
    %v1649 = vmul.f32 %v1443, %v262
    %v1650 = vmul.f32 %v1445, %v266
    %v1651 = vmul.f32 %v622, %v254
    %v1652 = vmul.f32 %v623, %v258
    %v1653 = vmul.f32 %v624, %v262
    %v1654 = vmul.f32 %v625, %v266
    %1655 = vrot.lane.b32.xlu0 %v1396, 127
    %v1656 = vpop.permute.xlu0 %1655
    %1657 = vrot.lane.b32.xlu0 %v1400, 127
    %v1658 = vpop.permute.xlu0 %1657
    %1659 = vrot.lane.b32.xlu0 %v1398, 127
    %v1660 = vpop.permute.xlu0 %1659
    %1661 = vrot.lane.b32.xlu0 %v1402, 127
    %v1662 = vpop.permute.xlu0 %1661
    %1663 = vrot.lane.b32.xlu0 %v1439, 127
    %v1664 = vpop.permute.xlu0 %1663
    %1665 = vrot.lane.b32.xlu0 %v1443, 127
    %v1666 = vpop.permute.xlu0 %1665
    %1667 = vrot.lane.b32.xlu0 %v1441, 127
    %v1668 = vpop.permute.xlu0 %1667
    %1669 = vrot.lane.b32.xlu0 %v1445, 127
    %v1670 = vpop.permute.xlu0 %1669
    %v1671 = vsel %vm281, %v1664, %v1668
    %v1672 = vsel %vm281, %v1666, %v1670
    %v1673 = vsel %vm281, %v1660, %v1664
    %v1674 = vsel %vm281, %v1662, %v1666
    %v1675 = vsel %vm281, %v1656, %v1660
    %v1676 = vsel %vm281, %v1658, %v1662
    %v1677 = vsel %vm281, %v1668, %v1656
    %v1678 = vsel %vm281, %v1670, %v1658
    %v1679 = vmul.f32 %v1675, %v292
    %v1680 = vmul.f32 %v1673, %v296
    %v1681 = vmul.f32 %v1671, %v300
    %v1682 = vmul.f32 %v1677, %v304
    %v1683 = vmul.f32 %v1676, %v292
    %v1684 = vmul.f32 %v1674, %v296
    %v1685 = vmul.f32 %v1672, %v300
    %v1686 = vmul.f32 %v1678, %v304
    %v1687 = vmul.f32 %v636, %v292
    %v1688 = vmul.f32 %v635, %v296
    %v1689 = vmul.f32 %v634, %v300
    %v1690 = vmul.f32 %v637, %v304
    %1691 = vrot.lane.b32.xlu0 %v1396, 113
    %v1692 = vpop.permute.xlu0 %1691
    %1693 = vrot.lane.b32.xlu0 %v1400, 113
    %v1694 = vpop.permute.xlu0 %1693
    %1695 = vrot.lane.b32.xlu0 %v622, 113
    %v1696 = vpop.permute.xlu0 %1695
    %1697 = vrot.lane.b32.xlu0 %v1398, 113
    %v1698 = vpop.permute.xlu0 %1697
    %1699 = vrot.lane.b32.xlu0 %v1402, 113
    %v1700 = vpop.permute.xlu0 %1699
    %1701 = vrot.lane.b32.xlu0 %v623, 113
    %v1702 = vpop.permute.xlu0 %1701
    %1703 = vrot.lane.b32.xlu0 %v1439, 113
    %v1704 = vpop.permute.xlu0 %1703
    %1705 = vrot.lane.b32.xlu0 %v1443, 113
    %v1706 = vpop.permute.xlu0 %1705
    %1707 = vrot.lane.b32.xlu0 %v624, 113
    %v1708 = vpop.permute.xlu0 %1707
    %1709 = vrot.lane.b32.xlu0 %v1441, 113
    %v1710 = vpop.permute.xlu0 %1709
    %1711 = vrot.lane.b32.xlu0 %v1445, 113
    %v1712 = vpop.permute.xlu0 %1711
    %1713 = vrot.lane.b32.xlu0 %v625, 113
    %v1714 = vpop.permute.xlu0 %1713
    %v1715 = vsel %vm321, %v1704, %v1710
    %v1716 = vsel %vm321, %v1706, %v1712
    %v1717 = vsel %vm321, %v1708, %v1714
    %v1718 = vsel %vm321, %v1698, %v1704
    %v1719 = vsel %vm321, %v1700, %v1706
    %v1720 = vsel %vm321, %v1702, %v1708
    %v1721 = vsel %vm321, %v1692, %v1698
    %v1722 = vsel %vm321, %v1694, %v1700
    %v1723 = vsel %vm321, %v1696, %v1702
    %v1724 = vsel %vm321, %v1710, %v1692
    %v1725 = vsel %vm321, %v1712, %v1694
    %v1726 = vsel %vm321, %v1714, %v1696
    %v1727 = vmul.f32 %v1721, %v332
    %v1728 = vmul.f32 %v1718, %v336
    %v1729 = vmul.f32 %v1715, %v340
    %v1730 = vmul.f32 %v1724, %v344
    %v1731 = vmul.f32 %v1722, %v332
    %v1732 = vmul.f32 %v1719, %v336
    %v1733 = vmul.f32 %v1716, %v340
    %v1734 = vmul.f32 %v1725, %v344
    %v1735 = vmul.f32 %v1723, %v332
    %v1736 = vmul.f32 %v1720, %v336
    %v1737 = vmul.f32 %v1717, %v340
    %v1738 = vmul.f32 %v1726, %v344
    %1739 = vrot.lane.b32.xlu0 %v1396, 112
    %v1740 = vpop.permute.xlu0 %1739
    %1741 = vrot.lane.b32.xlu0 %v1400, 112
    %v1742 = vpop.permute.xlu0 %1741
    %1743 = vrot.lane.b32.xlu0 %v622, 112
    %v1744 = vpop.permute.xlu0 %1743
    %1745 = vrot.lane.b32.xlu0 %v1398, 112
    %v1746 = vpop.permute.xlu0 %1745
    %1747 = vrot.lane.b32.xlu0 %v1402, 112
    %v1748 = vpop.permute.xlu0 %1747
    %1749 = vrot.lane.b32.xlu0 %v623, 112
    %v1750 = vpop.permute.xlu0 %1749
    %1751 = vrot.lane.b32.xlu0 %v1439, 112
    %v1752 = vpop.permute.xlu0 %1751
    %1753 = vrot.lane.b32.xlu0 %v1443, 112
    %v1754 = vpop.permute.xlu0 %1753
    %1755 = vrot.lane.b32.xlu0 %v624, 112
    %v1756 = vpop.permute.xlu0 %1755
    %1757 = vrot.lane.b32.xlu0 %v1441, 112
    %v1758 = vpop.permute.xlu0 %1757
    %1759 = vrot.lane.b32.xlu0 %v1445, 112
    %v1760 = vpop.permute.xlu0 %1759
    %1761 = vrot.lane.b32.xlu0 %v625, 112
    %v1762 = vpop.permute.xlu0 %1761
    %v1763 = vsel %vm361, %v1752, %v1758
    %v1764 = vsel %vm361, %v1754, %v1760
    %v1765 = vsel %vm361, %v1756, %v1762
    %v1766 = vsel %vm361, %v1746, %v1752
    %v1767 = vsel %vm361, %v1748, %v1754
    %v1768 = vsel %vm361, %v1750, %v1756
    %v1769 = vsel %vm361, %v1740, %v1746
    %v1770 = vsel %vm361, %v1742, %v1748
    %v1771 = vsel %vm361, %v1744, %v1750
    %v1772 = vsel %vm361, %v1758, %v1740
    %v1773 = vsel %vm361, %v1760, %v1742
    %v1774 = vsel %vm361, %v1762, %v1744
    %v1775 = vmul.f32 %v1769, %v372
    %v1776 = vmul.f32 %v1766, %v376
    %v1777 = vmul.f32 %v1763, %v380
    %v1778 = vmul.f32 %v1772, %v384
    %v1779 = vmul.f32 %v1770, %v372
    %v1780 = vmul.f32 %v1767, %v376
    %v1781 = vmul.f32 %v1764, %v380
    %v1782 = vmul.f32 %v1773, %v384
    %v1783 = vmul.f32 %v1771, %v372
    %v1784 = vmul.f32 %v1768, %v376
    %v1785 = vmul.f32 %v1765, %v380
    %v1786 = vmul.f32 %v1774, %v384
    %1787 = vrot.lane.b32.xlu0 %v1396, 111
    %v1788 = vpop.permute.xlu0 %1787
    %1789 = vrot.lane.b32.xlu0 %v1400, 111
    %v1790 = vpop.permute.xlu0 %1789
    %1791 = vrot.lane.b32.xlu0 %v622, 111
    %v1792 = vpop.permute.xlu0 %1791
    %1793 = vrot.lane.b32.xlu0 %v1398, 111
    %v1794 = vpop.permute.xlu0 %1793
    %1795 = vrot.lane.b32.xlu0 %v1402, 111
    %v1796 = vpop.permute.xlu0 %1795
    %1797 = vrot.lane.b32.xlu0 %v623, 111
    %v1798 = vpop.permute.xlu0 %1797
    %1799 = vrot.lane.b32.xlu0 %v1439, 111
    %v1800 = vpop.permute.xlu0 %1799
    %1801 = vrot.lane.b32.xlu0 %v1443, 111
    %v1802 = vpop.permute.xlu0 %1801
    %1803 = vrot.lane.b32.xlu0 %v624, 111
    %v1804 = vpop.permute.xlu0 %1803
    %1805 = vrot.lane.b32.xlu0 %v1441, 111
    %v1806 = vpop.permute.xlu0 %1805
    %1807 = vrot.lane.b32.xlu0 %v1445, 111
    %v1808 = vpop.permute.xlu0 %1807
    %1809 = vrot.lane.b32.xlu0 %v625, 111
    %v1810 = vpop.permute.xlu0 %1809
    %v1811 = vsel %vm401, %v1800, %v1806
    %v1812 = vsel %vm401, %v1802, %v1808
    %v1813 = vsel %vm401, %v1804, %v1810
    %v1814 = vsel %vm401, %v1794, %v1800
    %v1815 = vsel %vm401, %v1796, %v1802
    %v1816 = vsel %vm401, %v1798, %v1804
    %v1817 = vsel %vm401, %v1788, %v1794
    %v1818 = vsel %vm401, %v1790, %v1796
    %v1819 = vsel %vm401, %v1792, %v1798
    %v1820 = vsel %vm401, %v1806, %v1788
    %v1821 = vsel %vm401, %v1808, %v1790
    %v1822 = vsel %vm401, %v1810, %v1792
    %v1823 = vmul.f32 %v1817, %v412
    %v1824 = vmul.f32 %v1814, %v416
    %v1825 = vmul.f32 %v1811, %v420
    %v1826 = vmul.f32 %v1820, %v424
    %v1827 = vmul.f32 %v1818, %v412
    %v1828 = vmul.f32 %v1815, %v416
    %v1829 = vmul.f32 %v1812, %v420
    %v1830 = vmul.f32 %v1821, %v424
    %v1831 = vmul.f32 %v1819, %v412
    %v1832 = vmul.f32 %v1816, %v416
    %v1833 = vmul.f32 %v1813, %v420
    %v1834 = vmul.f32 %v1822, %v424
    %v1835 = vpack.c.bf16 %v1487, %v1483
    %v1836 = vpack.c.bf16 %v1488, %v1484
    %v1837 = vpack.c.bf16 %v1489, %v1485
    %v1838 = vpack.c.bf16 %v1490, %v1486
    %v1839 = vpack.c.bf16 %v1531, %v1491
    %v1840 = vpack.c.bf16 %v1532, %v1492
    %v1841 = vpack.c.bf16 %v1533, %v1493
    %v1842 = vpack.c.bf16 %v1534, %v1494
    %v1843 = vpack.c.bf16 %v1539, %v1535
    %v1844 = vpack.c.bf16 %v1540, %v1536
    %v1845 = vpack.c.bf16 %v1541, %v1537
    %v1846 = vpack.c.bf16 %v1542, %v1538
    %v1847 = vpack.c.bf16 %v1583, %v1579
    %v1848 = vpack.c.bf16 %v1584, %v1580
    %v1849 = vpack.c.bf16 %v1585, %v1581
    %v1850 = vpack.c.bf16 %v1586, %v1582
    %v1851 = vpack.c.bf16 %v1627, %v1587
    %v1852 = vpack.c.bf16 %v1628, %v1588
    %v1853 = vpack.c.bf16 %v1629, %v1589
    %v1854 = vpack.c.bf16 %v1630, %v1590
    %v1855 = vpack.c.bf16 %v1635, %v1631
    %v1856 = vpack.c.bf16 %v1636, %v1632
    %v1857 = vpack.c.bf16 %v1637, %v1633
    %v1858 = vpack.c.bf16 %v1638, %v1634
    %v1859 = vpack.c.bf16 %v1647, %v1643
    %v1860 = vpack.c.bf16 %v1648, %v1644
    %v1861 = vpack.c.bf16 %v1649, %v1645
    %v1862 = vpack.c.bf16 %v1650, %v1646
    %v1863 = vpack.c.bf16 %v1679, %v1651
    %v1864 = vpack.c.bf16 %v1680, %v1652
    %v1865 = vpack.c.bf16 %v1681, %v1653
    %v1866 = vpack.c.bf16 %v1682, %v1654
    %v1867 = vpack.c.bf16 %v1687, %v1683
    %v1868 = vpack.c.bf16 %v1688, %v1684
    %v1869 = vpack.c.bf16 %v1689, %v1685
    %v1870 = vpack.c.bf16 %v1690, %v1686
    %v1871 = vpack.c.bf16 %v1731, %v1727
    %v1872 = vpack.c.bf16 %v1732, %v1728
    %v1873 = vpack.c.bf16 %v1733, %v1729
    %v1874 = vpack.c.bf16 %v1734, %v1730
    %v1875 = vpack.c.bf16 %v1775, %v1735
    %v1876 = vpack.c.bf16 %v1776, %v1736
    %v1877 = vpack.c.bf16 %v1777, %v1737
    %v1878 = vpack.c.bf16 %v1778, %v1738
    %v1879 = vpack.c.bf16 %v1783, %v1779
    %v1880 = vpack.c.bf16 %v1784, %v1780
    %v1881 = vpack.c.bf16 %v1785, %v1781
    %v1882 = vpack.c.bf16 %v1786, %v1782
    %v1883 = vpack.c.bf16 %v1827, %v1823
    %v1884 = vpack.c.bf16 %v1828, %v1824
    %v1885 = vpack.c.bf16 %v1829, %v1825
    %v1886 = vpack.c.bf16 %v1830, %v1826
    %v1887 = vpack.c.bf16 %v1831, %v1831
    %v1888 = vpack.c.bf16 %v1832, %v1832
    %v1889 = vpack.c.bf16 %v1833, %v1833
    %v1890 = vpack.c.bf16 %v1834, %v1834
    %v1891 = vld [vmem:[%s9] sm:$0xff]
    %v1892 = vld [vmem:[%s9 + $0x8] sm:$0xff]
    %v1893 = vld [vmem:[%s10] sm:$0xff]
    %v1894 = vld [vmem:[%s10 + $0x8] sm:$0xff]
    %1896 = vset.pattern.permute.xlu0 0
    %1897 = vperm.xlu0 %1896, %v1893
    %v1898 = vpop.permute.xlu0 %1897
    %1901 = vset.pattern.permute.xlu0 0
    %1902 = vperm.xlu0 %1901, %v1894
    %v1903 = vpop.permute.xlu0 %1902
    %v1907 = vunpack.c.l.b16 %v1891
    %v1908 = vunpack.c.h.b16 %v1891
    %v1909 = vunpack.c.l.b16 %v1892
    %v1910 = vunpack.c.h.b16 %v1892
    %v1911 = vpack.c.b16 %v1909, %v1907
    %v1912 = vpack.c.b16 %v1910, %v1908
    %vm1914 = vcmask 719872
    %v1916 = vsel %vm1914, %v1912, 0
    %v1919 = vsel %vm487, %v1887, 0
    %v1922 = vsel %vm487, %v1888, 0
    %v1925 = vsel %vm487, %v1889, 0
    %v1928 = vsel %vm487, %v1890, 0
    %1930 = vmatprep.subr.bf16.mxu0 %v1864
    %1931 = vmatpush1.bf16.msra.mxu0 %v1863
    %1932 = vmatprep.subr.bf16.mxu0 %v1860
    %1933 = vmatpush1.bf16.msra.mxu0 %v1859
    %1934 = vmatprep.subr.bf16.mxu0 %v1856
    %1935 = vmatpush1.bf16.msra.mxu0 %v1855
    %1936 = vmatprep.subr.bf16.mxu0 %v1852
    %1937 = vmatpush1.bf16.msra.mxu0 %v1851
    %1938 = vmatprep.subr.bf16.mxu0 %v1848
    %1939 = vmatpush1.bf16.msra.mxu0 %v1847
    %1940 = vmatprep.subr.bf16.mxu0 %v1844
    %1941 = vmatpush1.bf16.msra.mxu0 %v1843
    %1942 = vmatprep.subr.bf16.mxu0 %v1840
    %1943 = vmatpush1.bf16.msra.mxu0 %v1839
    %1944 = vmatprep.subr.bf16.mxu0 %v1836
    %1945 = vmatpush1.bf16.msra.mxu0 %v1835
    %1946 = vmatprep.subr.bf16.mxu0 0
    %1947 = vmatpush2.bf16.msra.mxu0 0
    %1948 = vmatprep.subr.bf16.mxu0 0
    %1949 = vmatpush2.bf16.msra.mxu0 0
    %1950 = vmatprep.subr.bf16.mxu0 %v1922
    %1951 = vmatpush2.bf16.msra.mxu0 %v1919
    %1952 = vmatprep.subr.bf16.mxu0 %v1884
    %1953 = vmatpush2.bf16.msra.mxu0 %v1883
    %1954 = vmatprep.subr.bf16.mxu0 %v1880
    %1955 = vmatpush2.bf16.msra.mxu0 %v1879
    %1956 = vmatprep.subr.bf16.mxu0 %v1876
    %1957 = vmatpush2.bf16.msra.mxu0 %v1875
    %1958 = vmatprep.subr.bf16.mxu0 %v1872
    %1959 = vmatpush2.bf16.msra.mxu0 %v1871
    %1960 = vmatprep.subr.bf16.mxu0 %v1868
    %1961 = vmatpush2.bf16.msra.mxu0 %v1867
    %1962 = vmatprep.mubr.bf16.mxu0 %v1916
    %1963 = vmatmul.mubr.bf16.gmra.mxu0 %v1911
    %v1964 = vpop.f32.mrf.mxu0
    %v1965 = vadd.f32 %v1898, %v1964
    %v1966 = vpop.f32.mrf.mxu0
    %v1967 = vadd.f32 %v1898, %v1966
    %v1968 = vpop.f32.mrf.mxu0
    %v1969 = vadd.f32 %v1903, %v1968
    %v1970 = vpop.f32.mrf.mxu0
    %v1971 = vadd.f32 %v1903, %v1970
    %1972 = vdwg.mxu0
    %1973 = vmatprep.subr.bf16.mxu0 %v1866
    %1974 = vmatpush1.bf16.msra.mxu0 %v1865
    %1975 = vmatprep.subr.bf16.mxu0 %v1862
    %1976 = vmatpush1.bf16.msra.mxu0 %v1861
    %1977 = vmatprep.subr.bf16.mxu0 %v1858
    %1978 = vmatpush1.bf16.msra.mxu0 %v1857
    %1979 = vmatprep.subr.bf16.mxu0 %v1854
    %1980 = vmatpush1.bf16.msra.mxu0 %v1853
    %1981 = vmatprep.subr.bf16.mxu0 %v1850
    %1982 = vmatpush1.bf16.msra.mxu0 %v1849
    %1983 = vmatprep.subr.bf16.mxu0 %v1846
    %1984 = vmatpush1.bf16.msra.mxu0 %v1845
    %1985 = vmatprep.subr.bf16.mxu0 %v1842
    %1986 = vmatpush1.bf16.msra.mxu0 %v1841
    %1987 = vmatprep.subr.bf16.mxu0 %v1838
    %1988 = vmatpush1.bf16.msra.mxu0 %v1837
    %1989 = vmatprep.subr.bf16.mxu0 0
    %1990 = vmatpush2.bf16.msra.mxu0 0
    %1991 = vmatprep.subr.bf16.mxu0 0
    %1992 = vmatpush2.bf16.msra.mxu0 0
    %1993 = vmatprep.subr.bf16.mxu0 %v1928
    %1994 = vmatpush2.bf16.msra.mxu0 %v1925
    %1995 = vmatprep.subr.bf16.mxu0 %v1886
    %1996 = vmatpush2.bf16.msra.mxu0 %v1885
    %1997 = vmatprep.subr.bf16.mxu0 %v1882
    %1998 = vmatpush2.bf16.msra.mxu0 %v1881
    %1999 = vmatprep.subr.bf16.mxu0 %v1878
    %2000 = vmatpush2.bf16.msra.mxu0 %v1877
    %2001 = vmatprep.subr.bf16.mxu0 %v1874
    %2002 = vmatpush2.bf16.msra.mxu0 %v1873
    %2003 = vmatprep.subr.bf16.mxu0 %v1870
    %2004 = vmatpush2.bf16.msra.mxu0 %v1869
    %2005 = vmatprep.mubr.bf16.mxu0 %v1916
    %2006 = vmatmul.mubr.bf16.gmra.mxu0 %v1911
    %v2007 = vpop.f32.mrf.mxu0
    %v2008 = vadd.f32 %v1898, %v2007
    %v2009 = vpop.f32.mrf.mxu0
    %v2010 = vadd.f32 %v1898, %v2009
    %v2011 = vpop.f32.mrf.mxu0
    %v2012 = vadd.f32 %v1903, %v2011
    %v2013 = vpop.f32.mrf.mxu0
    %v2014 = vadd.f32 %v1903, %v2013
    %2015 = vdwg.mxu0
    %v2016 = vmax.f32 %v1965, 0.0
    %v2017 = vmax.f32 %v1967, 0.0
    %v2018 = vmax.f32 %v2008, 0.0
    %v2019 = vmax.f32 %v2010, 0.0
    %v2020 = vmax.f32 %v1969, 0.0
    %v2021 = vmax.f32 %v1971, 0.0
    %v2022 = vmax.f32 %v2012, 0.0
    %v2023 = vmax.f32 %v2014, 0.0
    %2024 = vrot.lane.b32.xlu0 %v2016, 17
    %v2025 = vpop.permute.xlu0 %2024
    %2026 = vrot.lane.b32.xlu0 %v2020, 17
    %v2027 = vpop.permute.xlu0 %2026
    %2028 = vrot.lane.b32.xlu0 %v2017, 17
    %v2029 = vpop.permute.xlu0 %2028
    %2030 = vrot.lane.b32.xlu0 %v2021, 17
    %v2031 = vpop.permute.xlu0 %2030
    %2032 = vrot.lane.b32.xlu0 %v2018, 17
    %v2033 = vpop.permute.xlu0 %2032
    %2034 = vrot.lane.b32.xlu0 %v2022, 17
    %v2035 = vpop.permute.xlu0 %2034
    %2036 = vrot.lane.b32.xlu0 %v2019, 17
    %v2037 = vpop.permute.xlu0 %2036
    %2038 = vrot.lane.b32.xlu0 %v2023, 17
    %v2039 = vpop.permute.xlu0 %2038
    %v2040 = vsel %vm97, %v2033, %v2037
    %v2041 = vsel %vm97, %v2035, %v2039
    %v2042 = vsel %vm97, %v2029, %v2033
    %v2043 = vsel %vm97, %v2031, %v2035
    %v2044 = vsel %vm97, %v2025, %v2029
    %v2045 = vsel %vm97, %v2027, %v2031
    %v2046 = vsel %vm97, %v2037, %v2025
    %v2047 = vsel %vm97, %v2039, %v2027
    %v2048 = vmul.f32 %v2046, %v107
    %v2049 = vmul.f32 %v2044, %v111
    %v2050 = vmul.f32 %v2042, %v115
    %v2051 = vmul.f32 %v2040, %v119
    %v2052 = vmul.f32 %v2047, %v107
    %v2053 = vmul.f32 %v2045, %v111
    %v2054 = vmul.f32 %v2043, %v115
    %v2055 = vmul.f32 %v2041, %v119
    %2056 = vrot.lane.b32.xlu0 %v2016, 16
    %v2057 = vpop.permute.xlu0 %2056
    %2058 = vrot.lane.b32.xlu0 %v2020, 16
    %v2059 = vpop.permute.xlu0 %2058
    %2060 = vrot.lane.b32.xlu0 %v2017, 16
    %v2061 = vpop.permute.xlu0 %2060
    %2062 = vrot.lane.b32.xlu0 %v2021, 16
    %v2063 = vpop.permute.xlu0 %2062
    %2064 = vrot.lane.b32.xlu0 %v2018, 16
    %v2065 = vpop.permute.xlu0 %2064
    %2066 = vrot.lane.b32.xlu0 %v2022, 16
    %v2067 = vpop.permute.xlu0 %2066
    %2068 = vrot.lane.b32.xlu0 %v2019, 16
    %v2069 = vpop.permute.xlu0 %2068
    %2070 = vrot.lane.b32.xlu0 %v2023, 16
    %v2071 = vpop.permute.xlu0 %2070
    %v2072 = vsel %vm136, %v2065, %v2069
    %v2073 = vsel %vm136, %v2067, %v2071
    %v2074 = vsel %vm136, %v2061, %v2065
    %v2075 = vsel %vm136, %v2063, %v2067
    %v2076 = vsel %vm136, %v2057, %v2061
    %v2077 = vsel %vm136, %v2059, %v2063
    %v2078 = vsel %vm136, %v2069, %v2057
    %v2079 = vsel %vm136, %v2071, %v2059
    %v2080 = vmul.f32 %v2078, %v147
    %v2081 = vmul.f32 %v2076, %v151
    %v2082 = vmul.f32 %v2074, %v155
    %v2083 = vmul.f32 %v2072, %v159
    %v2084 = vmul.f32 %v2079, %v147
    %v2085 = vmul.f32 %v2077, %v151
    %v2086 = vmul.f32 %v2075, %v155
    %v2087 = vmul.f32 %v2073, %v159
    %2088 = vrot.lane.b32.xlu0 %v2016, 15
    %v2089 = vpop.permute.xlu0 %2088
    %2090 = vrot.lane.b32.xlu0 %v2020, 15
    %v2091 = vpop.permute.xlu0 %2090
    %2092 = vrot.lane.b32.xlu0 %v2017, 15
    %v2093 = vpop.permute.xlu0 %2092
    %2094 = vrot.lane.b32.xlu0 %v2021, 15
    %v2095 = vpop.permute.xlu0 %2094
    %2096 = vrot.lane.b32.xlu0 %v2018, 15
    %v2097 = vpop.permute.xlu0 %2096
    %2098 = vrot.lane.b32.xlu0 %v2022, 15
    %v2099 = vpop.permute.xlu0 %2098
    %2100 = vrot.lane.b32.xlu0 %v2019, 15
    %v2101 = vpop.permute.xlu0 %2100
    %2102 = vrot.lane.b32.xlu0 %v2023, 15
    %v2103 = vpop.permute.xlu0 %2102
    %v2104 = vsel %vm176, %v2097, %v2101
    %v2105 = vsel %vm176, %v2099, %v2103
    %v2106 = vsel %vm176, %v2093, %v2097
    %v2107 = vsel %vm176, %v2095, %v2099
    %v2108 = vsel %vm176, %v2089, %v2093
    %v2109 = vsel %vm176, %v2091, %v2095
    %v2110 = vsel %vm176, %v2101, %v2089
    %v2111 = vsel %vm176, %v2103, %v2091
    %v2112 = vmul.f32 %v2110, %v187
    %v2113 = vmul.f32 %v2108, %v191
    %v2114 = vmul.f32 %v2106, %v195
    %v2115 = vmul.f32 %v2104, %v199
    %v2116 = vmul.f32 %v2111, %v187
    %v2117 = vmul.f32 %v2109, %v191
    %v2118 = vmul.f32 %v2107, %v195
    %v2119 = vmul.f32 %v2105, %v199
    %2120 = vrot.lane.b32.xlu0 %v2016, 1
    %v2121 = vpop.permute.xlu0 %2120
    %2122 = vrot.lane.b32.xlu0 %v2020, 1
    %v2123 = vpop.permute.xlu0 %2122
    %2124 = vrot.lane.b32.xlu0 %v2017, 1
    %v2125 = vpop.permute.xlu0 %2124
    %2126 = vrot.lane.b32.xlu0 %v2021, 1
    %v2127 = vpop.permute.xlu0 %2126
    %2128 = vrot.lane.b32.xlu0 %v2018, 1
    %v2129 = vpop.permute.xlu0 %2128
    %2130 = vrot.lane.b32.xlu0 %v2022, 1
    %v2131 = vpop.permute.xlu0 %2130
    %2132 = vrot.lane.b32.xlu0 %v2019, 1
    %v2133 = vpop.permute.xlu0 %2132
    %2134 = vrot.lane.b32.xlu0 %v2023, 1
    %v2135 = vpop.permute.xlu0 %2134
    %v2136 = vsel %vm216, %v2129, %v2133
    %v2137 = vsel %vm216, %v2131, %v2135
    %v2138 = vsel %vm216, %v2125, %v2129
    %v2139 = vsel %vm216, %v2127, %v2131
    %v2140 = vsel %vm216, %v2121, %v2125
    %v2141 = vsel %vm216, %v2123, %v2127
    %v2142 = vsel %vm216, %v2133, %v2121
    %v2143 = vsel %vm216, %v2135, %v2123
    %v2144 = vmul.f32 %v2142, %v227
    %v2145 = vmul.f32 %v2140, %v231
    %v2146 = vmul.f32 %v2138, %v235
    %v2147 = vmul.f32 %v2136, %v239
    %v2148 = vmul.f32 %v2143, %v227
    %v2149 = vmul.f32 %v2141, %v231
    %v2150 = vmul.f32 %v2139, %v235
    %v2151 = vmul.f32 %v2137, %v239
    %v2152 = vmul.f32 %v2016, %v254
    %v2153 = vmul.f32 %v2017, %v258
    %v2154 = vmul.f32 %v2018, %v262
    %v2155 = vmul.f32 %v2019, %v266
    %v2156 = vmul.f32 %v2020, %v254
    %v2157 = vmul.f32 %v2021, %v258
    %v2158 = vmul.f32 %v2022, %v262
    %v2159 = vmul.f32 %v2023, %v266
    %2160 = vrot.lane.b32.xlu0 %v2016, 127
    %v2161 = vpop.permute.xlu0 %2160
    %2162 = vrot.lane.b32.xlu0 %v2020, 127
    %v2163 = vpop.permute.xlu0 %2162
    %2164 = vrot.lane.b32.xlu0 %v2017, 127
    %v2165 = vpop.permute.xlu0 %2164
    %2166 = vrot.lane.b32.xlu0 %v2021, 127
    %v2167 = vpop.permute.xlu0 %2166
    %2168 = vrot.lane.b32.xlu0 %v2018, 127
    %v2169 = vpop.permute.xlu0 %2168
    %2170 = vrot.lane.b32.xlu0 %v2022, 127
    %v2171 = vpop.permute.xlu0 %2170
    %2172 = vrot.lane.b32.xlu0 %v2019, 127
    %v2173 = vpop.permute.xlu0 %2172
    %2174 = vrot.lane.b32.xlu0 %v2023, 127
    %v2175 = vpop.permute.xlu0 %2174
    %v2176 = vsel %vm281, %v2169, %v2173
    %v2177 = vsel %vm281, %v2171, %v2175
    %v2178 = vsel %vm281, %v2165, %v2169
    %v2179 = vsel %vm281, %v2167, %v2171
    %v2180 = vsel %vm281, %v2161, %v2165
    %v2181 = vsel %vm281, %v2163, %v2167
    %v2182 = vsel %vm281, %v2173, %v2161
    %v2183 = vsel %vm281, %v2175, %v2163
    %v2184 = vmul.f32 %v2180, %v292
    %v2185 = vmul.f32 %v2178, %v296
    %v2186 = vmul.f32 %v2176, %v300
    %v2187 = vmul.f32 %v2182, %v304
    %v2188 = vmul.f32 %v2181, %v292
    %v2189 = vmul.f32 %v2179, %v296
    %v2190 = vmul.f32 %v2177, %v300
    %v2191 = vmul.f32 %v2183, %v304
    %2192 = vrot.lane.b32.xlu0 %v2016, 113
    %v2193 = vpop.permute.xlu0 %2192
    %2194 = vrot.lane.b32.xlu0 %v2020, 113
    %v2195 = vpop.permute.xlu0 %2194
    %2196 = vrot.lane.b32.xlu0 %v2017, 113
    %v2197 = vpop.permute.xlu0 %2196
    %2198 = vrot.lane.b32.xlu0 %v2021, 113
    %v2199 = vpop.permute.xlu0 %2198
    %2200 = vrot.lane.b32.xlu0 %v2018, 113
    %v2201 = vpop.permute.xlu0 %2200
    %2202 = vrot.lane.b32.xlu0 %v2022, 113
    %v2203 = vpop.permute.xlu0 %2202
    %2204 = vrot.lane.b32.xlu0 %v2019, 113
    %v2205 = vpop.permute.xlu0 %2204
    %2206 = vrot.lane.b32.xlu0 %v2023, 113
    %v2207 = vpop.permute.xlu0 %2206
    %v2208 = vsel %vm321, %v2201, %v2205
    %v2209 = vsel %vm321, %v2203, %v2207
    %v2210 = vsel %vm321, %v2197, %v2201
    %v2211 = vsel %vm321, %v2199, %v2203
    %v2212 = vsel %vm321, %v2193, %v2197
    %v2213 = vsel %vm321, %v2195, %v2199
    %v2214 = vsel %vm321, %v2205, %v2193
    %v2215 = vsel %vm321, %v2207, %v2195
    %v2216 = vmul.f32 %v2212, %v332
    %v2217 = vmul.f32 %v2210, %v336
    %v2218 = vmul.f32 %v2208, %v340
    %v2219 = vmul.f32 %v2214, %v344
    %v2220 = vmul.f32 %v2213, %v332
    %v2221 = vmul.f32 %v2211, %v336
    %v2222 = vmul.f32 %v2209, %v340
    %v2223 = vmul.f32 %v2215, %v344
    %2224 = vrot.lane.b32.xlu0 %v2016, 112
    %v2225 = vpop.permute.xlu0 %2224
    %2226 = vrot.lane.b32.xlu0 %v2020, 112
    %v2227 = vpop.permute.xlu0 %2226
    %2228 = vrot.lane.b32.xlu0 %v2017, 112
    %v2229 = vpop.permute.xlu0 %2228
    %2230 = vrot.lane.b32.xlu0 %v2021, 112
    %v2231 = vpop.permute.xlu0 %2230
    %2232 = vrot.lane.b32.xlu0 %v2018, 112
    %v2233 = vpop.permute.xlu0 %2232
    %2234 = vrot.lane.b32.xlu0 %v2022, 112
    %v2235 = vpop.permute.xlu0 %2234
    %2236 = vrot.lane.b32.xlu0 %v2019, 112
    %v2237 = vpop.permute.xlu0 %2236
    %2238 = vrot.lane.b32.xlu0 %v2023, 112
    %v2239 = vpop.permute.xlu0 %2238
    %v2240 = vsel %vm361, %v2233, %v2237
    %v2241 = vsel %vm361, %v2235, %v2239
    %v2242 = vsel %vm361, %v2229, %v2233
    %v2243 = vsel %vm361, %v2231, %v2235
    %v2244 = vsel %vm361, %v2225, %v2229
    %v2245 = vsel %vm361, %v2227, %v2231
    %v2246 = vsel %vm361, %v2237, %v2225
    %v2247 = vsel %vm361, %v2239, %v2227
    %v2248 = vmul.f32 %v2244, %v372
    %v2249 = vmul.f32 %v2242, %v376
    %v2250 = vmul.f32 %v2240, %v380
    %v2251 = vmul.f32 %v2246, %v384
    %v2252 = vmul.f32 %v2245, %v372
    %v2253 = vmul.f32 %v2243, %v376
    %v2254 = vmul.f32 %v2241, %v380
    %v2255 = vmul.f32 %v2247, %v384
    %2256 = vrot.lane.b32.xlu0 %v2016, 111
    %v2257 = vpop.permute.xlu0 %2256
    %2258 = vrot.lane.b32.xlu0 %v2020, 111
    %v2259 = vpop.permute.xlu0 %2258
    %2260 = vrot.lane.b32.xlu0 %v2017, 111
    %v2261 = vpop.permute.xlu0 %2260
    %2262 = vrot.lane.b32.xlu0 %v2021, 111
    %v2263 = vpop.permute.xlu0 %2262
    %2264 = vrot.lane.b32.xlu0 %v2018, 111
    %v2265 = vpop.permute.xlu0 %2264
    %2266 = vrot.lane.b32.xlu0 %v2022, 111
    %v2267 = vpop.permute.xlu0 %2266
    %2268 = vrot.lane.b32.xlu0 %v2019, 111
    %v2269 = vpop.permute.xlu0 %2268
    %2270 = vrot.lane.b32.xlu0 %v2023, 111
    %v2271 = vpop.permute.xlu0 %2270
    %v2272 = vsel %vm401, %v2265, %v2269
    %v2273 = vsel %vm401, %v2267, %v2271
    %v2274 = vsel %vm401, %v2261, %v2265
    %v2275 = vsel %vm401, %v2263, %v2267
    %v2276 = vsel %vm401, %v2257, %v2261
    %v2277 = vsel %vm401, %v2259, %v2263
    %v2278 = vsel %vm401, %v2269, %v2257
    %v2279 = vsel %vm401, %v2271, %v2259
    %v2280 = vmul.f32 %v2276, %v412
    %v2281 = vmul.f32 %v2274, %v416
    %v2282 = vmul.f32 %v2272, %v420
    %v2283 = vmul.f32 %v2278, %v424
    %v2284 = vmul.f32 %v2277, %v412
    %v2285 = vmul.f32 %v2275, %v416
    %v2286 = vmul.f32 %v2273, %v420
    %v2287 = vmul.f32 %v2279, %v424
    %v2288 = vpack.c.bf16 %v2052, %v2048
    %v2289 = vpack.c.bf16 %v2053, %v2049
    %v2290 = vpack.c.bf16 %v2054, %v2050
    %v2291 = vpack.c.bf16 %v2055, %v2051
    %v2292 = vpack.c.bf16 %v2084, %v2080
    %v2293 = vpack.c.bf16 %v2085, %v2081
    %v2294 = vpack.c.bf16 %v2086, %v2082
    %v2295 = vpack.c.bf16 %v2087, %v2083
    %v2296 = vpack.c.bf16 %v2116, %v2112
    %v2297 = vpack.c.bf16 %v2117, %v2113
    %v2298 = vpack.c.bf16 %v2118, %v2114
    %v2299 = vpack.c.bf16 %v2119, %v2115
    %v2300 = vpack.c.bf16 %v2148, %v2144
    %v2301 = vpack.c.bf16 %v2149, %v2145
    %v2302 = vpack.c.bf16 %v2150, %v2146
    %v2303 = vpack.c.bf16 %v2151, %v2147
    %v2304 = vpack.c.bf16 %v2156, %v2152
    %v2305 = vpack.c.bf16 %v2157, %v2153
    %v2306 = vpack.c.bf16 %v2158, %v2154
    %v2307 = vpack.c.bf16 %v2159, %v2155
    %v2308 = vpack.c.bf16 %v2188, %v2184
    %v2309 = vpack.c.bf16 %v2189, %v2185
    %v2310 = vpack.c.bf16 %v2190, %v2186
    %v2311 = vpack.c.bf16 %v2191, %v2187
    %v2312 = vpack.c.bf16 %v2220, %v2216
    %v2313 = vpack.c.bf16 %v2221, %v2217
    %v2314 = vpack.c.bf16 %v2222, %v2218
    %v2315 = vpack.c.bf16 %v2223, %v2219
    %v2316 = vpack.c.bf16 %v2252, %v2248
    %v2317 = vpack.c.bf16 %v2253, %v2249
    %v2318 = vpack.c.bf16 %v2254, %v2250
    %v2319 = vpack.c.bf16 %v2255, %v2251
    %v2320 = vpack.c.bf16 %v2284, %v2280
    %v2321 = vpack.c.bf16 %v2285, %v2281
    %v2322 = vpack.c.bf16 %v2286, %v2282
    %v2323 = vpack.c.bf16 %v2287, %v2283
    %v2324 = vld [vmem:[%s11] sm:$0xff]
    %v2325 = vld [vmem:[%s11 + $0x8] sm:$0xff]
    %v2326 = vld [vmem:[%s11 + $0x10] sm:$0x11]
    %v2327 = vld [vmem:[%s12] sm:$0xff]
    %v2328 = vld [vmem:[%s12 + $0x8] sm:$0xff]
    %v2329 = vld [vmem:[%s12 + $0x10] sm:$0x3]
    %2331 = vset.pattern.permute.xlu0 0
    %2332 = vperm.xlu0 %2331, %v2327
    %v2333 = vpop.permute.xlu0 %2332
    %2336 = vset.pattern.permute.xlu0 0
    %2337 = vperm.xlu0 %2336, %v2328
    %v2338 = vpop.permute.xlu0 %2337
    %2341 = vset.pattern.permute.xlu0 0
    %2342 = vperm.xlu0 %2341, %v2329
    %v2343 = vpop.permute.xlu0 %2342
    %v2348 = vunpack.c.l.b16 %v2324
    %v2349 = vunpack.c.h.b16 %v2324
    %v2350 = vunpack.c.l.b16 %v2325
    %v2351 = vunpack.c.h.b16 %v2325
    %v2352 = vunpack.c.l.b16 %v2326
    %v2353 = vunpack.c.h.b16 %v2326
    %v2354 = vpack.c.b16 %v2350, %v2348
    %v2355 = vpack.c.b16 %v2351, %v2349
    %v2356 = vpack.c.b16 %v2352, %v2352
    %v2357 = vpack.c.b16 %v2353, %v2353
    %vm2360 = vcmask 130048
    %v2362 = vsel %vm2360, %v2355, 0
    %v2365 = vsel %vm2360, %v2357, 0
    %2367 = vmatprep.subr.bf16.mxu0 %v2317
    %2368 = vmatpush1.bf16.msra.mxu0 %v2316
    %2369 = vmatprep.subr.bf16.mxu0 %v2313
    %2370 = vmatpush1.bf16.msra.mxu0 %v2312
    %2371 = vmatprep.subr.bf16.mxu0 %v2309
    %2372 = vmatpush1.bf16.msra.mxu0 %v2308
    %2373 = vmatprep.subr.bf16.mxu0 %v2305
    %2374 = vmatpush1.bf16.msra.mxu0 %v2304
    %2375 = vmatprep.subr.bf16.mxu0 %v2301
    %2376 = vmatpush1.bf16.msra.mxu0 %v2300
    %2377 = vmatprep.subr.bf16.mxu0 %v2297
    %2378 = vmatpush1.bf16.msra.mxu0 %v2296
    %2379 = vmatprep.subr.bf16.mxu0 %v2293
    %2380 = vmatpush1.bf16.msra.mxu0 %v2292
    %2381 = vmatprep.subr.bf16.mxu0 %v2289
    %2382 = vmatpush1.bf16.msra.mxu0 %v2288
    %2383 = vmatprep.subr.bf16.mxu0 0
    %2384 = vmatpush2.bf16.msra.mxu0 0
    %2385 = vmatprep.subr.bf16.mxu0 0
    %2386 = vmatpush2.bf16.msra.mxu0 0
    %2387 = vmatprep.subr.bf16.mxu0 0
    %2388 = vmatpush2.bf16.msra.mxu0 0
    %2389 = vmatprep.subr.bf16.mxu0 0
    %2390 = vmatpush2.bf16.msra.mxu0 0
    %2391 = vmatprep.subr.bf16.mxu0 0
    %2392 = vmatpush2.bf16.msra.mxu0 0
    %2393 = vmatprep.subr.bf16.mxu0 0
    %2394 = vmatpush2.bf16.msra.mxu0 0
    %2395 = vmatprep.subr.bf16.mxu0 0
    %2396 = vmatpush2.bf16.msra.mxu0 0
    %2397 = vmatprep.subr.bf16.mxu0 %v2321
    %2398 = vmatpush2.bf16.msra.mxu0 %v2320
    %2399 = vmatprep.mubr.bf16.mxu0 %v2362
    %2400 = vmatmul.mubr.bf16.gmra.mxu0 %v2354
    %v2401 = vpop.f32.mrf.mxu0
    %v2402 = vadd.f32 %v2333, %v2401
    %v2403 = vpop.f32.mrf.mxu0
    %v2404 = vadd.f32 %v2333, %v2403
    %v2405 = vpop.f32.mrf.mxu0
    %v2406 = vadd.f32 %v2338, %v2405
    %v2407 = vpop.f32.mrf.mxu0
    %v2408 = vadd.f32 %v2338, %v2407
    %2409 = vmatprep.mubr.bf16.mxu0 %v2365
    %2410 = vmatmul.mubr.bf16.gmra.mxu0 %v2356
    %v2411 = vpop.f32.mrf.mxu0
    %v2412 = vadd.f32 %v2343, %v2411
    %v2413 = vpop.f32.mrf.mxu0
    %v2414 = vadd.f32 %v2343, %v2413
    %v2415 = vpop.f32.mrf.mxu0
    %v2416 = vpop.f32.mrf.mxu0
    %2417 = vdwg.mxu0
    %2418 = vmatprep.subr.bf16.mxu0 %v2319
    %2419 = vmatpush1.bf16.msra.mxu0 %v2318
    %2420 = vmatprep.subr.bf16.mxu0 %v2315
    %2421 = vmatpush1.bf16.msra.mxu0 %v2314
    %2422 = vmatprep.subr.bf16.mxu0 %v2311
    %2423 = vmatpush1.bf16.msra.mxu0 %v2310
    %2424 = vmatprep.subr.bf16.mxu0 %v2307
    %2425 = vmatpush1.bf16.msra.mxu0 %v2306
    %2426 = vmatprep.subr.bf16.mxu0 %v2303
    %2427 = vmatpush1.bf16.msra.mxu0 %v2302
    %2428 = vmatprep.subr.bf16.mxu0 %v2299
    %2429 = vmatpush1.bf16.msra.mxu0 %v2298
    %2430 = vmatprep.subr.bf16.mxu0 %v2295
    %2431 = vmatpush1.bf16.msra.mxu0 %v2294
    %2432 = vmatprep.subr.bf16.mxu0 %v2291
    %2433 = vmatpush1.bf16.msra.mxu0 %v2290
    %2434 = vmatprep.subr.bf16.mxu0 0
    %2435 = vmatpush2.bf16.msra.mxu0 0
    %2436 = vmatprep.subr.bf16.mxu0 0
    %2437 = vmatpush2.bf16.msra.mxu0 0
    %2438 = vmatprep.subr.bf16.mxu0 0
    %2439 = vmatpush2.bf16.msra.mxu0 0
    %2440 = vmatprep.subr.bf16.mxu0 0
    %2441 = vmatpush2.bf16.msra.mxu0 0
    %2442 = vmatprep.subr.bf16.mxu0 0
    %2443 = vmatpush2.bf16.msra.mxu0 0
    %2444 = vmatprep.subr.bf16.mxu0 0
    %2445 = vmatpush2.bf16.msra.mxu0 0
    %2446 = vmatprep.subr.bf16.mxu0 0
    %2447 = vmatpush2.bf16.msra.mxu0 0
    %2448 = vmatprep.subr.bf16.mxu0 %v2323
    %2449 = vmatpush2.bf16.msra.mxu0 %v2322
    %2450 = vmatprep.mubr.bf16.mxu0 %v2362
    %2451 = vmatmul.mubr.bf16.gmra.mxu0 %v2354
    %v2452 = vpop.f32.mrf.mxu0
    %v2453 = vadd.f32 %v2333, %v2452
    %v2454 = vpop.f32.mrf.mxu0
    %v2455 = vadd.f32 %v2333, %v2454
    %v2456 = vpop.f32.mrf.mxu0
    %v2457 = vadd.f32 %v2338, %v2456
    %v2458 = vpop.f32.mrf.mxu0
    %v2459 = vadd.f32 %v2338, %v2458
    %2460 = vmatprep.mubr.bf16.mxu0 %v2365
    %2461 = vmatmul.mubr.bf16.gmra.mxu0 %v2356
    %v2462 = vpop.f32.mrf.mxu0
    %v2463 = vadd.f32 %v2343, %v2462
    %v2464 = vpop.f32.mrf.mxu0
    %v2465 = vadd.f32 %v2343, %v2464
    %v2466 = vpop.f32.mrf.mxu0
    %v2467 = vpop.f32.mrf.mxu0
    %2468 = vdwg.mxu0
    %v2469 = vmax.f32 %v2402, 0.0
    %v2470 = vmax.f32 %v2404, 0.0
    %v2471 = vmax.f32 %v2453, 0.0
    %v2472 = vmax.f32 %v2455, 0.0
    %v2473 = vmax.f32 %v2406, 0.0
    %v2474 = vmax.f32 %v2408, 0.0
    %v2475 = vmax.f32 %v2457, 0.0
    %v2476 = vmax.f32 %v2459, 0.0
    %2477 = vrot.lane.b32.xlu0 %v2469, 17
    %v2478 = vpop.permute.xlu0 %2477
    %2479 = vrot.lane.b32.xlu0 %v2473, 17
    %v2480 = vpop.permute.xlu0 %2479
    %2481 = vrot.lane.b32.xlu0 %v2470, 17
    %v2482 = vpop.permute.xlu0 %2481
    %2483 = vrot.lane.b32.xlu0 %v2474, 17
    %v2484 = vpop.permute.xlu0 %2483
    %2485 = vrot.lane.b32.xlu0 %v2471, 17
    %v2486 = vpop.permute.xlu0 %2485
    %2487 = vrot.lane.b32.xlu0 %v2475, 17
    %v2488 = vpop.permute.xlu0 %2487
    %2489 = vrot.lane.b32.xlu0 %v2472, 17
    %v2490 = vpop.permute.xlu0 %2489
    %2491 = vrot.lane.b32.xlu0 %v2476, 17
    %v2492 = vpop.permute.xlu0 %2491
    %v2493 = vsel %vm97, %v2486, %v2490
    %v2494 = vsel %vm97, %v2488, %v2492
    %v2495 = vsel %vm97, %v2482, %v2486
    %v2496 = vsel %vm97, %v2484, %v2488
    %v2497 = vsel %vm97, %v2478, %v2482
    %v2498 = vsel %vm97, %v2480, %v2484
    %v2499 = vsel %vm97, %v2490, %v2478
    %v2500 = vsel %vm97, %v2492, %v2480
    %v2501 = vmul.f32 %v2499, %v107
    %v2502 = vmul.f32 %v2497, %v111
    %v2503 = vmul.f32 %v2495, %v115
    %v2504 = vmul.f32 %v2493, %v119
    %v2505 = vmul.f32 %v2500, %v107
    %v2506 = vmul.f32 %v2498, %v111
    %v2507 = vmul.f32 %v2496, %v115
    %v2508 = vmul.f32 %v2494, %v119
    %2509 = vrot.lane.b32.xlu0 %v2469, 16
    %v2510 = vpop.permute.xlu0 %2509
    %2511 = vrot.lane.b32.xlu0 %v2473, 16
    %v2512 = vpop.permute.xlu0 %2511
    %2513 = vrot.lane.b32.xlu0 %v2470, 16
    %v2514 = vpop.permute.xlu0 %2513
    %2515 = vrot.lane.b32.xlu0 %v2474, 16
    %v2516 = vpop.permute.xlu0 %2515
    %2517 = vrot.lane.b32.xlu0 %v2471, 16
    %v2518 = vpop.permute.xlu0 %2517
    %2519 = vrot.lane.b32.xlu0 %v2475, 16
    %v2520 = vpop.permute.xlu0 %2519
    %2521 = vrot.lane.b32.xlu0 %v2472, 16
    %v2522 = vpop.permute.xlu0 %2521
    %2523 = vrot.lane.b32.xlu0 %v2476, 16
    %v2524 = vpop.permute.xlu0 %2523
    %v2525 = vsel %vm136, %v2518, %v2522
    %v2526 = vsel %vm136, %v2520, %v2524
    %v2527 = vsel %vm136, %v2514, %v2518
    %v2528 = vsel %vm136, %v2516, %v2520
    %v2529 = vsel %vm136, %v2510, %v2514
    %v2530 = vsel %vm136, %v2512, %v2516
    %v2531 = vsel %vm136, %v2522, %v2510
    %v2532 = vsel %vm136, %v2524, %v2512
    %v2533 = vmul.f32 %v2531, %v147
    %v2534 = vmul.f32 %v2529, %v151
    %v2535 = vmul.f32 %v2527, %v155
    %v2536 = vmul.f32 %v2525, %v159
    %v2537 = vmul.f32 %v2532, %v147
    %v2538 = vmul.f32 %v2530, %v151
    %v2539 = vmul.f32 %v2528, %v155
    %v2540 = vmul.f32 %v2526, %v159
    %2541 = vrot.lane.b32.xlu0 %v2469, 15
    %v2542 = vpop.permute.xlu0 %2541
    %2543 = vrot.lane.b32.xlu0 %v2473, 15
    %v2544 = vpop.permute.xlu0 %2543
    %2545 = vrot.lane.b32.xlu0 %v2470, 15
    %v2546 = vpop.permute.xlu0 %2545
    %2547 = vrot.lane.b32.xlu0 %v2474, 15
    %v2548 = vpop.permute.xlu0 %2547
    %2549 = vrot.lane.b32.xlu0 %v2471, 15
    %v2550 = vpop.permute.xlu0 %2549
    %2551 = vrot.lane.b32.xlu0 %v2475, 15
    %v2552 = vpop.permute.xlu0 %2551
    %2553 = vrot.lane.b32.xlu0 %v2472, 15
    %v2554 = vpop.permute.xlu0 %2553
    %2555 = vrot.lane.b32.xlu0 %v2476, 15
    %v2556 = vpop.permute.xlu0 %2555
    %v2557 = vsel %vm176, %v2550, %v2554
    %v2558 = vsel %vm176, %v2552, %v2556
    %v2559 = vsel %vm176, %v2546, %v2550
    %v2560 = vsel %vm176, %v2548, %v2552
    %v2561 = vsel %vm176, %v2542, %v2546
    %v2562 = vsel %vm176, %v2544, %v2548
    %v2563 = vsel %vm176, %v2554, %v2542
    %v2564 = vsel %vm176, %v2556, %v2544
    %v2565 = vmul.f32 %v2563, %v187
    %v2566 = vmul.f32 %v2561, %v191
    %v2567 = vmul.f32 %v2559, %v195
    %v2568 = vmul.f32 %v2557, %v199
    %v2569 = vmul.f32 %v2564, %v187
    %v2570 = vmul.f32 %v2562, %v191
    %v2571 = vmul.f32 %v2560, %v195
    %v2572 = vmul.f32 %v2558, %v199
    %2573 = vrot.lane.b32.xlu0 %v2469, 1
    %v2574 = vpop.permute.xlu0 %2573
    %2575 = vrot.lane.b32.xlu0 %v2473, 1
    %v2576 = vpop.permute.xlu0 %2575
    %2577 = vrot.lane.b32.xlu0 %v2470, 1
    %v2578 = vpop.permute.xlu0 %2577
    %2579 = vrot.lane.b32.xlu0 %v2474, 1
    %v2580 = vpop.permute.xlu0 %2579
    %2581 = vrot.lane.b32.xlu0 %v2471, 1
    %v2582 = vpop.permute.xlu0 %2581
    %2583 = vrot.lane.b32.xlu0 %v2475, 1
    %v2584 = vpop.permute.xlu0 %2583
    %2585 = vrot.lane.b32.xlu0 %v2472, 1
    %v2586 = vpop.permute.xlu0 %2585
    %2587 = vrot.lane.b32.xlu0 %v2476, 1
    %v2588 = vpop.permute.xlu0 %2587
    %v2589 = vsel %vm216, %v2582, %v2586
    %v2590 = vsel %vm216, %v2584, %v2588
    %v2591 = vsel %vm216, %v2578, %v2582
    %v2592 = vsel %vm216, %v2580, %v2584
    %v2593 = vsel %vm216, %v2574, %v2578
    %v2594 = vsel %vm216, %v2576, %v2580
    %v2595 = vsel %vm216, %v2586, %v2574
    %v2596 = vsel %vm216, %v2588, %v2576
    %v2597 = vmul.f32 %v2595, %v227
    %v2598 = vmul.f32 %v2593, %v231
    %v2599 = vmul.f32 %v2591, %v235
    %v2600 = vmul.f32 %v2589, %v239
    %v2601 = vmul.f32 %v2596, %v227
    %v2602 = vmul.f32 %v2594, %v231
    %v2603 = vmul.f32 %v2592, %v235
    %v2604 = vmul.f32 %v2590, %v239
    %v2605 = vmul.f32 %v2469, %v254
    %v2606 = vmul.f32 %v2470, %v258
    %v2607 = vmul.f32 %v2471, %v262
    %v2608 = vmul.f32 %v2472, %v266
    %v2609 = vmul.f32 %v2473, %v254
    %v2610 = vmul.f32 %v2474, %v258
    %v2611 = vmul.f32 %v2475, %v262
    %v2612 = vmul.f32 %v2476, %v266
    %2613 = vrot.lane.b32.xlu0 %v2469, 127
    %v2614 = vpop.permute.xlu0 %2613
    %2615 = vrot.lane.b32.xlu0 %v2473, 127
    %v2616 = vpop.permute.xlu0 %2615
    %2617 = vrot.lane.b32.xlu0 %v2470, 127
    %v2618 = vpop.permute.xlu0 %2617
    %2619 = vrot.lane.b32.xlu0 %v2474, 127
    %v2620 = vpop.permute.xlu0 %2619
    %2621 = vrot.lane.b32.xlu0 %v2471, 127
    %v2622 = vpop.permute.xlu0 %2621
    %2623 = vrot.lane.b32.xlu0 %v2475, 127
    %v2624 = vpop.permute.xlu0 %2623
    %2625 = vrot.lane.b32.xlu0 %v2472, 127
    %v2626 = vpop.permute.xlu0 %2625
    %2627 = vrot.lane.b32.xlu0 %v2476, 127
    %v2628 = vpop.permute.xlu0 %2627
    %v2629 = vsel %vm281, %v2622, %v2626
    %v2630 = vsel %vm281, %v2624, %v2628
    %v2631 = vsel %vm281, %v2618, %v2622
    %v2632 = vsel %vm281, %v2620, %v2624
    %v2633 = vsel %vm281, %v2614, %v2618
    %v2634 = vsel %vm281, %v2616, %v2620
    %v2635 = vsel %vm281, %v2626, %v2614
    %v2636 = vsel %vm281, %v2628, %v2616
    %v2637 = vmul.f32 %v2633, %v292
    %v2638 = vmul.f32 %v2631, %v296
    %v2639 = vmul.f32 %v2629, %v300
    %v2640 = vmul.f32 %v2635, %v304
    %v2641 = vmul.f32 %v2634, %v292
    %v2642 = vmul.f32 %v2632, %v296
    %v2643 = vmul.f32 %v2630, %v300
    %v2644 = vmul.f32 %v2636, %v304
    %2645 = vrot.lane.b32.xlu0 %v2469, 113
    %v2646 = vpop.permute.xlu0 %2645
    %2647 = vrot.lane.b32.xlu0 %v2473, 113
    %v2648 = vpop.permute.xlu0 %2647
    %2649 = vrot.lane.b32.xlu0 %v2470, 113
    %v2650 = vpop.permute.xlu0 %2649
    %2651 = vrot.lane.b32.xlu0 %v2474, 113
    %v2652 = vpop.permute.xlu0 %2651
    %2653 = vrot.lane.b32.xlu0 %v2471, 113
    %v2654 = vpop.permute.xlu0 %2653
    %2655 = vrot.lane.b32.xlu0 %v2475, 113
    %v2656 = vpop.permute.xlu0 %2655
    %2657 = vrot.lane.b32.xlu0 %v2472, 113
    %v2658 = vpop.permute.xlu0 %2657
    %2659 = vrot.lane.b32.xlu0 %v2476, 113
    %v2660 = vpop.permute.xlu0 %2659
    %v2661 = vsel %vm321, %v2654, %v2658
    %v2662 = vsel %vm321, %v2656, %v2660
    %v2663 = vsel %vm321, %v2650, %v2654
    %v2664 = vsel %vm321, %v2652, %v2656
    %v2665 = vsel %vm321, %v2646, %v2650
    %v2666 = vsel %vm321, %v2648, %v2652
    %v2667 = vsel %vm321, %v2658, %v2646
    %v2668 = vsel %vm321, %v2660, %v2648
    %v2669 = vmul.f32 %v2665, %v332
    %v2670 = vmul.f32 %v2663, %v336
    %v2671 = vmul.f32 %v2661, %v340
    %v2672 = vmul.f32 %v2667, %v344
    %v2673 = vmul.f32 %v2666, %v332
    %v2674 = vmul.f32 %v2664, %v336
    %v2675 = vmul.f32 %v2662, %v340
    %v2676 = vmul.f32 %v2668, %v344
    %2677 = vrot.lane.b32.xlu0 %v2469, 112
    %v2678 = vpop.permute.xlu0 %2677
    %2679 = vrot.lane.b32.xlu0 %v2473, 112
    %v2680 = vpop.permute.xlu0 %2679
    %2681 = vrot.lane.b32.xlu0 %v2470, 112
    %v2682 = vpop.permute.xlu0 %2681
    %2683 = vrot.lane.b32.xlu0 %v2474, 112
    %v2684 = vpop.permute.xlu0 %2683
    %2685 = vrot.lane.b32.xlu0 %v2471, 112
    %v2686 = vpop.permute.xlu0 %2685
    %2687 = vrot.lane.b32.xlu0 %v2475, 112
    %v2688 = vpop.permute.xlu0 %2687
    %2689 = vrot.lane.b32.xlu0 %v2472, 112
    %v2690 = vpop.permute.xlu0 %2689
    %2691 = vrot.lane.b32.xlu0 %v2476, 112
    %v2692 = vpop.permute.xlu0 %2691
    %v2693 = vsel %vm361, %v2686, %v2690
    %v2694 = vsel %vm361, %v2688, %v2692
    %v2695 = vsel %vm361, %v2682, %v2686
    %v2696 = vsel %vm361, %v2684, %v2688
    %v2697 = vsel %vm361, %v2678, %v2682
    %v2698 = vsel %vm361, %v2680, %v2684
    %v2699 = vsel %vm361, %v2690, %v2678
    %v2700 = vsel %vm361, %v2692, %v2680
    %v2701 = vmul.f32 %v2697, %v372
    %v2702 = vmul.f32 %v2695, %v376
    %v2703 = vmul.f32 %v2693, %v380
    %v2704 = vmul.f32 %v2699, %v384
    %v2705 = vmul.f32 %v2698, %v372
    %v2706 = vmul.f32 %v2696, %v376
    %v2707 = vmul.f32 %v2694, %v380
    %v2708 = vmul.f32 %v2700, %v384
    %2709 = vrot.lane.b32.xlu0 %v2469, 111
    %v2710 = vpop.permute.xlu0 %2709
    %2711 = vrot.lane.b32.xlu0 %v2473, 111
    %v2712 = vpop.permute.xlu0 %2711
    %2713 = vrot.lane.b32.xlu0 %v2470, 111
    %v2714 = vpop.permute.xlu0 %2713
    %2715 = vrot.lane.b32.xlu0 %v2474, 111
    %v2716 = vpop.permute.xlu0 %2715
    %2717 = vrot.lane.b32.xlu0 %v2471, 111
    %v2718 = vpop.permute.xlu0 %2717
    %2719 = vrot.lane.b32.xlu0 %v2475, 111
    %v2720 = vpop.permute.xlu0 %2719
    %2721 = vrot.lane.b32.xlu0 %v2472, 111
    %v2722 = vpop.permute.xlu0 %2721
    %2723 = vrot.lane.b32.xlu0 %v2476, 111
    %v2724 = vpop.permute.xlu0 %2723
    %v2725 = vsel %vm401, %v2718, %v2722
    %v2726 = vsel %vm401, %v2720, %v2724
    %v2727 = vsel %vm401, %v2714, %v2718
    %v2728 = vsel %vm401, %v2716, %v2720
    %v2729 = vsel %vm401, %v2710, %v2714
    %v2730 = vsel %vm401, %v2712, %v2716
    %v2731 = vsel %vm401, %v2722, %v2710
    %v2732 = vsel %vm401, %v2724, %v2712
    %v2733 = vmul.f32 %v2729, %v412
    %v2734 = vmul.f32 %v2727, %v416
    %v2735 = vmul.f32 %v2725, %v420
    %v2736 = vmul.f32 %v2731, %v424
    %v2737 = vmul.f32 %v2730, %v412
    %v2738 = vmul.f32 %v2728, %v416
    %v2739 = vmul.f32 %v2726, %v420
    %v2740 = vmul.f32 %v2732, %v424
    %v2741 = vpack.c.bf16 %v2505, %v2501
    %v2742 = vpack.c.bf16 %v2506, %v2502
    %v2743 = vpack.c.bf16 %v2507, %v2503
    %v2744 = vpack.c.bf16 %v2508, %v2504
    %v2745 = vpack.c.bf16 %v2537, %v2533
    %v2746 = vpack.c.bf16 %v2538, %v2534
    %v2747 = vpack.c.bf16 %v2539, %v2535
    %v2748 = vpack.c.bf16 %v2540, %v2536
    %v2749 = vpack.c.bf16 %v2569, %v2565
    %v2750 = vpack.c.bf16 %v2570, %v2566
    %v2751 = vpack.c.bf16 %v2571, %v2567
    %v2752 = vpack.c.bf16 %v2572, %v2568
    %v2753 = vpack.c.bf16 %v2601, %v2597
    %v2754 = vpack.c.bf16 %v2602, %v2598
    %v2755 = vpack.c.bf16 %v2603, %v2599
    %v2756 = vpack.c.bf16 %v2604, %v2600
    %v2757 = vpack.c.bf16 %v2609, %v2605
    %v2758 = vpack.c.bf16 %v2610, %v2606
    %v2759 = vpack.c.bf16 %v2611, %v2607
    %v2760 = vpack.c.bf16 %v2612, %v2608
    %v2761 = vpack.c.bf16 %v2641, %v2637
    %v2762 = vpack.c.bf16 %v2642, %v2638
    %v2763 = vpack.c.bf16 %v2643, %v2639
    %v2764 = vpack.c.bf16 %v2644, %v2640
    %v2765 = vpack.c.bf16 %v2673, %v2669
    %v2766 = vpack.c.bf16 %v2674, %v2670
    %v2767 = vpack.c.bf16 %v2675, %v2671
    %v2768 = vpack.c.bf16 %v2676, %v2672
    %v2769 = vpack.c.bf16 %v2705, %v2701
    %v2770 = vpack.c.bf16 %v2706, %v2702
    %v2771 = vpack.c.bf16 %v2707, %v2703
    %v2772 = vpack.c.bf16 %v2708, %v2704
    %v2773 = vpack.c.bf16 %v2737, %v2733
    %v2774 = vpack.c.bf16 %v2738, %v2734
    %v2775 = vpack.c.bf16 %v2739, %v2735
    %v2776 = vpack.c.bf16 %v2740, %v2736
    %v2777 = vld [vmem:[%s13] sm:$0xff]
    %v2778 = vld [vmem:[%s13 + $0x8] sm:$0xff]
    %v2779 = vld [vmem:[%s13 + $0x10] sm:$0x11]
    %v2780 = vld [vmem:[%s14] sm:$0xff]
    %v2781 = vld [vmem:[%s14 + $0x8] sm:$0xff]
    %v2782 = vld [vmem:[%s14 + $0x10] sm:$0x3]
    %2784 = vset.pattern.permute.xlu0 0
    %2785 = vperm.xlu0 %2784, %v2780
    %v2786 = vpop.permute.xlu0 %2785
    %2789 = vset.pattern.permute.xlu0 0
    %2790 = vperm.xlu0 %2789, %v2781
    %v2791 = vpop.permute.xlu0 %2790
    %2794 = vset.pattern.permute.xlu0 0
    %2795 = vperm.xlu0 %2794, %v2782
    %v2796 = vpop.permute.xlu0 %2795
    %v2801 = vunpack.c.l.b16 %v2777
    %v2802 = vunpack.c.h.b16 %v2777
    %v2803 = vunpack.c.l.b16 %v2778
    %v2804 = vunpack.c.h.b16 %v2778
    %v2805 = vunpack.c.l.b16 %v2779
    %v2806 = vunpack.c.h.b16 %v2779
    %v2807 = vpack.c.b16 %v2803, %v2801
    %v2808 = vpack.c.b16 %v2804, %v2802
    %v2809 = vpack.c.b16 %v2805, %v2805
    %v2810 = vpack.c.b16 %v2806, %v2806
    %v2814 = vsel %vm2360, %v2808, 0
    %v2817 = vsel %vm2360, %v2810, 0
    %2819 = vmatprep.subr.bf16.mxu0 %v2770
    %2820 = vmatpush1.bf16.msra.mxu0 %v2769
    %2821 = vmatprep.subr.bf16.mxu0 %v2766
    %2822 = vmatpush1.bf16.msra.mxu0 %v2765
    %2823 = vmatprep.subr.bf16.mxu0 %v2762
    %2824 = vmatpush1.bf16.msra.mxu0 %v2761
    %2825 = vmatprep.subr.bf16.mxu0 %v2758
    %2826 = vmatpush1.bf16.msra.mxu0 %v2757
    %2827 = vmatprep.subr.bf16.mxu0 %v2754
    %2828 = vmatpush1.bf16.msra.mxu0 %v2753
    %2829 = vmatprep.subr.bf16.mxu0 %v2750
    %2830 = vmatpush1.bf16.msra.mxu0 %v2749
    %2831 = vmatprep.subr.bf16.mxu0 %v2746
    %2832 = vmatpush1.bf16.msra.mxu0 %v2745
    %2833 = vmatprep.subr.bf16.mxu0 %v2742
    %2834 = vmatpush1.bf16.msra.mxu0 %v2741
    %2835 = vmatprep.subr.bf16.mxu0 0
    %2836 = vmatpush2.bf16.msra.mxu0 0
    %2837 = vmatprep.subr.bf16.mxu0 0
    %2838 = vmatpush2.bf16.msra.mxu0 0
    %2839 = vmatprep.subr.bf16.mxu0 0
    %2840 = vmatpush2.bf16.msra.mxu0 0
    %2841 = vmatprep.subr.bf16.mxu0 0
    %2842 = vmatpush2.bf16.msra.mxu0 0
    %2843 = vmatprep.subr.bf16.mxu0 0
    %2844 = vmatpush2.bf16.msra.mxu0 0
    %2845 = vmatprep.subr.bf16.mxu0 0
    %2846 = vmatpush2.bf16.msra.mxu0 0
    %2847 = vmatprep.subr.bf16.mxu0 0
    %2848 = vmatpush2.bf16.msra.mxu0 0
    %2849 = vmatprep.subr.bf16.mxu0 %v2774
    %2850 = vmatpush2.bf16.msra.mxu0 %v2773
    %2851 = vmatprep.mubr.bf16.mxu0 %v2814
    %2852 = vmatmul.mubr.bf16.gmra.mxu0 %v2807
    %v2853 = vpop.f32.mrf.mxu0
    %v2854 = vadd.f32 %v2786, %v2853
    %v2855 = vpop.f32.mrf.mxu0
    %v2856 = vadd.f32 %v2786, %v2855
    %v2857 = vpop.f32.mrf.mxu0
    %v2858 = vadd.f32 %v2791, %v2857
    %v2859 = vpop.f32.mrf.mxu0
    %v2860 = vadd.f32 %v2791, %v2859
    %2861 = vmatprep.mubr.bf16.mxu0 %v2817
    %2862 = vmatmul.mubr.bf16.gmra.mxu0 %v2809
    %v2863 = vpop.f32.mrf.mxu0
    %v2864 = vadd.f32 %v2796, %v2863
    %v2865 = vpop.f32.mrf.mxu0
    %v2866 = vadd.f32 %v2796, %v2865
    %v2867 = vpop.f32.mrf.mxu0
    %v2868 = vpop.f32.mrf.mxu0
    %2869 = vdwg.mxu0
    %2870 = vmatprep.subr.bf16.mxu0 %v2772
    %2871 = vmatpush1.bf16.msra.mxu0 %v2771
    %2872 = vmatprep.subr.bf16.mxu0 %v2768
    %2873 = vmatpush1.bf16.msra.mxu0 %v2767
    %2874 = vmatprep.subr.bf16.mxu0 %v2764
    %2875 = vmatpush1.bf16.msra.mxu0 %v2763
    %2876 = vmatprep.subr.bf16.mxu0 %v2760
    %2877 = vmatpush1.bf16.msra.mxu0 %v2759
    %2878 = vmatprep.subr.bf16.mxu0 %v2756
    %2879 = vmatpush1.bf16.msra.mxu0 %v2755
    %2880 = vmatprep.subr.bf16.mxu0 %v2752
    %2881 = vmatpush1.bf16.msra.mxu0 %v2751
    %2882 = vmatprep.subr.bf16.mxu0 %v2748
    %2883 = vmatpush1.bf16.msra.mxu0 %v2747
    %2884 = vmatprep.subr.bf16.mxu0 %v2744
    %2885 = vmatpush1.bf16.msra.mxu0 %v2743
    %2886 = vmatprep.subr.bf16.mxu0 0
    %2887 = vmatpush2.bf16.msra.mxu0 0
    %2888 = vmatprep.subr.bf16.mxu0 0
    %2889 = vmatpush2.bf16.msra.mxu0 0
    %2890 = vmatprep.subr.bf16.mxu0 0
    %2891 = vmatpush2.bf16.msra.mxu0 0
    %2892 = vmatprep.subr.bf16.mxu0 0
    %2893 = vmatpush2.bf16.msra.mxu0 0
    %2894 = vmatprep.subr.bf16.mxu0 0
    %2895 = vmatpush2.bf16.msra.mxu0 0
    %2896 = vmatprep.subr.bf16.mxu0 0
    %2897 = vmatpush2.bf16.msra.mxu0 0
    %2898 = vmatprep.subr.bf16.mxu0 0
    %2899 = vmatpush2.bf16.msra.mxu0 0
    %2900 = vmatprep.subr.bf16.mxu0 %v2776
    %2901 = vmatpush2.bf16.msra.mxu0 %v2775
    %2902 = vmatprep.mubr.bf16.mxu0 %v2814
    %2903 = vmatmul.mubr.bf16.gmra.mxu0 %v2807
    %v2904 = vpop.f32.mrf.mxu0
    %v2905 = vadd.f32 %v2786, %v2904
    %v2906 = vpop.f32.mrf.mxu0
    %v2907 = vadd.f32 %v2786, %v2906
    %v2908 = vpop.f32.mrf.mxu0
    %v2909 = vadd.f32 %v2791, %v2908
    %v2910 = vpop.f32.mrf.mxu0
    %v2911 = vadd.f32 %v2791, %v2910
    %2912 = vmatprep.mubr.bf16.mxu0 %v2817
    %2913 = vmatmul.mubr.bf16.gmra.mxu0 %v2809
    %v2914 = vpop.f32.mrf.mxu0
    %v2915 = vadd.f32 %v2796, %v2914
    %v2916 = vpop.f32.mrf.mxu0
    %v2917 = vadd.f32 %v2796, %v2916
    %v2918 = vpop.f32.mrf.mxu0
    %v2919 = vpop.f32.mrf.mxu0
    %2920 = vdwg.mxu0
    %2921 = vst [vmem:[%s15] sm:$0x3] %v2412
    %2922 = vst [vmem:[%s15 + $0x8] sm:$0x3] %v2414
    %2923 = vst [vmem:[%s15 + $0x10] sm:$0x3] %v2463
    %2924 = vst [vmem:[%s15 + $0x18] sm:$0x3] %v2465
    %v2937 = vrot.slane %v2854, 6
    %v2938 = vrot.slane %v2856, 6
    %v2939 = vrot.slane %v2905, 6
    %v2940 = vrot.slane %v2907, 6
    %v2941 = vrot.slane %v2858, 6
    %v2942 = vsel %vm527, %v2937, %v2941
    %v2943 = vrot.slane %v2860, 6
    %v2944 = vsel %vm527, %v2938, %v2943
    %v2945 = vrot.slane %v2909, 6
    %v2946 = vsel %vm527, %v2939, %v2945
    %v2947 = vrot.slane %v2911, 6
    %v2948 = vsel %vm527, %v2940, %v2947
    %v2949 = vrot.slane %v2864, 6
    %v2950 = vsel %vm527, %v2941, %v2949
    %v2951 = vrot.slane %v2866, 6
    %v2952 = vsel %vm527, %v2943, %v2951
    %v2953 = vrot.slane %v2915, 6
    %v2954 = vsel %vm527, %v2945, %v2953
    %v2955 = vrot.slane %v2917, 6
    %v2956 = vsel %vm527, %v2947, %v2955
    %2969 = vst [vmem:[%s15] sm:$0xfc] %v2937
    %2970 = vst [vmem:[%s15 + $0x8] sm:$0xfc] %v2938
    %2971 = vst [vmem:[%s15 + $0x10] sm:$0xfc] %v2939
    %2972 = vst [vmem:[%s15 + $0x18] sm:$0xfc] %v2940
    %2973 = vst [vmem:[%s15 + $0x20] sm:$0xff] %v2942
    %2974 = vst [vmem:[%s15 + $0x28] sm:$0xff] %v2944
    %2975 = vst [vmem:[%s15 + $0x30] sm:$0xff] %v2946
    %2976 = vst [vmem:[%s15 + $0x38] sm:$0xff] %v2948
    %2977 = vst [vmem:[%s15 + $0x40] sm:$0xf] %v2950
    %2978 = vst [vmem:[%s15 + $0x48] sm:$0xf] %v2952
    %2979 = vst [vmem:[%s15 + $0x50] sm:$0xf] %v2954
    %2980 = vst [vmem:[%s15 + $0x58] sm:$0xf] %v2956
    // Predicated region
    $region70: #{retina_unnet_forward.1} parent=1 // pred_check
      _
    $region71: #{retina_unnet_forward.1} parent=1 // pred_check_branch
      %2982 = sbr.rel (0) target = $region73
    $region72: #{retina_unnet_forward.1} parent=1 // pred_region
      _
    $region73: #{retina_unnet_forward.1} parent=1 // pred_fallthru
      _
    // Predicated region
    $region74: #{retina_unnet_forward.1} parent=1 // pred_check
      _
    $region75: #{retina_unnet_forward.1} parent=1 // pred_check_branch
      %2984 = sbr.rel (0) target = $region77
    $region76: #{retina_unnet_forward.1} parent=1 // pred_region
      _
    $region77: #{retina_unnet_forward.1} parent=1 // pred_fallthru
      _
    %2985 = vsyncpa [#allocation3], 1
    %2986 = vsyncpa [#allocation5], 1

</llo_original>
